<compile_context>
chip_gen: v7x
topology: tpu7x:2x2x1
jax: 0.10.0
libtpu: 0.0.40
codegen_flags: <defaults>
</compile_context>

<pallas_src>
import jax
import jax.numpy as jnp
from jax.experimental import pallas as pl
from jax.experimental.pallas import tpu as pltpu

INPUT_SIZE = 13
HIDDEN_SIZE = 128
NUM_CLASSES = 13
NUM_LAYERS = 2

DIN_PAD = 16    # input features padded only to 16 (not 128)
CPAD = 128      # FC output kept lane-dense at 128; classes sliced in the wrapper


# ---------------------------------------------------------------------------
# Pallas kernel: 2-layer LSTM over the full sequence + FC head, fully fused.
# ---------------------------------------------------------------------------
def fused_rnn_kernel(x_ref,                       # (T*Bp, DIN_PAD) bf16, time-major
                     wih0_ref, whh0_ref, b0_ref,  # (DIN_PAD,4H) bf16, (H,4H) bf16, (1,4H) f32
                     wih1_ref, whh1_ref, b1_ref,  # (H,4H) bf16, (H,4H) bf16, (1,4H) f32
                     wfc_ref, bfc_ref,            # (H,CPAD) bf16, (1,CPAD) f32
                     out_ref,                     # (Bp, CPAD) f32
                     y_scr,                       # (T, Bp, H)  f32  layer-0 hidden sequence
                     gates_scr):                  # (T, Bp, 4H) f32  hoisted input projection
    T, Bp, _ = gates_scr.shape
    H = y_scr.shape[2]

    def run_layer(in2d_bf16, wih_ref, whh_ref, b_ref, store_seq):
        # Input projection for ALL timesteps at once (no recurrent dependency):
        # one bulk bf16 MXU matmul with f32 accumulation, parked in VMEM scratch.
        gates_scr[...] = (
            jnp.dot(in2d_bf16, wih_ref[...], preferred_element_type=jnp.float32)
            + b_ref[...]
        ).reshape(T, Bp, 4 * H)

        def step(t, carry):
            # h, c live in vregs as loop carries (no per-step VMEM round-trip).
            h, c = carry
            # Only the recurrent matmul stays on the serial path; LHS is a cheap
            # (8,128) bf16 cast, accumulation in f32.
            gates = gates_scr[t] + jnp.dot(
                h.astype(jnp.bfloat16), whh_ref[...],
                preferred_element_type=jnp.float32)     # (Bp, 4H), gate order [i,f,o,g]
            sig = jax.nn.sigmoid(gates[:, 0:3 * H])     # one EUP region for i, f, o
            i_g = sig[:, 0:H]
            f_g = sig[:, H:2 * H]
            o_g = sig[:, 2 * H:3 * H]
            g_g = jnp.tanh(gates[:, 3 * H:4 * H])
            c = f_g * c + i_g * g_g                     # cell math kept in f32
            h = o_g * jnp.tanh(c)
            if store_seq:
                y_scr[t] = h                            # off the critical path
            return (h, c)

        zeros = jnp.zeros((Bp, H), jnp.float32)
        # Bounded unroll: enough scheduler visibility to overlap step t's gate
        # math with step t+1's matmul without exploding live ranges at large T.
        h_last, _ = jax.lax.fori_loop(0, T, step, (zeros, zeros),
                                      unroll=min(T, 8))
        return h_last

    # Layer 0: consumes padded input, writes its hidden sequence to y_scr.
    run_layer(x_ref[...], wih0_ref, whh0_ref, b0_ref, store_seq=True)
    # Layer 1: consumes layer-0 sequence (one bulk bf16 cast); only final h needed.
    h_top = run_layer(y_scr[...].reshape(T * Bp, H).astype(jnp.bfloat16),
                      wih1_ref, whh1_ref, b1_ref, store_seq=False)

    # FC head on the last hidden state of the top layer (lane-dense output).
    out_ref[...] = (
        jnp.dot(h_top.astype(jnp.bfloat16), wfc_ref[...],
                preferred_element_type=jnp.float32)
        + bfc_ref[...]
    ).astype(out_ref.dtype)


# ---------------------------------------------------------------------------
# Wrapper
# ---------------------------------------------------------------------------
def rnn_forward(x, kparams):
    """x: (B, T, input_size) -> (B, num_classes), matching RNN.forward."""
    B, T, D = x.shape
    H = HIDDEN_SIZE
    Bp = ((B + 7) // 8) * 8  # pad batch to the 8-sublane tile

    # time-major, pad batch (sublane) and features (to 16 lanes), flatten T*Bp,
    # and cast the matmul LHS to bf16 (weights are bf16, accumulation is f32).
    xt = jnp.transpose(x, (1, 0, 2))                               # (T, B, D)
    xt = jnp.pad(xt, ((0, 0), (0, Bp - B), (0, DIN_PAD - D)))      # (T, Bp, DIN_PAD)
    x2d = xt.reshape(T * Bp, DIN_PAD).astype(jnp.bfloat16)

    out_padded = pl.pallas_call(
        fused_rnn_kernel,
        out_shape=jax.ShapeDtypeStruct((Bp, CPAD), jnp.float32),
        scratch_shapes=[
            pltpu.VMEM((T, Bp, H), jnp.float32),       # layer-0 output sequence
            pltpu.VMEM((T, Bp, 4 * H), jnp.float32),   # hoisted input-projection gates
        ],
    )(x2d, *kparams)

    return out_padded[:B, :NUM_CLASSES]


# ---------------------------------------------------------------------------
# Parameters: raw torch-shaped params + kernel-ready (reordered/padded/bf16)
# ---------------------------------------------------------------------------
def init_raw_params(key):
    """Deterministic synthetic parameters in PyTorch layout / gate order."""
    raw = {}
    d_in = INPUT_SIZE
    H = HIDDEN_SIZE
    scale = 1.0 / jnp.sqrt(H)
    for layer in range(NUM_LAYERS):
        key, k1, k2, k3, k4 = jax.random.split(key, 5)
        w_ih = jax.random.uniform(k1, (4 * H, d_in), jnp.float32, -scale, scale)
        w_hh = jax.random.uniform(k2, (4 * H, H), jnp.float32, -scale, scale)
        b_ih = jax.random.uniform(k3, (4 * H,), jnp.float32, -scale, scale)
        b_hh = jax.random.uniform(k4, (4 * H,), jnp.float32, -scale, scale)
        raw[f"lstm{layer}"] = (w_ih, w_hh, b_ih, b_hh)
        d_in = H
    key, k1, k2 = jax.random.split(key, 3)
    w_fc = jax.random.uniform(k1, (NUM_CLASSES, H), jnp.float32, -scale, scale)
    b_fc = jax.random.uniform(k2, (NUM_CLASSES,), jnp.float32, -scale, scale)
    raw["fc"] = (w_fc, b_fc)
    return raw


def prepare_params(raw):
    """Reorder gates i,f,g,o -> i,f,o,g, transpose for x@W, pad to tiles,
    cast matmul weights to bf16 (biases stay f32)."""
    H = HIDDEN_SIZE

    def reorder(w):  # along leading 4H axis (works for 1-D biases, 2-D weights)
        return jnp.concatenate(
            [w[0:H], w[H:2 * H], w[3 * H:4 * H], w[2 * H:3 * H]], axis=0)

    w_ih0, w_hh0, b_ih0, b_hh0 = raw["lstm0"]
    w_ih1, w_hh1, b_ih1, b_hh1 = raw["lstm1"]
    w_fc, b_fc = raw["fc"]

    wih0 = jnp.pad(reorder(w_ih0).T,
                   ((0, DIN_PAD - INPUT_SIZE), (0, 0))).astype(jnp.bfloat16)
    whh0 = reorder(w_hh0).T.astype(jnp.bfloat16)                    # (H, 4H)
    b0 = reorder(b_ih0 + b_hh0).reshape(1, 4 * H)                   # f32

    wih1 = reorder(w_ih1).T.astype(jnp.bfloat16)                    # (H, 4H)
    whh1 = reorder(w_hh1).T.astype(jnp.bfloat16)                    # (H, 4H)
    b1 = reorder(b_ih1 + b_hh1).reshape(1, 4 * H)                   # f32

    wfc = jnp.pad(w_fc.T, ((0, 0), (0, CPAD - NUM_CLASSES))).astype(jnp.bfloat16)
    bfc = jnp.pad(b_fc, (0, CPAD - NUM_CLASSES)).reshape(1, CPAD)   # f32

    return (wih0, whh0, b0, wih1, whh1, b1, wfc, bfc)


# ---------------------------------------------------------------------------
# Pure-JAX references
# ---------------------------------------------------------------------------
def rnn_forward_ref_f32(x, raw):
    """Plain f32 PyTorch-semantics reference."""
    B = x.shape[0]
    H = HIDDEN_SIZE
    xt = jnp.transpose(x, (1, 0, 2))
    for layer in range(NUM_LAYERS):
        w_ih, w_hh, b_ih, b_hh = raw[f"lstm{layer}"]
        h = jnp.zeros((B, H), jnp.float32)
        c = jnp.zeros((B, H), jnp.float32)
        ys = []
        for t in range(xt.shape[0]):
            gates = xt[t] @ w_ih.T + h @ w_hh.T + b_ih + b_hh
            i = jax.nn.sigmoid(gates[:, 0:H])
            f = jax.nn.sigmoid(gates[:, H:2 * H])
            g = jnp.tanh(gates[:, 2 * H:3 * H])
            o = jax.nn.sigmoid(gates[:, 3 * H:4 * H])
            c = f * c + i * g
            h = o * jnp.tanh(c)
            ys.append(h)
        xt = jnp.stack(ys, axis=0)
    w_fc, b_fc = raw["fc"]
    return xt[-1] @ w_fc.T + b_fc


def rnn_forward_ref_bf16(x, raw):
    """Mirror of the kernel's numerics: matmul operands rounded to bf16,
    f32 accumulation, f32 cell/elementwise math."""
    bf = lambda a: a.astype(jnp.bfloat16).astype(jnp.float32)
    B = x.shape[0]
    H = HIDDEN_SIZE
    seq = bf(jnp.transpose(x, (1, 0, 2)))           # kernel casts x to bf16
    for layer in range(NUM_LAYERS):
        w_ih, w_hh, b_ih, b_hh = raw[f"lstm{layer}"]
        wih, whh, b = bf(w_ih), bf(w_hh), b_ih + b_hh
        h = jnp.zeros((B, H), jnp.float32)
        c = jnp.zeros((B, H), jnp.float32)
        ys = []
        for t in range(seq.shape[0]):
            gates = seq[t] @ wih.T + bf(h) @ whh.T + b
            i = jax.nn.sigmoid(gates[:, 0:H])
            f = jax.nn.sigmoid(gates[:, H:2 * H])
            g = jnp.tanh(gates[:, 2 * H:3 * H])
            o = jax.nn.sigmoid(gates[:, 3 * H:4 * H])
            c = f * c + i * g
            h = o * jnp.tanh(c)
            ys.append(h)
        seq = bf(jnp.stack(ys, axis=0))             # next layer sees bf16(h) sequence
    w_fc, b_fc = raw["fc"]
    return seq[-1] @ bf(w_fc).T + b_fc


# ---------------------------------------------------------------------------
if __name__ == "__main__":
    key = jax.random.PRNGKey(0)
    key, xkey = jax.random.split(key)

    B, T = 4, 6  # small batch / sequence; feature dims fixed by the module
    x = jax.random.normal(xkey, (B, T, INPUT_SIZE), jnp.float32)

    raw = init_raw_params(key)
    kparams = prepare_params(raw)

    out = jax.block_until_ready(rnn_forward(x, kparams))
    assert out.shape == (B, NUM_CLASSES), out.shape

    # Tight check: kernel math vs. an exactly-mirrored bf16/f32 reference.
    ref_bf16 = rnn_forward_ref_bf16(x, raw)
    err_bf16 = float(jnp.max(jnp.abs(out - ref_bf16)))
    assert jnp.allclose(out, ref_bf16, atol=1e-3, rtol=1e-3), err_bf16

    # Loose sanity check: bf16-weight kernel vs. full-f32 PyTorch semantics.
    ref_f32 = rnn_forward_ref_f32(x, raw)
    err_f32 = float(jnp.max(jnp.abs(out - ref_f32)))
    assert jnp.allclose(out, ref_f32, atol=5e-2, rtol=5e-2), err_f32

    print("KERNEL_OK")
</pallas_src>

<mosaic_0001>
module attributes {stable_mosaic.version = 11 : i64} {
  func.func @fused_rnn_kernel(%arg0: memref<48x16xbf16, #tpu.memory_space<vmem>>, %arg1: memref<16x512xbf16, #tpu.memory_space<vmem>>, %arg2: memref<128x512xbf16, #tpu.memory_space<vmem>>, %arg3: memref<1x512xf32, #tpu.memory_space<vmem>>, %arg4: memref<128x512xbf16, #tpu.memory_space<vmem>>, %arg5: memref<128x512xbf16, #tpu.memory_space<vmem>>, %arg6: memref<1x512xf32, #tpu.memory_space<vmem>>, %arg7: memref<128x128xbf16, #tpu.memory_space<vmem>>, %arg8: memref<1x128xf32, #tpu.memory_space<vmem>>, %arg9: memref<8x128xf32, #tpu.memory_space<vmem>>, %arg10: memref<6x8x128xf32, #tpu.memory_space<vmem>>, %arg11: memref<6x8x512xf32, #tpu.memory_space<vmem>>) attributes {dimension_semantics = [], scalar_prefetch = 0 : i64, scratch_operands = 2 : i64, tpu.core_type = #tpu.core_type<tc>} {
    %c0 = arith.constant 0 : index
    %c0_0 = arith.constant 0 : index
    %0 = vector.load %arg0[%c0, %c0_0] : memref<48x16xbf16, #tpu.memory_space<vmem>>, vector<48x16xbf16>
    %c0_1 = arith.constant 0 : index
    %c0_2 = arith.constant 0 : index
    %1 = vector.load %arg1[%c0_1, %c0_2] : memref<16x512xbf16, #tpu.memory_space<vmem>>, vector<16x512xbf16>
    %cst = arith.constant dense<0.000000e+00> : vector<48x512xf32>
    %2 = tpu.matmul %0, %1, %cst {dimension_numbers = #tpu.dot_dimension_numbers<[1], [0], [0], [1], [0, 0, 1, 1], [], []>} : vector<48x16xbf16>, vector<16x512xbf16>, vector<48x512xf32> -> vector<48x512xf32>
    %c0_3 = arith.constant 0 : index
    %c0_4 = arith.constant 0 : index
    %3 = vector.load %arg3[%c0_3, %c0_4] : memref<1x512xf32, #tpu.memory_space<vmem>>, vector<1x512xf32>
    %4 = vector.broadcast %3 : vector<1x512xf32> to vector<48x512xf32>
    %5 = arith.addf %2, %4 : vector<48x512xf32>
    %6 = vector.shape_cast %5 : vector<48x512xf32> to vector<6x8x512xf32>
    %c0_5 = arith.constant 0 : index
    %c0_6 = arith.constant 0 : index
    %c0_7 = arith.constant 0 : index
    %7 = vector.load %arg11[%c0_5, %c0_6, %c0_7] : memref<6x8x512xf32, #tpu.memory_space<vmem>>, vector<6x8x512xf32>
    tpu.vector_store %arg11[%c0_5, %c0_6, %c0_7], %6 {strides = array<i32>} : memref<6x8x512xf32, #tpu.memory_space<vmem>>, vector<6x8x512xf32>,
    %cst_8 = arith.constant 0.000000e+00 : f32
    %8 = vector.broadcast %cst_8 : f32 to vector<8x128xf32>
    %c0_i32 = arith.constant 0 : i32
    %9 = arith.index_cast %c0_i32 : i32 to index
    %c0_9 = arith.constant 0 : index
    %c0_10 = arith.constant 0 : index
    %10 = vector.load %arg11[%9, %c0_9, %c0_10] : memref<6x8x512xf32, #tpu.memory_space<vmem>>, vector<1x8x512xf32>
    %11 = vector.shape_cast %10 : vector<1x8x512xf32> to vector<8x512xf32>
    %12 = arith.truncf %8 : vector<8x128xf32> to vector<8x128xbf16>
    %c0_11 = arith.constant 0 : index
    %c0_12 = arith.constant 0 : index
    %13 = vector.load %arg2[%c0_11, %c0_12] : memref<128x512xbf16, #tpu.memory_space<vmem>>, vector<128x512xbf16>
    %cst_13 = arith.constant dense<0.000000e+00> : vector<8x512xf32>
    %14 = tpu.matmul %12, %13, %cst_13 {dimension_numbers = #tpu.dot_dimension_numbers<[1], [0], [0], [1], [0, 0, 1, 1], [], []>} : vector<8x128xbf16>, vector<128x512xbf16>, vector<8x512xf32> -> vector<8x512xf32>
    %15 = arith.addf %11, %14 : vector<8x512xf32>
    %16 = vector.extract_strided_slice %15 {offsets = [0, 0], sizes = [8, 384], strides = [1, 1]} : vector<8x512xf32> to vector<8x384xf32>
    %17 = arith.negf %16 : vector<8x384xf32>
    %18 = math.exp %17 : vector<8x384xf32>
    %cst_14 = arith.constant 1.000000e+00 : f32
    %19 = vector.broadcast %cst_14 : f32 to vector<8x384xf32>
    %20 = arith.addf %19, %18 : vector<8x384xf32>
    %21 = arith.divf %19, %20 : vector<8x384xf32>
    %22 = vector.extract_strided_slice %21 {offsets = [0, 0], sizes = [8, 128], strides = [1, 1]} : vector<8x384xf32> to vector<8x128xf32>
    %23 = vector.extract_strided_slice %21 {offsets = [0, 128], sizes = [8, 128], strides = [1, 1]} : vector<8x384xf32> to vector<8x128xf32>
    %24 = vector.extract_strided_slice %21 {offsets = [0, 256], sizes = [8, 128], strides = [1, 1]} : vector<8x384xf32> to vector<8x128xf32>
    %25 = vector.extract_strided_slice %15 {offsets = [0, 384], sizes = [8, 128], strides = [1, 1]} : vector<8x512xf32> to vector<8x128xf32>
    %26 = math.tanh %25 : vector<8x128xf32>
    %27 = arith.mulf %23, %8 : vector<8x128xf32>
    %28 = arith.mulf %22, %26 : vector<8x128xf32>
    %29 = arith.addf %27, %28 : vector<8x128xf32>
    %30 = math.tanh %29 : vector<8x128xf32>
    %31 = arith.mulf %24, %30 : vector<8x128xf32>
    %32 = arith.index_cast %c0_i32 : i32 to index
    %c0_15 = arith.constant 0 : index
    %c0_16 = arith.constant 0 : index
    %33 = vector.load %arg10[%32, %c0_15, %c0_16] : memref<6x8x128xf32, #tpu.memory_space<vmem>>, vector<1x8x128xf32>
    %34 = vector.shape_cast %33 : vector<1x8x128xf32> to vector<8x128xf32>
    %35 = vector.shape_cast %31 : vector<8x128xf32> to vector<1x8x128xf32>
    tpu.vector_store %arg10[%32, %c0_15, %c0_16], %35 {strides = array<i32>} : memref<6x8x128xf32, #tpu.memory_space<vmem>>, vector<1x8x128xf32>,
    %c1_i32 = arith.constant 1 : i32
    %36 = arith.index_cast %c1_i32 : i32 to index
    %c0_17 = arith.constant 0 : index
    %c0_18 = arith.constant 0 : index
    %37 = vector.load %arg11[%36, %c0_17, %c0_18] : memref<6x8x512xf32, #tpu.memory_space<vmem>>, vector<1x8x512xf32>
    %38 = vector.shape_cast %37 : vector<1x8x512xf32> to vector<8x512xf32>
    %39 = arith.truncf %31 : vector<8x128xf32> to vector<8x128xbf16>
    %c0_19 = arith.constant 0 : index
    %c0_20 = arith.constant 0 : index
    %40 = vector.load %arg2[%c0_19, %c0_20] : memref<128x512xbf16, #tpu.memory_space<vmem>>, vector<128x512xbf16>
    %cst_21 = arith.constant dense<0.000000e+00> : vector<8x512xf32>
    %41 = tpu.matmul %39, %40, %cst_21 {dimension_numbers = #tpu.dot_dimension_numbers<[1], [0], [0], [1], [0, 0, 1, 1], [], []>} : vector<8x128xbf16>, vector<128x512xbf16>, vector<8x512xf32> -> vector<8x512xf32>
    %42 = arith.addf %38, %41 : vector<8x512xf32>
    %43 = vector.extract_strided_slice %42 {offsets = [0, 0], sizes = [8, 384], strides = [1, 1]} : vector<8x512xf32> to vector<8x384xf32>
    %44 = arith.negf %43 : vector<8x384xf32>
    %45 = math.exp %44 : vector<8x384xf32>
    %cst_22 = arith.constant 1.000000e+00 : f32
    %46 = vector.broadcast %cst_22 : f32 to vector<8x384xf32>
    %47 = arith.addf %46, %45 : vector<8x384xf32>
    %48 = arith.divf %46, %47 : vector<8x384xf32>
    %49 = vector.extract_strided_slice %48 {offsets = [0, 0], sizes = [8, 128], strides = [1, 1]} : vector<8x384xf32> to vector<8x128xf32>
    %50 = vector.extract_strided_slice %48 {offsets = [0, 128], sizes = [8, 128], strides = [1, 1]} : vector<8x384xf32> to vector<8x128xf32>
    %51 = vector.extract_strided_slice %48 {offsets = [0, 256], sizes = [8, 128], strides = [1, 1]} : vector<8x384xf32> to vector<8x128xf32>
    %52 = vector.extract_strided_slice %42 {offsets = [0, 384], sizes = [8, 128], strides = [1, 1]} : vector<8x512xf32> to vector<8x128xf32>
    %53 = math.tanh %52 : vector<8x128xf32>
    %54 = arith.mulf %50, %29 : vector<8x128xf32>
    %55 = arith.mulf %49, %53 : vector<8x128xf32>
    %56 = arith.addf %54, %55 : vector<8x128xf32>
    %57 = math.tanh %56 : vector<8x128xf32>
    %58 = arith.mulf %51, %57 : vector<8x128xf32>
    %59 = arith.index_cast %c1_i32 : i32 to index
    %c0_23 = arith.constant 0 : index
    %c0_24 = arith.constant 0 : index
    %60 = vector.load %arg10[%59, %c0_23, %c0_24] : memref<6x8x128xf32, #tpu.memory_space<vmem>>, vector<1x8x128xf32>
    %61 = vector.shape_cast %60 : vector<1x8x128xf32> to vector<8x128xf32>
    %62 = vector.shape_cast %58 : vector<8x128xf32> to vector<1x8x128xf32>
    tpu.vector_store %arg10[%59, %c0_23, %c0_24], %62 {strides = array<i32>} : memref<6x8x128xf32, #tpu.memory_space<vmem>>, vector<1x8x128xf32>,
    %c2_i32 = arith.constant 2 : i32
    %63 = arith.index_cast %c2_i32 : i32 to index
    %c0_25 = arith.constant 0 : index
    %c0_26 = arith.constant 0 : index
    %64 = vector.load %arg11[%63, %c0_25, %c0_26] : memref<6x8x512xf32, #tpu.memory_space<vmem>>, vector<1x8x512xf32>
    %65 = vector.shape_cast %64 : vector<1x8x512xf32> to vector<8x512xf32>
    %66 = arith.truncf %58 : vector<8x128xf32> to vector<8x128xbf16>
    %c0_27 = arith.constant 0 : index
    %c0_28 = arith.constant 0 : index
    %67 = vector.load %arg2[%c0_27, %c0_28] : memref<128x512xbf16, #tpu.memory_space<vmem>>, vector<128x512xbf16>
    %cst_29 = arith.constant dense<0.000000e+00> : vector<8x512xf32>
    %68 = tpu.matmul %66, %67, %cst_29 {dimension_numbers = #tpu.dot_dimension_numbers<[1], [0], [0], [1], [0, 0, 1, 1], [], []>} : vector<8x128xbf16>, vector<128x512xbf16>, vector<8x512xf32> -> vector<8x512xf32>
    %69 = arith.addf %65, %68 : vector<8x512xf32>
    %70 = vector.extract_strided_slice %69 {offsets = [0, 0], sizes = [8, 384], strides = [1, 1]} : vector<8x512xf32> to vector<8x384xf32>
    %71 = arith.negf %70 : vector<8x384xf32>
    %72 = math.exp %71 : vector<8x384xf32>
    %cst_30 = arith.constant 1.000000e+00 : f32
    %73 = vector.broadcast %cst_30 : f32 to vector<8x384xf32>
    %74 = arith.addf %73, %72 : vector<8x384xf32>
    %75 = arith.divf %73, %74 : vector<8x384xf32>
    %76 = vector.extract_strided_slice %75 {offsets = [0, 0], sizes = [8, 128], strides = [1, 1]} : vector<8x384xf32> to vector<8x128xf32>
    %77 = vector.extract_strided_slice %75 {offsets = [0, 128], sizes = [8, 128], strides = [1, 1]} : vector<8x384xf32> to vector<8x128xf32>
    %78 = vector.extract_strided_slice %75 {offsets = [0, 256], sizes = [8, 128], strides = [1, 1]} : vector<8x384xf32> to vector<8x128xf32>
    %79 = vector.extract_strided_slice %69 {offsets = [0, 384], sizes = [8, 128], strides = [1, 1]} : vector<8x512xf32> to vector<8x128xf32>
    %80 = math.tanh %79 : vector<8x128xf32>
    %81 = arith.mulf %77, %56 : vector<8x128xf32>
    %82 = arith.mulf %76, %80 : vector<8x128xf32>
    %83 = arith.addf %81, %82 : vector<8x128xf32>
    %84 = math.tanh %83 : vector<8x128xf32>
    %85 = arith.mulf %78, %84 : vector<8x128xf32>
    %86 = arith.index_cast %c2_i32 : i32 to index
    %c0_31 = arith.constant 0 : index
    %c0_32 = arith.constant 0 : index
    %87 = vector.load %arg10[%86, %c0_31, %c0_32] : memref<6x8x128xf32, #tpu.memory_space<vmem>>, vector<1x8x128xf32>
    %88 = vector.shape_cast %87 : vector<1x8x128xf32> to vector<8x128xf32>
    %89 = vector.shape_cast %85 : vector<8x128xf32> to vector<1x8x128xf32>
    tpu.vector_store %arg10[%86, %c0_31, %c0_32], %89 {strides = array<i32>} : memref<6x8x128xf32, #tpu.memory_space<vmem>>, vector<1x8x128xf32>,
    %c3_i32 = arith.constant 3 : i32
    %90 = arith.index_cast %c3_i32 : i32 to index
    %c0_33 = arith.constant 0 : index
    %c0_34 = arith.constant 0 : index
    %91 = vector.load %arg11[%90, %c0_33, %c0_34] : memref<6x8x512xf32, #tpu.memory_space<vmem>>, vector<1x8x512xf32>
    %92 = vector.shape_cast %91 : vector<1x8x512xf32> to vector<8x512xf32>
    %93 = arith.truncf %85 : vector<8x128xf32> to vector<8x128xbf16>
    %c0_35 = arith.constant 0 : index
    %c0_36 = arith.constant 0 : index
    %94 = vector.load %arg2[%c0_35, %c0_36] : memref<128x512xbf16, #tpu.memory_space<vmem>>, vector<128x512xbf16>
    %cst_37 = arith.constant dense<0.000000e+00> : vector<8x512xf32>
    %95 = tpu.matmul %93, %94, %cst_37 {dimension_numbers = #tpu.dot_dimension_numbers<[1], [0], [0], [1], [0, 0, 1, 1], [], []>} : vector<8x128xbf16>, vector<128x512xbf16>, vector<8x512xf32> -> vector<8x512xf32>
    %96 = arith.addf %92, %95 : vector<8x512xf32>
    %97 = vector.extract_strided_slice %96 {offsets = [0, 0], sizes = [8, 384], strides = [1, 1]} : vector<8x512xf32> to vector<8x384xf32>
    %98 = arith.negf %97 : vector<8x384xf32>
    %99 = math.exp %98 : vector<8x384xf32>
    %cst_38 = arith.constant 1.000000e+00 : f32
    %100 = vector.broadcast %cst_38 : f32 to vector<8x384xf32>
    %101 = arith.addf %100, %99 : vector<8x384xf32>
    %102 = arith.divf %100, %101 : vector<8x384xf32>
    %103 = vector.extract_strided_slice %102 {offsets = [0, 0], sizes = [8, 128], strides = [1, 1]} : vector<8x384xf32> to vector<8x128xf32>
    %104 = vector.extract_strided_slice %102 {offsets = [0, 128], sizes = [8, 128], strides = [1, 1]} : vector<8x384xf32> to vector<8x128xf32>
    %105 = vector.extract_strided_slice %102 {offsets = [0, 256], sizes = [8, 128], strides = [1, 1]} : vector<8x384xf32> to vector<8x128xf32>
    %106 = vector.extract_strided_slice %96 {offsets = [0, 384], sizes = [8, 128], strides = [1, 1]} : vector<8x512xf32> to vector<8x128xf32>
    %107 = math.tanh %106 : vector<8x128xf32>
    %108 = arith.mulf %104, %83 : vector<8x128xf32>
    %109 = arith.mulf %103, %107 : vector<8x128xf32>
    %110 = arith.addf %108, %109 : vector<8x128xf32>
    %111 = math.tanh %110 : vector<8x128xf32>
    %112 = arith.mulf %105, %111 : vector<8x128xf32>
    %113 = arith.index_cast %c3_i32 : i32 to index
    %c0_39 = arith.constant 0 : index
    %c0_40 = arith.constant 0 : index
    %114 = vector.load %arg10[%113, %c0_39, %c0_40] : memref<6x8x128xf32, #tpu.memory_space<vmem>>, vector<1x8x128xf32>
    %115 = vector.shape_cast %114 : vector<1x8x128xf32> to vector<8x128xf32>
    %116 = vector.shape_cast %112 : vector<8x128xf32> to vector<1x8x128xf32>
    tpu.vector_store %arg10[%113, %c0_39, %c0_40], %116 {strides = array<i32>} : memref<6x8x128xf32, #tpu.memory_space<vmem>>, vector<1x8x128xf32>,
    %c4_i32 = arith.constant 4 : i32
    %117 = arith.index_cast %c4_i32 : i32 to index
    %c0_41 = arith.constant 0 : index
    %c0_42 = arith.constant 0 : index
    %118 = vector.load %arg11[%117, %c0_41, %c0_42] : memref<6x8x512xf32, #tpu.memory_space<vmem>>, vector<1x8x512xf32>
    %119 = vector.shape_cast %118 : vector<1x8x512xf32> to vector<8x512xf32>
    %120 = arith.truncf %112 : vector<8x128xf32> to vector<8x128xbf16>
    %c0_43 = arith.constant 0 : index
    %c0_44 = arith.constant 0 : index
    %121 = vector.load %arg2[%c0_43, %c0_44] : memref<128x512xbf16, #tpu.memory_space<vmem>>, vector<128x512xbf16>
    %cst_45 = arith.constant dense<0.000000e+00> : vector<8x512xf32>
    %122 = tpu.matmul %120, %121, %cst_45 {dimension_numbers = #tpu.dot_dimension_numbers<[1], [0], [0], [1], [0, 0, 1, 1], [], []>} : vector<8x128xbf16>, vector<128x512xbf16>, vector<8x512xf32> -> vector<8x512xf32>
    %123 = arith.addf %119, %122 : vector<8x512xf32>
    %124 = vector.extract_strided_slice %123 {offsets = [0, 0], sizes = [8, 384], strides = [1, 1]} : vector<8x512xf32> to vector<8x384xf32>
    %125 = arith.negf %124 : vector<8x384xf32>
    %126 = math.exp %125 : vector<8x384xf32>
    %cst_46 = arith.constant 1.000000e+00 : f32
    %127 = vector.broadcast %cst_46 : f32 to vector<8x384xf32>
    %128 = arith.addf %127, %126 : vector<8x384xf32>
    %129 = arith.divf %127, %128 : vector<8x384xf32>
    %130 = vector.extract_strided_slice %129 {offsets = [0, 0], sizes = [8, 128], strides = [1, 1]} : vector<8x384xf32> to vector<8x128xf32>
    %131 = vector.extract_strided_slice %129 {offsets = [0, 128], sizes = [8, 128], strides = [1, 1]} : vector<8x384xf32> to vector<8x128xf32>
    %132 = vector.extract_strided_slice %129 {offsets = [0, 256], sizes = [8, 128], strides = [1, 1]} : vector<8x384xf32> to vector<8x128xf32>
    %133 = vector.extract_strided_slice %123 {offsets = [0, 384], sizes = [8, 128], strides = [1, 1]} : vector<8x512xf32> to vector<8x128xf32>
    %134 = math.tanh %133 : vector<8x128xf32>
    %135 = arith.mulf %131, %110 : vector<8x128xf32>
    %136 = arith.mulf %130, %134 : vector<8x128xf32>
    %137 = arith.addf %135, %136 : vector<8x128xf32>
    %138 = math.tanh %137 : vector<8x128xf32>
    %139 = arith.mulf %132, %138 : vector<8x128xf32>
    %140 = arith.index_cast %c4_i32 : i32 to index
    %c0_47 = arith.constant 0 : index
    %c0_48 = arith.constant 0 : index
    %141 = vector.load %arg10[%140, %c0_47, %c0_48] : memref<6x8x128xf32, #tpu.memory_space<vmem>>, vector<1x8x128xf32>
    %142 = vector.shape_cast %141 : vector<1x8x128xf32> to vector<8x128xf32>
    %143 = vector.shape_cast %139 : vector<8x128xf32> to vector<1x8x128xf32>
    tpu.vector_store %arg10[%140, %c0_47, %c0_48], %143 {strides = array<i32>} : memref<6x8x128xf32, #tpu.memory_space<vmem>>, vector<1x8x128xf32>,
    %c5_i32 = arith.constant 5 : i32
    %144 = arith.index_cast %c5_i32 : i32 to index
    %c0_49 = arith.constant 0 : index
    %c0_50 = arith.constant 0 : index
    %145 = vector.load %arg11[%144, %c0_49, %c0_50] : memref<6x8x512xf32, #tpu.memory_space<vmem>>, vector<1x8x512xf32>
    %146 = vector.shape_cast %145 : vector<1x8x512xf32> to vector<8x512xf32>
    %147 = arith.truncf %139 : vector<8x128xf32> to vector<8x128xbf16>
    %c0_51 = arith.constant 0 : index
    %c0_52 = arith.constant 0 : index
    %148 = vector.load %arg2[%c0_51, %c0_52] : memref<128x512xbf16, #tpu.memory_space<vmem>>, vector<128x512xbf16>
    %cst_53 = arith.constant dense<0.000000e+00> : vector<8x512xf32>
    %149 = tpu.matmul %147, %148, %cst_53 {dimension_numbers = #tpu.dot_dimension_numbers<[1], [0], [0], [1], [0, 0, 1, 1], [], []>} : vector<8x128xbf16>, vector<128x512xbf16>, vector<8x512xf32> -> vector<8x512xf32>
    %150 = arith.addf %146, %149 : vector<8x512xf32>
    %151 = vector.extract_strided_slice %150 {offsets = [0, 0], sizes = [8, 384], strides = [1, 1]} : vector<8x512xf32> to vector<8x384xf32>
    %152 = arith.negf %151 : vector<8x384xf32>
    %153 = math.exp %152 : vector<8x384xf32>
    %cst_54 = arith.constant 1.000000e+00 : f32
    %154 = vector.broadcast %cst_54 : f32 to vector<8x384xf32>
    %155 = arith.addf %154, %153 : vector<8x384xf32>
    %156 = arith.divf %154, %155 : vector<8x384xf32>
    %157 = vector.extract_strided_slice %156 {offsets = [0, 0], sizes = [8, 128], strides = [1, 1]} : vector<8x384xf32> to vector<8x128xf32>
    %158 = vector.extract_strided_slice %156 {offsets = [0, 128], sizes = [8, 128], strides = [1, 1]} : vector<8x384xf32> to vector<8x128xf32>
    %159 = vector.extract_strided_slice %156 {offsets = [0, 256], sizes = [8, 128], strides = [1, 1]} : vector<8x384xf32> to vector<8x128xf32>
    %160 = vector.extract_strided_slice %150 {offsets = [0, 384], sizes = [8, 128], strides = [1, 1]} : vector<8x512xf32> to vector<8x128xf32>
    %161 = math.tanh %160 : vector<8x128xf32>
    %162 = arith.mulf %158, %137 : vector<8x128xf32>
    %163 = arith.mulf %157, %161 : vector<8x128xf32>
    %164 = arith.addf %162, %163 : vector<8x128xf32>
    %165 = math.tanh %164 : vector<8x128xf32>
    %166 = arith.mulf %159, %165 : vector<8x128xf32>
    %167 = arith.index_cast %c5_i32 : i32 to index
    %c0_55 = arith.constant 0 : index
    %c0_56 = arith.constant 0 : index
    %168 = vector.load %arg10[%167, %c0_55, %c0_56] : memref<6x8x128xf32, #tpu.memory_space<vmem>>, vector<1x8x128xf32>
    %169 = vector.shape_cast %168 : vector<1x8x128xf32> to vector<8x128xf32>
    %170 = vector.shape_cast %166 : vector<8x128xf32> to vector<1x8x128xf32>
    tpu.vector_store %arg10[%167, %c0_55, %c0_56], %170 {strides = array<i32>} : memref<6x8x128xf32, #tpu.memory_space<vmem>>, vector<1x8x128xf32>,
    %c6_i32 = arith.constant 6 : i32
    %c0_57 = arith.constant 0 : index
    %c0_58 = arith.constant 0 : index
    %c0_59 = arith.constant 0 : index
    %171 = vector.load %arg10[%c0_57, %c0_58, %c0_59] : memref<6x8x128xf32, #tpu.memory_space<vmem>>, vector<6x8x128xf32>
    %172 = vector.shape_cast %171 : vector<6x8x128xf32> to vector<48x128xf32>
    %173 = arith.truncf %172 : vector<48x128xf32> to vector<48x128xbf16>
    %c0_60 = arith.constant 0 : index
    %c0_61 = arith.constant 0 : index
    %174 = vector.load %arg4[%c0_60, %c0_61] : memref<128x512xbf16, #tpu.memory_space<vmem>>, vector<128x512xbf16>
    %cst_62 = arith.constant dense<0.000000e+00> : vector<48x512xf32>
    %175 = tpu.matmul %173, %174, %cst_62 {dimension_numbers = #tpu.dot_dimension_numbers<[1], [0], [0], [1], [0, 0, 1, 1], [], []>} : vector<48x128xbf16>, vector<128x512xbf16>, vector<48x512xf32> -> vector<48x512xf32>
    %c0_63 = arith.constant 0 : index
    %c0_64 = arith.constant 0 : index
    %176 = vector.load %arg6[%c0_63, %c0_64] : memref<1x512xf32, #tpu.memory_space<vmem>>, vector<1x512xf32>
    %177 = vector.broadcast %176 : vector<1x512xf32> to vector<48x512xf32>
    %178 = arith.addf %175, %177 : vector<48x512xf32>
    %179 = vector.shape_cast %178 : vector<48x512xf32> to vector<6x8x512xf32>
    %c0_65 = arith.constant 0 : index
    %c0_66 = arith.constant 0 : index
    %c0_67 = arith.constant 0 : index
    %180 = vector.load %arg11[%c0_65, %c0_66, %c0_67] : memref<6x8x512xf32, #tpu.memory_space<vmem>>, vector<6x8x512xf32>
    tpu.vector_store %arg11[%c0_65, %c0_66, %c0_67], %179 {strides = array<i32>} : memref<6x8x512xf32, #tpu.memory_space<vmem>>, vector<6x8x512xf32>,
    %cst_68 = arith.constant 0.000000e+00 : f32
    %181 = vector.broadcast %cst_68 : f32 to vector<8x128xf32>
    %c0_i32_69 = arith.constant 0 : i32
    %182 = arith.index_cast %c0_i32_69 : i32 to index
    %c0_70 = arith.constant 0 : index
    %c0_71 = arith.constant 0 : index
    %183 = vector.load %arg11[%182, %c0_70, %c0_71] : memref<6x8x512xf32, #tpu.memory_space<vmem>>, vector<1x8x512xf32>
    %184 = vector.shape_cast %183 : vector<1x8x512xf32> to vector<8x512xf32>
    %185 = arith.truncf %181 : vector<8x128xf32> to vector<8x128xbf16>
    %c0_72 = arith.constant 0 : index
    %c0_73 = arith.constant 0 : index
    %186 = vector.load %arg5[%c0_72, %c0_73] : memref<128x512xbf16, #tpu.memory_space<vmem>>, vector<128x512xbf16>
    %cst_74 = arith.constant dense<0.000000e+00> : vector<8x512xf32>
    %187 = tpu.matmul %185, %186, %cst_74 {dimension_numbers = #tpu.dot_dimension_numbers<[1], [0], [0], [1], [0, 0, 1, 1], [], []>} : vector<8x128xbf16>, vector<128x512xbf16>, vector<8x512xf32> -> vector<8x512xf32>
    %188 = arith.addf %184, %187 : vector<8x512xf32>
    %189 = vector.extract_strided_slice %188 {offsets = [0, 0], sizes = [8, 384], strides = [1, 1]} : vector<8x512xf32> to vector<8x384xf32>
    %190 = arith.negf %189 : vector<8x384xf32>
    %191 = math.exp %190 : vector<8x384xf32>
    %cst_75 = arith.constant 1.000000e+00 : f32
    %192 = vector.broadcast %cst_75 : f32 to vector<8x384xf32>
    %193 = arith.addf %192, %191 : vector<8x384xf32>
    %194 = arith.divf %192, %193 : vector<8x384xf32>
    %195 = vector.extract_strided_slice %194 {offsets = [0, 0], sizes = [8, 128], strides = [1, 1]} : vector<8x384xf32> to vector<8x128xf32>
    %196 = vector.extract_strided_slice %194 {offsets = [0, 128], sizes = [8, 128], strides = [1, 1]} : vector<8x384xf32> to vector<8x128xf32>
    %197 = vector.extract_strided_slice %194 {offsets = [0, 256], sizes = [8, 128], strides = [1, 1]} : vector<8x384xf32> to vector<8x128xf32>
    %198 = vector.extract_strided_slice %188 {offsets = [0, 384], sizes = [8, 128], strides = [1, 1]} : vector<8x512xf32> to vector<8x128xf32>
    %199 = math.tanh %198 : vector<8x128xf32>
    %200 = arith.mulf %196, %181 : vector<8x128xf32>
    %201 = arith.mulf %195, %199 : vector<8x128xf32>
    %202 = arith.addf %200, %201 : vector<8x128xf32>
    %203 = math.tanh %202 : vector<8x128xf32>
    %204 = arith.mulf %197, %203 : vector<8x128xf32>
    %c1_i32_76 = arith.constant 1 : i32
    %205 = arith.index_cast %c1_i32_76 : i32 to index
    %c0_77 = arith.constant 0 : index
    %c0_78 = arith.constant 0 : index
    %206 = vector.load %arg11[%205, %c0_77, %c0_78] : memref<6x8x512xf32, #tpu.memory_space<vmem>>, vector<1x8x512xf32>
    %207 = vector.shape_cast %206 : vector<1x8x512xf32> to vector<8x512xf32>
    %208 = arith.truncf %204 : vector<8x128xf32> to vector<8x128xbf16>
    %c0_79 = arith.constant 0 : index
    %c0_80 = arith.constant 0 : index
    %209 = vector.load %arg5[%c0_79, %c0_80] : memref<128x512xbf16, #tpu.memory_space<vmem>>, vector<128x512xbf16>
    %cst_81 = arith.constant dense<0.000000e+00> : vector<8x512xf32>
    %210 = tpu.matmul %208, %209, %cst_81 {dimension_numbers = #tpu.dot_dimension_numbers<[1], [0], [0], [1], [0, 0, 1, 1], [], []>} : vector<8x128xbf16>, vector<128x512xbf16>, vector<8x512xf32> -> vector<8x512xf32>
    %211 = arith.addf %207, %210 : vector<8x512xf32>
    %212 = vector.extract_strided_slice %211 {offsets = [0, 0], sizes = [8, 384], strides = [1, 1]} : vector<8x512xf32> to vector<8x384xf32>
    %213 = arith.negf %212 : vector<8x384xf32>
    %214 = math.exp %213 : vector<8x384xf32>
    %cst_82 = arith.constant 1.000000e+00 : f32
    %215 = vector.broadcast %cst_82 : f32 to vector<8x384xf32>
    %216 = arith.addf %215, %214 : vector<8x384xf32>
    %217 = arith.divf %215, %216 : vector<8x384xf32>
    %218 = vector.extract_strided_slice %217 {offsets = [0, 0], sizes = [8, 128], strides = [1, 1]} : vector<8x384xf32> to vector<8x128xf32>
    %219 = vector.extract_strided_slice %217 {offsets = [0, 128], sizes = [8, 128], strides = [1, 1]} : vector<8x384xf32> to vector<8x128xf32>
    %220 = vector.extract_strided_slice %217 {offsets = [0, 256], sizes = [8, 128], strides = [1, 1]} : vector<8x384xf32> to vector<8x128xf32>
    %221 = vector.extract_strided_slice %211 {offsets = [0, 384], sizes = [8, 128], strides = [1, 1]} : vector<8x512xf32> to vector<8x128xf32>
    %222 = math.tanh %221 : vector<8x128xf32>
    %223 = arith.mulf %219, %202 : vector<8x128xf32>
    %224 = arith.mulf %218, %222 : vector<8x128xf32>
    %225 = arith.addf %223, %224 : vector<8x128xf32>
    %226 = math.tanh %225 : vector<8x128xf32>
    %227 = arith.mulf %220, %226 : vector<8x128xf32>
    %c2_i32_83 = arith.constant 2 : i32
    %228 = arith.index_cast %c2_i32_83 : i32 to index
    %c0_84 = arith.constant 0 : index
    %c0_85 = arith.constant 0 : index
    %229 = vector.load %arg11[%228, %c0_84, %c0_85] : memref<6x8x512xf32, #tpu.memory_space<vmem>>, vector<1x8x512xf32>
    %230 = vector.shape_cast %229 : vector<1x8x512xf32> to vector<8x512xf32>
    %231 = arith.truncf %227 : vector<8x128xf32> to vector<8x128xbf16>
    %c0_86 = arith.constant 0 : index
    %c0_87 = arith.constant 0 : index
    %232 = vector.load %arg5[%c0_86, %c0_87] : memref<128x512xbf16, #tpu.memory_space<vmem>>, vector<128x512xbf16>
    %cst_88 = arith.constant dense<0.000000e+00> : vector<8x512xf32>
    %233 = tpu.matmul %231, %232, %cst_88 {dimension_numbers = #tpu.dot_dimension_numbers<[1], [0], [0], [1], [0, 0, 1, 1], [], []>} : vector<8x128xbf16>, vector<128x512xbf16>, vector<8x512xf32> -> vector<8x512xf32>
    %234 = arith.addf %230, %233 : vector<8x512xf32>
    %235 = vector.extract_strided_slice %234 {offsets = [0, 0], sizes = [8, 384], strides = [1, 1]} : vector<8x512xf32> to vector<8x384xf32>
    %236 = arith.negf %235 : vector<8x384xf32>
    %237 = math.exp %236 : vector<8x384xf32>
    %cst_89 = arith.constant 1.000000e+00 : f32
    %238 = vector.broadcast %cst_89 : f32 to vector<8x384xf32>
    %239 = arith.addf %238, %237 : vector<8x384xf32>
    %240 = arith.divf %238, %239 : vector<8x384xf32>
    %241 = vector.extract_strided_slice %240 {offsets = [0, 0], sizes = [8, 128], strides = [1, 1]} : vector<8x384xf32> to vector<8x128xf32>
    %242 = vector.extract_strided_slice %240 {offsets = [0, 128], sizes = [8, 128], strides = [1, 1]} : vector<8x384xf32> to vector<8x128xf32>
    %243 = vector.extract_strided_slice %240 {offsets = [0, 256], sizes = [8, 128], strides = [1, 1]} : vector<8x384xf32> to vector<8x128xf32>
    %244 = vector.extract_strided_slice %234 {offsets = [0, 384], sizes = [8, 128], strides = [1, 1]} : vector<8x512xf32> to vector<8x128xf32>
    %245 = math.tanh %244 : vector<8x128xf32>
    %246 = arith.mulf %242, %225 : vector<8x128xf32>
    %247 = arith.mulf %241, %245 : vector<8x128xf32>
    %248 = arith.addf %246, %247 : vector<8x128xf32>
    %249 = math.tanh %248 : vector<8x128xf32>
    %250 = arith.mulf %243, %249 : vector<8x128xf32>
    %c3_i32_90 = arith.constant 3 : i32
    %251 = arith.index_cast %c3_i32_90 : i32 to index
    %c0_91 = arith.constant 0 : index
    %c0_92 = arith.constant 0 : index
    %252 = vector.load %arg11[%251, %c0_91, %c0_92] : memref<6x8x512xf32, #tpu.memory_space<vmem>>, vector<1x8x512xf32>
    %253 = vector.shape_cast %252 : vector<1x8x512xf32> to vector<8x512xf32>
    %254 = arith.truncf %250 : vector<8x128xf32> to vector<8x128xbf16>
    %c0_93 = arith.constant 0 : index
    %c0_94 = arith.constant 0 : index
    %255 = vector.load %arg5[%c0_93, %c0_94] : memref<128x512xbf16, #tpu.memory_space<vmem>>, vector<128x512xbf16>
    %cst_95 = arith.constant dense<0.000000e+00> : vector<8x512xf32>
    %256 = tpu.matmul %254, %255, %cst_95 {dimension_numbers = #tpu.dot_dimension_numbers<[1], [0], [0], [1], [0, 0, 1, 1], [], []>} : vector<8x128xbf16>, vector<128x512xbf16>, vector<8x512xf32> -> vector<8x512xf32>
    %257 = arith.addf %253, %256 : vector<8x512xf32>
    %258 = vector.extract_strided_slice %257 {offsets = [0, 0], sizes = [8, 384], strides = [1, 1]} : vector<8x512xf32> to vector<8x384xf32>
    %259 = arith.negf %258 : vector<8x384xf32>
    %260 = math.exp %259 : vector<8x384xf32>
    %cst_96 = arith.constant 1.000000e+00 : f32
    %261 = vector.broadcast %cst_96 : f32 to vector<8x384xf32>
    %262 = arith.addf %261, %260 : vector<8x384xf32>
    %263 = arith.divf %261, %262 : vector<8x384xf32>
    %264 = vector.extract_strided_slice %263 {offsets = [0, 0], sizes = [8, 128], strides = [1, 1]} : vector<8x384xf32> to vector<8x128xf32>
    %265 = vector.extract_strided_slice %263 {offsets = [0, 128], sizes = [8, 128], strides = [1, 1]} : vector<8x384xf32> to vector<8x128xf32>
    %266 = vector.extract_strided_slice %263 {offsets = [0, 256], sizes = [8, 128], strides = [1, 1]} : vector<8x384xf32> to vector<8x128xf32>
    %267 = vector.extract_strided_slice %257 {offsets = [0, 384], sizes = [8, 128], strides = [1, 1]} : vector<8x512xf32> to vector<8x128xf32>
    %268 = math.tanh %267 : vector<8x128xf32>
    %269 = arith.mulf %265, %248 : vector<8x128xf32>
    %270 = arith.mulf %264, %268 : vector<8x128xf32>
    %271 = arith.addf %269, %270 : vector<8x128xf32>
    %272 = math.tanh %271 : vector<8x128xf32>
    %273 = arith.mulf %266, %272 : vector<8x128xf32>
    %c4_i32_97 = arith.constant 4 : i32
    %274 = arith.index_cast %c4_i32_97 : i32 to index
    %c0_98 = arith.constant 0 : index
    %c0_99 = arith.constant 0 : index
    %275 = vector.load %arg11[%274, %c0_98, %c0_99] : memref<6x8x512xf32, #tpu.memory_space<vmem>>, vector<1x8x512xf32>
    %276 = vector.shape_cast %275 : vector<1x8x512xf32> to vector<8x512xf32>
    %277 = arith.truncf %273 : vector<8x128xf32> to vector<8x128xbf16>
    %c0_100 = arith.constant 0 : index
    %c0_101 = arith.constant 0 : index
    %278 = vector.load %arg5[%c0_100, %c0_101] : memref<128x512xbf16, #tpu.memory_space<vmem>>, vector<128x512xbf16>
    %cst_102 = arith.constant dense<0.000000e+00> : vector<8x512xf32>
    %279 = tpu.matmul %277, %278, %cst_102 {dimension_numbers = #tpu.dot_dimension_numbers<[1], [0], [0], [1], [0, 0, 1, 1], [], []>} : vector<8x128xbf16>, vector<128x512xbf16>, vector<8x512xf32> -> vector<8x512xf32>
    %280 = arith.addf %276, %279 : vector<8x512xf32>
    %281 = vector.extract_strided_slice %280 {offsets = [0, 0], sizes = [8, 384], strides = [1, 1]} : vector<8x512xf32> to vector<8x384xf32>
    %282 = arith.negf %281 : vector<8x384xf32>
    %283 = math.exp %282 : vector<8x384xf32>
    %cst_103 = arith.constant 1.000000e+00 : f32
    %284 = vector.broadcast %cst_103 : f32 to vector<8x384xf32>
    %285 = arith.addf %284, %283 : vector<8x384xf32>
    %286 = arith.divf %284, %285 : vector<8x384xf32>
    %287 = vector.extract_strided_slice %286 {offsets = [0, 0], sizes = [8, 128], strides = [1, 1]} : vector<8x384xf32> to vector<8x128xf32>
    %288 = vector.extract_strided_slice %286 {offsets = [0, 128], sizes = [8, 128], strides = [1, 1]} : vector<8x384xf32> to vector<8x128xf32>
    %289 = vector.extract_strided_slice %286 {offsets = [0, 256], sizes = [8, 128], strides = [1, 1]} : vector<8x384xf32> to vector<8x128xf32>
    %290 = vector.extract_strided_slice %280 {offsets = [0, 384], sizes = [8, 128], strides = [1, 1]} : vector<8x512xf32> to vector<8x128xf32>
    %291 = math.tanh %290 : vector<8x128xf32>
    %292 = arith.mulf %288, %271 : vector<8x128xf32>
    %293 = arith.mulf %287, %291 : vector<8x128xf32>
    %294 = arith.addf %292, %293 : vector<8x128xf32>
    %295 = math.tanh %294 : vector<8x128xf32>
    %296 = arith.mulf %289, %295 : vector<8x128xf32>
    %c5_i32_104 = arith.constant 5 : i32
    %297 = arith.index_cast %c5_i32_104 : i32 to index
    %c0_105 = arith.constant 0 : index
    %c0_106 = arith.constant 0 : index
    %298 = vector.load %arg11[%297, %c0_105, %c0_106] : memref<6x8x512xf32, #tpu.memory_space<vmem>>, vector<1x8x512xf32>
    %299 = vector.shape_cast %298 : vector<1x8x512xf32> to vector<8x512xf32>
    %300 = arith.truncf %296 : vector<8x128xf32> to vector<8x128xbf16>
    %c0_107 = arith.constant 0 : index
    %c0_108 = arith.constant 0 : index
    %301 = vector.load %arg5[%c0_107, %c0_108] : memref<128x512xbf16, #tpu.memory_space<vmem>>, vector<128x512xbf16>
    %cst_109 = arith.constant dense<0.000000e+00> : vector<8x512xf32>
    %302 = tpu.matmul %300, %301, %cst_109 {dimension_numbers = #tpu.dot_dimension_numbers<[1], [0], [0], [1], [0, 0, 1, 1], [], []>} : vector<8x128xbf16>, vector<128x512xbf16>, vector<8x512xf32> -> vector<8x512xf32>
    %303 = arith.addf %299, %302 : vector<8x512xf32>
    %304 = vector.extract_strided_slice %303 {offsets = [0, 0], sizes = [8, 384], strides = [1, 1]} : vector<8x512xf32> to vector<8x384xf32>
    %305 = arith.negf %304 : vector<8x384xf32>
    %306 = math.exp %305 : vector<8x384xf32>
    %cst_110 = arith.constant 1.000000e+00 : f32
    %307 = vector.broadcast %cst_110 : f32 to vector<8x384xf32>
    %308 = arith.addf %307, %306 : vector<8x384xf32>
    %309 = arith.divf %307, %308 : vector<8x384xf32>
    %310 = vector.extract_strided_slice %309 {offsets = [0, 0], sizes = [8, 128], strides = [1, 1]} : vector<8x384xf32> to vector<8x128xf32>
    %311 = vector.extract_strided_slice %309 {offsets = [0, 128], sizes = [8, 128], strides = [1, 1]} : vector<8x384xf32> to vector<8x128xf32>
    %312 = vector.extract_strided_slice %309 {offsets = [0, 256], sizes = [8, 128], strides = [1, 1]} : vector<8x384xf32> to vector<8x128xf32>
    %313 = vector.extract_strided_slice %303 {offsets = [0, 384], sizes = [8, 128], strides = [1, 1]} : vector<8x512xf32> to vector<8x128xf32>
    %314 = math.tanh %313 : vector<8x128xf32>
    %315 = arith.mulf %311, %294 : vector<8x128xf32>
    %316 = arith.mulf %310, %314 : vector<8x128xf32>
    %317 = arith.addf %315, %316 : vector<8x128xf32>
    %318 = math.tanh %317 : vector<8x128xf32>
    %319 = arith.mulf %312, %318 : vector<8x128xf32>
    %c6_i32_111 = arith.constant 6 : i32
    %320 = arith.truncf %319 : vector<8x128xf32> to vector<8x128xbf16>
    %c0_112 = arith.constant 0 : index
    %c0_113 = arith.constant 0 : index
    %321 = vector.load %arg7[%c0_112, %c0_113] : memref<128x128xbf16, #tpu.memory_space<vmem>>, vector<128x128xbf16>
    %cst_114 = arith.constant dense<0.000000e+00> : vector<8x128xf32>
    %322 = tpu.matmul %320, %321, %cst_114 {dimension_numbers = #tpu.dot_dimension_numbers<[1], [0], [0], [1], [0, 0, 1, 1], [], []>} : vector<8x128xbf16>, vector<128x128xbf16>, vector<8x128xf32> -> vector<8x128xf32>
    %c0_115 = arith.constant 0 : index
    %c0_116 = arith.constant 0 : index
    %323 = vector.load %arg8[%c0_115, %c0_116] : memref<1x128xf32, #tpu.memory_space<vmem>>, vector<1x128xf32>
    %324 = vector.broadcast %323 : vector<1x128xf32> to vector<8x128xf32>
    %325 = arith.addf %322, %324 : vector<8x128xf32>
    %c0_117 = arith.constant 0 : index
    %c0_118 = arith.constant 0 : index
    %326 = vector.load %arg9[%c0_117, %c0_118] : memref<8x128xf32, #tpu.memory_space<vmem>>, vector<8x128xf32>
    tpu.vector_store %arg9[%c0_117, %c0_118], %325 {strides = array<i32>} : memref<8x128xf32, #tpu.memory_space<vmem>>, vector<8x128xf32>,
    return
  }
}

</mosaic_0001>

<llo_original>
// kernel: tpu_custom_call.1
$region0: #{tpu_custom_call.1}
  #allocation0 [shape = 'u32[]', space=smem, size = 0x4, offset = 0x4, fixed_abs, tag = 'smem constant byte address 0x4 - core index']
  #allocation1 [shape = 'u32[144,128]{1,0:T(1,128)}', space=vmem, size = 0x12000, scoped, tag = 'internal scratch']
  #allocation2 [shape = 'f32[6,8,128]{2,1,0:T(8,128)}', space=vmem, size = 0x6000, scoped, tag = 'scratch operand']
  #allocation3 [shape = 'f32[6,8,512]{2,1,0:T(8,128)}', space=vmem, size = 0x18000, scoped, tag = 'scratch operand']
  %s0 = inlined_call_operand.vmem [shape: bf16[48,16], index: 0, kind: input, shape index: {}]
  %s1 = inlined_call_operand.vmem [shape: bf16[16,512], index: 1, kind: input, shape index: {}]
  %s2 = inlined_call_operand.hbm [shape: bf16[128,512], index: 2, kind: input, shape index: {}]
  %s3 = inlined_call_operand.vmem [shape: f32[1,512], index: 3, kind: input, shape index: {}]
  %s4 = inlined_call_operand.hbm [shape: bf16[128,512], index: 4, kind: input, shape index: {}]
  %s5 = inlined_call_operand.hbm [shape: bf16[128,512], index: 5, kind: input, shape index: {}]
  %s6 = inlined_call_operand.vmem [shape: f32[1,512], index: 6, kind: input, shape index: {}]
  %s7 = inlined_call_operand.hbm [shape: bf16[128,128], index: 7, kind: input, shape index: {}]
  %s8 = inlined_call_operand.vmem [shape: f32[1,128], index: 8, kind: input, shape index: {}]
  %s9 = inlined_call_operand.hbm [shape: f32[8,128], index: 9, kind: output, shape index: {}]
  %s10 = sld [smem:[#allocation0]]
  $region62: #{tpu_custom_call.1} parent=0
    _
  %s12 = ssub.s32 1, %s10
  %s13 = scalar_select 0, %s12, %s10
  $region1: #{tpu_custom_call.1} parent=0
    #allocation4 [shape = 'u8[131072]{0}', space=vmem, size = 0x20000, scoped, tag = 'input window, operand 2, single buffered']
    #allocation5 [shape = 's32[1]{0}', space=sflag, size = 0x4, scoped, tag = 'scoped memory for tpu_custom_call.1']
    #allocation6 [shape = 's32[1]{0}', space=sflag, size = 0x4, scoped, tag = 'scoped memory for tpu_custom_call.1']
    #allocation7 [shape = 'u8[131072]{0}', space=vmem, size = 0x20000, scoped, tag = 'input window, operand 4, single buffered']
    #allocation8 [shape = 's32[1]{0}', space=sflag, size = 0x4, scoped, tag = 'scoped memory for tpu_custom_call.1']
    #allocation9 [shape = 'u8[131072]{0}', space=vmem, size = 0x20000, scoped, tag = 'input window, operand 5, single buffered']
    #allocation10 [shape = 'u8[32768]{0}', space=vmem, size = 0x8000, scoped, tag = 'input window, operand 7, single buffered']
    #allocation11 [shape = 's32[1]{0}', space=sflag, size = 0x4, scoped, tag = 'scoped memory for tpu_custom_call.1']
    #allocation12 [shape = 'u8[4096]{0}', space=vmem, size = 0x1000, scoped, tag = 'output window, operand 0, single buffered']
    %14 = vsyncpa [#allocation5], 0
    %15 = vsyncpa [#allocation8], 0
    %16 = vsyncpa [#allocation11], 0
    %17 = vsyncpa [#allocation6], 0
    // Predicated region
    $region2: #{tpu_custom_call.1} parent=1 // pred_check
      _
    $region3: #{tpu_custom_call.1} parent=1 // pred_check_branch
      %19 = sbr.rel (0) target = $region5
    $region4: #{tpu_custom_call.1} parent=1 // pred_region
      _
    $region5: #{tpu_custom_call.1} parent=1 // pred_fallthru
      _
    // Predicated region
    $region6: #{tpu_custom_call.1} parent=1 // pred_check
      _
    $region7: #{tpu_custom_call.1} parent=1 // pred_check_branch
      %21 = sbr.rel (0) target = $region9
    $region8: #{tpu_custom_call.1} parent=1 // pred_region
      _
    $region9: #{tpu_custom_call.1} parent=1 // pred_fallthru
      _
    // Predicated region
    $region10: #{tpu_custom_call.1} parent=1 // pred_check
      _
    $region11: #{tpu_custom_call.1} parent=1 // pred_check_branch
      %23 = sbr.rel (0) target = $region13
    $region12: #{tpu_custom_call.1} parent=1 // pred_region
      %s25 = ssub.s32 4096, 4096
      %26 = vsyncadd [#allocation5], %s25
      %s27 = sshll.u32 [#allocation4], 4
      %s28 = int_to_ptr.vmem [resolvable:$true] %s27
      %33 = dma.hbm_to_vmem [thread:$0]  %s2, 4096, %s28, [#allocation5], 256, 256, 16
    $region13: #{tpu_custom_call.1} parent=1 // pred_fallthru
      _
    // Predicated region
    $region14: #{tpu_custom_call.1} parent=1 // pred_check
      _
    $region15: #{tpu_custom_call.1} parent=1 // pred_check_branch
      %35 = sbr.rel (0) target = $region17
    $region16: #{tpu_custom_call.1} parent=1 // pred_region
      _
    $region17: #{tpu_custom_call.1} parent=1 // pred_fallthru
      _
    // Predicated region
    $region18: #{tpu_custom_call.1} parent=1 // pred_check
      _
    $region19: #{tpu_custom_call.1} parent=1 // pred_check_branch
      %37 = sbr.rel (0) target = $region21
    $region20: #{tpu_custom_call.1} parent=1 // pred_region
      %s39 = ssub.s32 4096, 4096
      %40 = vsyncadd [#allocation8], %s39
      %s41 = sshll.u32 [#allocation7], 4
      %s42 = int_to_ptr.vmem [resolvable:$true] %s41
      %47 = dma.hbm_to_vmem [thread:$0]  %s4, 4096, %s42, [#allocation8], 256, 256, 16
    $region21: #{tpu_custom_call.1} parent=1 // pred_fallthru
      _
    // Predicated region
    $region22: #{tpu_custom_call.1} parent=1 // pred_check
      _
    $region23: #{tpu_custom_call.1} parent=1 // pred_check_branch
      %49 = sbr.rel (0) target = $region25
    $region24: #{tpu_custom_call.1} parent=1 // pred_region
      %s51 = ssub.s32 4096, 4096
      %52 = vsyncadd [#allocation8], %s51
      %s53 = sshll.u32 [#allocation9], 4
      %s54 = int_to_ptr.vmem [resolvable:$true] %s53
      %59 = dma.hbm_to_vmem [thread:$0]  %s5, 4096, %s54, [#allocation8], 256, 256, 16
    $region25: #{tpu_custom_call.1} parent=1 // pred_fallthru
      _
    // Predicated region
    $region26: #{tpu_custom_call.1} parent=1 // pred_check
      _
    $region27: #{tpu_custom_call.1} parent=1 // pred_check_branch
      %61 = sbr.rel (0) target = $region29
    $region28: #{tpu_custom_call.1} parent=1 // pred_region
      _
    $region29: #{tpu_custom_call.1} parent=1 // pred_fallthru
      _
    // Predicated region
    $region30: #{tpu_custom_call.1} parent=1 // pred_check
      _
    $region31: #{tpu_custom_call.1} parent=1 // pred_check_branch
      %63 = sbr.rel (0) target = $region33
    $region32: #{tpu_custom_call.1} parent=1 // pred_region
      %s65 = ssub.s32 1024, 1024
      %66 = vsyncadd [#allocation11], %s65
      %s67 = sshll.u32 [#allocation10], 4
      %s68 = int_to_ptr.vmem [resolvable:$true] %s67
      %73 = dma.hbm_to_vmem [thread:$0]  %s7, 1024, %s68, [#allocation11], 64, 64, 4
    $region33: #{tpu_custom_call.1} parent=1 // pred_fallthru
      _
    // Predicated region
    $region34: #{tpu_custom_call.1} parent=1 // pred_check
      _
    $region35: #{tpu_custom_call.1} parent=1 // pred_check_branch
      %75 = sbr.rel (0) target = $region37
    $region36: #{tpu_custom_call.1} parent=1 // pred_region
      _
    $region37: #{tpu_custom_call.1} parent=1 // pred_fallthru
      _
    // Predicated region
    $region38: #{tpu_custom_call.1} parent=1 // pred_check
      _
    $region39: #{tpu_custom_call.1} parent=1 // pred_check_branch
      %77 = sbr.rel (0) target = $region41
    $region40: #{tpu_custom_call.1} parent=1 // pred_region
      %78 = dma.done [#allocation5], 4096
    $region41: #{tpu_custom_call.1} parent=1 // pred_fallthru
      _
    // Predicated region
    $region42: #{tpu_custom_call.1} parent=1 // pred_check
      _
    $region43: #{tpu_custom_call.1} parent=1 // pred_check_branch
      %80 = sbr.rel (0) target = $region45
    $region44: #{tpu_custom_call.1} parent=1 // pred_region
      %81 = dma.done [#allocation8], 4096
    $region45: #{tpu_custom_call.1} parent=1 // pred_fallthru
      _
    // Predicated region
    $region46: #{tpu_custom_call.1} parent=1 // pred_check
      _
    $region47: #{tpu_custom_call.1} parent=1 // pred_check_branch
      %83 = sbr.rel (0) target = $region49
    $region48: #{tpu_custom_call.1} parent=1 // pred_region
      %84 = dma.done [#allocation8], 4096
    $region49: #{tpu_custom_call.1} parent=1 // pred_fallthru
      _
    // Predicated region
    $region50: #{tpu_custom_call.1} parent=1 // pred_check
      _
    $region51: #{tpu_custom_call.1} parent=1 // pred_check_branch
      %86 = sbr.rel (0) target = $region53
    $region52: #{tpu_custom_call.1} parent=1 // pred_region
      %87 = dma.done [#allocation11], 1024
    $region53: #{tpu_custom_call.1} parent=1 // pred_fallthru
      _
    %v89 = vld [vmem:[%s0] sm:$0xf]
    %v90 = vld [vmem:[%s0 + $0x4] sm:$0xf]
    %v91 = vld [vmem:[%s0 + $0x8] sm:$0xf]
    %v92 = vld [vmem:[%s0 + $0xc] sm:$0xf]
    %v93 = vld [vmem:[%s0 + $0x10] sm:$0xf]
    %v94 = vld [vmem:[%s0 + $0x14] sm:$0xf]
    %v95 = vld [vmem:[%s1] sm:$0xff]
    %v96 = vld [vmem:[%s1 + $0x8] sm:$0xff]
    %v97 = vld [vmem:[%s1 + $0x10] sm:$0xff]
    %v98 = vld [vmem:[%s1 + $0x18] sm:$0xff]
    %v99 = vld [vmem:[%s3] sm:$0xf]
    %v101 = vlaneseq
    %v102 = vshrl.u32 %v101, 7
    %v103 = vsub.s32 0, %v102
    %v104 = vrot.slane %v99, %v103
    %v105 = vlaneseq
    %v106 = vshrl.u32 %v105, 7
    %v107 = vsub.s32 1, %v106
    %v108 = vrot.slane %v99, %v107
    %v109 = vlaneseq
    %v110 = vshrl.u32 %v109, 7
    %v111 = vsub.s32 2, %v110
    %v112 = vrot.slane %v99, %v111
    %v113 = vlaneseq
    %v114 = vshrl.u32 %v113, 7
    %v115 = vsub.s32 3, %v114
    %v116 = vrot.slane %v99, %v115
    %v127 = vunpack.c.l.b16 %v89
    %v128 = vunpack.c.l.b16 %v90
    %v129 = vunpack.c.l.b16 %v91
    %v130 = vunpack.c.l.b16 %v92
    %v131 = vunpack.c.l.b16 %v93
    %v132 = vunpack.c.l.b16 %v94
    %v133 = vpack.c.b16 %v128, %v127
    %v134 = vpack.c.b16 %v130, %v129
    %v135 = vpack.c.b16 %v132, %v131
    %v140 = vunpack.c.l.b16 %v95
    %v141 = vunpack.c.h.b16 %v95
    %v142 = vunpack.c.l.b16 %v96
    %v143 = vunpack.c.h.b16 %v96
    %v144 = vunpack.c.l.b16 %v97
    %v145 = vunpack.c.h.b16 %v97
    %v146 = vunpack.c.l.b16 %v98
    %v147 = vunpack.c.h.b16 %v98
    %v148 = vpack.c.b16 %v144, %v140
    %v149 = vpack.c.b16 %v145, %v141
    %v150 = vpack.c.b16 %v146, %v142
    %v151 = vpack.c.b16 %v147, %v143
    %vm156 = vcmask 130048
    %v158 = vsel %vm156, %v133, 0
    %v161 = vsel %vm156, %v134, 0
    %v164 = vsel %vm156, %v135, 0
    %166 = vmatprep.subr.bf16.mxu0 %v149
    %167 = vmatpush1.bf16.msra.mxu0 %v148
    %168 = vmatprep.subr.bf16.mxu0 0
    %169 = vmatpush1.bf16.msra.mxu0 0
    %170 = vmatprep.subr.bf16.mxu0 0
    %171 = vmatpush1.bf16.msra.mxu0 0
    %172 = vmatprep.subr.bf16.mxu0 0
    %173 = vmatpush1.bf16.msra.mxu0 0
    %174 = vmatprep.subr.bf16.mxu0 0
    %175 = vmatpush1.bf16.msra.mxu0 0
    %176 = vmatprep.subr.bf16.mxu0 0
    %177 = vmatpush1.bf16.msra.mxu0 0
    %178 = vmatprep.subr.bf16.mxu0 0
    %179 = vmatpush1.bf16.msra.mxu0 0
    %180 = vmatprep.subr.bf16.mxu0 0
    %181 = vmatpush1.bf16.msra.mxu0 0
    %182 = vmatprep.subr.bf16.mxu0 0
    %183 = vmatpush1.bf16.msra.mxu0 0
    %184 = vmatprep.subr.bf16.mxu0 0
    %185 = vmatpush1.bf16.msra.mxu0 0
    %186 = vmatprep.subr.bf16.mxu0 0
    %187 = vmatpush1.bf16.msra.mxu0 0
    %188 = vmatprep.subr.bf16.mxu0 0
    %189 = vmatpush1.bf16.msra.mxu0 0
    %190 = vmatprep.subr.bf16.mxu0 0
    %191 = vmatpush1.bf16.msra.mxu0 0
    %192 = vmatprep.subr.bf16.mxu0 0
    %193 = vmatpush1.bf16.msra.mxu0 0
    %194 = vmatprep.subr.bf16.mxu0 0
    %195 = vmatpush1.bf16.msra.mxu0 0
    %196 = vmatprep.subr.bf16.mxu0 0
    %197 = vmatpush1.bf16.msra.mxu0 0
    %198 = vmatprep.mubr.bf16.mxu0 0
    %199 = vmatmul.mubr.bf16.gmra.mrb[0].mxu0 %v158
    %v200 = vpop.f32.mrb[0].mxu0
    %v201 = vadd.f32 %v104, %v200
    %v202 = vpop.f32.mrb[0].mxu0
    %v203 = vadd.f32 %v108, %v202
    %v204 = vpop.f32.mrb[0].mxu0
    %v205 = vadd.f32 %v104, %v204
    %v206 = vpop.f32.mrb[0].mxu0
    %v207 = vadd.f32 %v108, %v206
    %208 = vmatprep.mubr.bf16.mxu0 0
    %209 = vmatmul.mubr.bf16.gmra.mrb[0].mxu0 %v161
    %v210 = vpop.f32.mrb[0].mxu0
    %v211 = vadd.f32 %v104, %v210
    %v212 = vpop.f32.mrb[0].mxu0
    %v213 = vadd.f32 %v108, %v212
    %v214 = vpop.f32.mrb[0].mxu0
    %v215 = vadd.f32 %v104, %v214
    %v216 = vpop.f32.mrb[0].mxu0
    %v217 = vadd.f32 %v108, %v216
    %218 = vmatprep.mubr.bf16.mxu0 0
    %219 = vmatmul.mubr.bf16.gmra.mrb[0].mxu0 %v164
    %v220 = vpop.f32.mrb[0].mxu0
    %v221 = vadd.f32 %v104, %v220
    %v222 = vpop.f32.mrb[0].mxu0
    %v223 = vadd.f32 %v108, %v222
    %v224 = vpop.f32.mrb[0].mxu0
    %v225 = vadd.f32 %v104, %v224
    %v226 = vpop.f32.mrb[0].mxu0
    %v227 = vadd.f32 %v108, %v226
    %228 = vdwg.mxu0
    %229 = vmatprep.subr.bf16.mxu0 %v151
    %230 = vmatpush1.bf16.msra.mxu0 %v150
    %231 = vmatprep.subr.bf16.mxu0 0
    %232 = vmatpush1.bf16.msra.mxu0 0
    %233 = vmatprep.subr.bf16.mxu0 0
    %234 = vmatpush1.bf16.msra.mxu0 0
    %235 = vmatprep.subr.bf16.mxu0 0
    %236 = vmatpush1.bf16.msra.mxu0 0
    %237 = vmatprep.subr.bf16.mxu0 0
    %238 = vmatpush1.bf16.msra.mxu0 0
    %239 = vmatprep.subr.bf16.mxu0 0
    %240 = vmatpush1.bf16.msra.mxu0 0
    %241 = vmatprep.subr.bf16.mxu0 0
    %242 = vmatpush1.bf16.msra.mxu0 0
    %243 = vmatprep.subr.bf16.mxu0 0
    %244 = vmatpush1.bf16.msra.mxu0 0
    %245 = vmatprep.subr.bf16.mxu0 0
    %246 = vmatpush1.bf16.msra.mxu0 0
    %247 = vmatprep.subr.bf16.mxu0 0
    %248 = vmatpush1.bf16.msra.mxu0 0
    %249 = vmatprep.subr.bf16.mxu0 0
    %250 = vmatpush1.bf16.msra.mxu0 0
    %251 = vmatprep.subr.bf16.mxu0 0
    %252 = vmatpush1.bf16.msra.mxu0 0
    %253 = vmatprep.subr.bf16.mxu0 0
    %254 = vmatpush1.bf16.msra.mxu0 0
    %255 = vmatprep.subr.bf16.mxu0 0
    %256 = vmatpush1.bf16.msra.mxu0 0
    %257 = vmatprep.subr.bf16.mxu0 0
    %258 = vmatpush1.bf16.msra.mxu0 0
    %259 = vmatprep.subr.bf16.mxu0 0
    %260 = vmatpush1.bf16.msra.mxu0 0
    %261 = vmatprep.mubr.bf16.mxu0 0
    %262 = vmatmul.mubr.bf16.gmra.mrb[0].mxu0 %v158
    %v263 = vpop.f32.mrb[0].mxu0
    %v264 = vadd.f32 %v112, %v263
    %v265 = vpop.f32.mrb[0].mxu0
    %v266 = vadd.f32 %v116, %v265
    %v267 = vpop.f32.mrb[0].mxu0
    %v268 = vadd.f32 %v112, %v267
    %v269 = vpop.f32.mrb[0].mxu0
    %v270 = vadd.f32 %v116, %v269
    %271 = vmatprep.mubr.bf16.mxu0 0
    %272 = vmatmul.mubr.bf16.gmra.mrb[0].mxu0 %v161
    %v273 = vpop.f32.mrb[0].mxu0
    %v274 = vadd.f32 %v112, %v273
    %v275 = vpop.f32.mrb[0].mxu0
    %v276 = vadd.f32 %v116, %v275
    %v277 = vpop.f32.mrb[0].mxu0
    %v278 = vadd.f32 %v112, %v277
    %v279 = vpop.f32.mrb[0].mxu0
    %v280 = vadd.f32 %v116, %v279
    %281 = vmatprep.mubr.bf16.mxu0 0
    %282 = vmatmul.mubr.bf16.gmra.mrb[0].mxu0 %v164
    %v283 = vpop.f32.mrb[0].mxu0
    %v284 = vadd.f32 %v112, %v283
    %v285 = vpop.f32.mrb[0].mxu0
    %v286 = vadd.f32 %v116, %v285
    %v287 = vpop.f32.mrb[0].mxu0
    %v288 = vadd.f32 %v112, %v287
    %v289 = vpop.f32.mrb[0].mxu0
    %v290 = vadd.f32 %v116, %v289
    %291 = vdwg.mxu0
    %292 = vst [vmem:[#allocation3] sm:$0xff] %v201
    %293 = vst [vmem:[#allocation3 + $0x8] sm:$0xff] %v203
    %294 = vst [vmem:[#allocation3 + $0x10] sm:$0xff] %v264
    %295 = vst [vmem:[#allocation3 + $0x18] sm:$0xff] %v266
    %296 = vst [vmem:[#allocation3 + $0x20] sm:$0xff] %v205
    %297 = vst [vmem:[#allocation3 + $0x28] sm:$0xff] %v207
    %298 = vst [vmem:[#allocation3 + $0x30] sm:$0xff] %v268
    %299 = vst [vmem:[#allocation3 + $0x38] sm:$0xff] %v270
    %300 = vst [vmem:[#allocation3 + $0x40] sm:$0xff] %v211
    %301 = vst [vmem:[#allocation3 + $0x48] sm:$0xff] %v213
    %302 = vst [vmem:[#allocation3 + $0x50] sm:$0xff] %v274
    %303 = vst [vmem:[#allocation3 + $0x58] sm:$0xff] %v276
    %304 = vst [vmem:[#allocation3 + $0x60] sm:$0xff] %v215
    %305 = vst [vmem:[#allocation3 + $0x68] sm:$0xff] %v217
    %306 = vst [vmem:[#allocation3 + $0x70] sm:$0xff] %v278
    %307 = vst [vmem:[#allocation3 + $0x78] sm:$0xff] %v280
    %308 = vst [vmem:[#allocation3 + $0x80] sm:$0xff] %v221
    %309 = vst [vmem:[#allocation3 + $0x88] sm:$0xff] %v223
    %310 = vst [vmem:[#allocation3 + $0x90] sm:$0xff] %v284
    %311 = vst [vmem:[#allocation3 + $0x98] sm:$0xff] %v286
    %312 = vst [vmem:[#allocation3 + $0xa0] sm:$0xff] %v225
    %313 = vst [vmem:[#allocation3 + $0xa8] sm:$0xff] %v227
    %314 = vst [vmem:[#allocation3 + $0xb0] sm:$0xff] %v288
    %315 = vst [vmem:[#allocation3 + $0xb8] sm:$0xff] %v290
    %v316 = vld [vmem:[#allocation3] sm:$0xff]
    %v317 = vld [vmem:[#allocation3 + $0x8] sm:$0xff]
    %v318 = vld [vmem:[#allocation3 + $0x10] sm:$0xff]
    %v319 = vld [vmem:[#allocation3 + $0x18] sm:$0xff]
    %v320 = vld [vmem:[#allocation4] sm:$0xff]
    %v321 = vld [vmem:[#allocation4 + $0x8] sm:$0xff]
    %v322 = vld [vmem:[#allocation4 + $0x10] sm:$0xff]
    %v323 = vld [vmem:[#allocation4 + $0x18] sm:$0xff]
    %v324 = vld [vmem:[#allocation4 + $0x20] sm:$0xff]
    %v325 = vld [vmem:[#allocation4 + $0x28] sm:$0xff]
    %v326 = vld [vmem:[#allocation4 + $0x30] sm:$0xff]
    %v327 = vld [vmem:[#allocation4 + $0x38] sm:$0xff]
    %v328 = vld [vmem:[#allocation4 + $0x40] sm:$0xff]
    %v329 = vld [vmem:[#allocation4 + $0x48] sm:$0xff]
    %v330 = vld [vmem:[#allocation4 + $0x50] sm:$0xff]
    %v331 = vld [vmem:[#allocation4 + $0x58] sm:$0xff]
    %v332 = vld [vmem:[#allocation4 + $0x60] sm:$0xff]
    %v333 = vld [vmem:[#allocation4 + $0x68] sm:$0xff]
    %v334 = vld [vmem:[#allocation4 + $0x70] sm:$0xff]
    %v335 = vld [vmem:[#allocation4 + $0x78] sm:$0xff]
    %v336 = vld [vmem:[#allocation4 + $0x80] sm:$0xff]
    %v337 = vld [vmem:[#allocation4 + $0x88] sm:$0xff]
    %v338 = vld [vmem:[#allocation4 + $0x90] sm:$0xff]
    %v339 = vld [vmem:[#allocation4 + $0x98] sm:$0xff]
    %v340 = vld [vmem:[#allocation4 + $0xa0] sm:$0xff]
    %v341 = vld [vmem:[#allocation4 + $0xa8] sm:$0xff]
    %v342 = vld [vmem:[#allocation4 + $0xb0] sm:$0xff]
    %v343 = vld [vmem:[#allocation4 + $0xb8] sm:$0xff]
    %v344 = vld [vmem:[#allocation4 + $0xc0] sm:$0xff]
    %v345 = vld [vmem:[#allocation4 + $0xc8] sm:$0xff]
    %v346 = vld [vmem:[#allocation4 + $0xd0] sm:$0xff]
    %v347 = vld [vmem:[#allocation4 + $0xd8] sm:$0xff]
    %v348 = vld [vmem:[#allocation4 + $0xe0] sm:$0xff]
    %v349 = vld [vmem:[#allocation4 + $0xe8] sm:$0xff]
    %v350 = vld [vmem:[#allocation4 + $0xf0] sm:$0xff]
    %v351 = vld [vmem:[#allocation4 + $0xf8] sm:$0xff]
    %v384 = vunpack.c.l.b16 %v320
    %v385 = vunpack.c.h.b16 %v320
    %v386 = vunpack.c.l.b16 %v321
    %v387 = vunpack.c.h.b16 %v321
    %v388 = vunpack.c.l.b16 %v322
    %v389 = vunpack.c.h.b16 %v322
    %v390 = vunpack.c.l.b16 %v323
    %v391 = vunpack.c.h.b16 %v323
    %v392 = vunpack.c.l.b16 %v324
    %v393 = vunpack.c.h.b16 %v324
    %v394 = vunpack.c.l.b16 %v325
    %v395 = vunpack.c.h.b16 %v325
    %v396 = vunpack.c.l.b16 %v326
    %v397 = vunpack.c.h.b16 %v326
    %v398 = vunpack.c.l.b16 %v327
    %v399 = vunpack.c.h.b16 %v327
    %v400 = vunpack.c.l.b16 %v328
    %v401 = vunpack.c.h.b16 %v328
    %v402 = vunpack.c.l.b16 %v329
    %v403 = vunpack.c.h.b16 %v329
    %v404 = vunpack.c.l.b16 %v330
    %v405 = vunpack.c.h.b16 %v330
    %v406 = vunpack.c.l.b16 %v331
    %v407 = vunpack.c.h.b16 %v331
    %v408 = vunpack.c.l.b16 %v332
    %v409 = vunpack.c.h.b16 %v332
    %v410 = vunpack.c.l.b16 %v333
    %v411 = vunpack.c.h.b16 %v333
    %v412 = vunpack.c.l.b16 %v334
    %v413 = vunpack.c.h.b16 %v334
    %v414 = vunpack.c.l.b16 %v335
    %v415 = vunpack.c.h.b16 %v335
    %v416 = vunpack.c.l.b16 %v336
    %v417 = vunpack.c.h.b16 %v336
    %v418 = vunpack.c.l.b16 %v337
    %v419 = vunpack.c.h.b16 %v337
    %v420 = vunpack.c.l.b16 %v338
    %v421 = vunpack.c.h.b16 %v338
    %v422 = vunpack.c.l.b16 %v339
    %v423 = vunpack.c.h.b16 %v339
    %v424 = vunpack.c.l.b16 %v340
    %v425 = vunpack.c.h.b16 %v340
    %v426 = vunpack.c.l.b16 %v341
    %v427 = vunpack.c.h.b16 %v341
    %v428 = vunpack.c.l.b16 %v342
    %v429 = vunpack.c.h.b16 %v342
    %v430 = vunpack.c.l.b16 %v343
    %v431 = vunpack.c.h.b16 %v343
    %v432 = vunpack.c.l.b16 %v344
    %v433 = vunpack.c.h.b16 %v344
    %v434 = vunpack.c.l.b16 %v345
    %v435 = vunpack.c.h.b16 %v345
    %v436 = vunpack.c.l.b16 %v346
    %v437 = vunpack.c.h.b16 %v346
    %v438 = vunpack.c.l.b16 %v347
    %v439 = vunpack.c.h.b16 %v347
    %v440 = vunpack.c.l.b16 %v348
    %v441 = vunpack.c.h.b16 %v348
    %v442 = vunpack.c.l.b16 %v349
    %v443 = vunpack.c.h.b16 %v349
    %v444 = vunpack.c.l.b16 %v350
    %v445 = vunpack.c.h.b16 %v350
    %v446 = vunpack.c.l.b16 %v351
    %v447 = vunpack.c.h.b16 %v351
    %v448 = vpack.c.b16 %v388, %v384
    %v449 = vpack.c.b16 %v389, %v385
    %v450 = vpack.c.b16 %v390, %v386
    %v451 = vpack.c.b16 %v391, %v387
    %v452 = vpack.c.b16 %v396, %v392
    %v453 = vpack.c.b16 %v397, %v393
    %v454 = vpack.c.b16 %v398, %v394
    %v455 = vpack.c.b16 %v399, %v395
    %v456 = vpack.c.b16 %v404, %v400
    %v457 = vpack.c.b16 %v405, %v401
    %v458 = vpack.c.b16 %v406, %v402
    %v459 = vpack.c.b16 %v407, %v403
    %v460 = vpack.c.b16 %v412, %v408
    %v461 = vpack.c.b16 %v413, %v409
    %v462 = vpack.c.b16 %v414, %v410
    %v463 = vpack.c.b16 %v415, %v411
    %v464 = vpack.c.b16 %v420, %v416
    %v465 = vpack.c.b16 %v421, %v417
    %v466 = vpack.c.b16 %v422, %v418
    %v467 = vpack.c.b16 %v423, %v419
    %v468 = vpack.c.b16 %v428, %v424
    %v469 = vpack.c.b16 %v429, %v425
    %v470 = vpack.c.b16 %v430, %v426
    %v471 = vpack.c.b16 %v431, %v427
    %v472 = vpack.c.b16 %v436, %v432
    %v473 = vpack.c.b16 %v437, %v433
    %v474 = vpack.c.b16 %v438, %v434
    %v475 = vpack.c.b16 %v439, %v435
    %v476 = vpack.c.b16 %v444, %v440
    %v477 = vpack.c.b16 %v445, %v441
    %v478 = vpack.c.b16 %v446, %v442
    %v479 = vpack.c.b16 %v447, %v443
    %512 = vmatprep.subr.bf16.mxu0 %v449
    %513 = vmatpush1.bf16.msra.mxu0 %v448
    %514 = vmatprep.subr.bf16.mxu0 %v453
    %515 = vmatpush1.bf16.msra.mxu0 %v452
    %516 = vmatprep.subr.bf16.mxu0 %v457
    %517 = vmatpush1.bf16.msra.mxu0 %v456
    %518 = vmatprep.subr.bf16.mxu0 %v461
    %519 = vmatpush1.bf16.msra.mxu0 %v460
    %520 = vmatprep.subr.bf16.mxu0 %v465
    %521 = vmatpush1.bf16.msra.mxu0 %v464
    %522 = vmatprep.subr.bf16.mxu0 %v469
    %523 = vmatpush1.bf16.msra.mxu0 %v468
    %524 = vmatprep.subr.bf16.mxu0 %v473
    %525 = vmatpush1.bf16.msra.mxu0 %v472
    %526 = vmatprep.subr.bf16.mxu0 %v477
    %527 = vmatpush1.bf16.msra.mxu0 %v476
    %528 = vmatprep.subr.bf16.mxu0 0
    %529 = vmatpush1.bf16.msra.mxu0 0
    %530 = vmatprep.subr.bf16.mxu0 0
    %531 = vmatpush1.bf16.msra.mxu0 0
    %532 = vmatprep.subr.bf16.mxu0 0
    %533 = vmatpush1.bf16.msra.mxu0 0
    %534 = vmatprep.subr.bf16.mxu0 0
    %535 = vmatpush1.bf16.msra.mxu0 0
    %536 = vmatprep.subr.bf16.mxu0 0
    %537 = vmatpush1.bf16.msra.mxu0 0
    %538 = vmatprep.subr.bf16.mxu0 0
    %539 = vmatpush1.bf16.msra.mxu0 0
    %540 = vmatprep.subr.bf16.mxu0 0
    %541 = vmatpush1.bf16.msra.mxu0 0
    %542 = vmatprep.subr.bf16.mxu0 0
    %543 = vmatpush1.bf16.msra.mxu0 0
    %544 = vmatprep.mubr.bf16.mxu0 0
    %545 = vmatmul.mubr.bf16.gmra.mrb[0].mxu0 0
    %v546 = vpop.f32.mrb[0].mxu0
    %v547 = vadd.f32 0.0, %v546
    %v548 = vpop.f32.mrb[0].mxu0
    %v549 = vadd.f32 0.0, %v548
    %v550 = vpop.f32.mrb[0].mxu0
    %v551 = vpop.f32.mrb[0].mxu0
    %552 = vdwg.mxu0
    %553 = vmatprep.subr.bf16.mxu0 %v451
    %554 = vmatpush1.bf16.msra.mxu0 %v450
    %555 = vmatprep.subr.bf16.mxu0 %v455
    %556 = vmatpush1.bf16.msra.mxu0 %v454
    %557 = vmatprep.subr.bf16.mxu0 %v459
    %558 = vmatpush1.bf16.msra.mxu0 %v458
    %559 = vmatprep.subr.bf16.mxu0 %v463
    %560 = vmatpush1.bf16.msra.mxu0 %v462
    %561 = vmatprep.subr.bf16.mxu0 %v467
    %562 = vmatpush1.bf16.msra.mxu0 %v466
    %563 = vmatprep.subr.bf16.mxu0 %v471
    %564 = vmatpush1.bf16.msra.mxu0 %v470
    %565 = vmatprep.subr.bf16.mxu0 %v475
    %566 = vmatpush1.bf16.msra.mxu0 %v474
    %567 = vmatprep.subr.bf16.mxu0 %v479
    %568 = vmatpush1.bf16.msra.mxu0 %v478
    %569 = vmatprep.subr.bf16.mxu0 0
    %570 = vmatpush1.bf16.msra.mxu0 0
    %571 = vmatprep.subr.bf16.mxu0 0
    %572 = vmatpush1.bf16.msra.mxu0 0
    %573 = vmatprep.subr.bf16.mxu0 0
    %574 = vmatpush1.bf16.msra.mxu0 0
    %575 = vmatprep.subr.bf16.mxu0 0
    %576 = vmatpush1.bf16.msra.mxu0 0
    %577 = vmatprep.subr.bf16.mxu0 0
    %578 = vmatpush1.bf16.msra.mxu0 0
    %579 = vmatprep.subr.bf16.mxu0 0
    %580 = vmatpush1.bf16.msra.mxu0 0
    %581 = vmatprep.subr.bf16.mxu0 0
    %582 = vmatpush1.bf16.msra.mxu0 0
    %583 = vmatprep.subr.bf16.mxu0 0
    %584 = vmatpush1.bf16.msra.mxu0 0
    %585 = vmatprep.mubr.bf16.mxu0 0
    %586 = vmatmul.mubr.bf16.gmra.mrb[0].mxu0 0
    %v587 = vpop.f32.mrb[0].mxu0
    %v588 = vadd.f32 0.0, %v587
    %v589 = vpop.f32.mrb[0].mxu0
    %v590 = vadd.f32 0.0, %v589
    %v591 = vpop.f32.mrb[0].mxu0
    %v592 = vpop.f32.mrb[0].mxu0
    %593 = vdwg.mxu0
    %v594 = vadd.f32 %v316, %v547
    %v595 = vadd.f32 %v317, %v549
    %v596 = vadd.f32 %v318, %v588
    %v597 = vadd.f32 %v319, %v590
    %v598 = vxor.u32 %v594, 2147483648
    %v599 = vxor.u32 %v595, 2147483648
    %v600 = vxor.u32 %v596, 2147483648
    %v601 = vmul.f32 %v598, 1.442695
    %v602 = vpow.pop %v601
    %v603 = vmul.f32 %v599, 1.442695
    %v604 = vpow.pop %v603
    %v605 = vmul.f32 %v600, 1.442695
    %v606 = vpow.pop %v605
    %v607 = vadd.f32 %v602, 1.0
    %v608 = vadd.f32 %v604, 1.0
    %v609 = vadd.f32 %v606, 1.0
    %v610 = vrcp.pop %v607
    %v611 = vmul.f32 1.0, %v610
    %v612 = vrcp.pop %v608
    %v613 = vmul.f32 1.0, %v612
    %v614 = vrcp.pop %v609
    %v615 = vmul.f32 1.0, %v614
    %v616 = vtanh.pop %v597
    %v617 = vmul.f32 %v613, 0.0
    %v618 = vmul.f32 %v611, %v616
    %v619 = vadd.f32 %v617, %v618
    %v620 = vtanh.pop %v619
    %v621 = vmul.f32 %v615, %v620
    %622 = vst [vmem:[#allocation2] sm:$0xff] %v621
    %s623 = scalar_lea.vmem [#allocation3], 32
    %v624 = vld [vmem:[%s623] sm:$0xff]
    %v625 = vld [vmem:[%s623 + $0x8] sm:$0xff]
    %v626 = vld [vmem:[%s623 + $0x10] sm:$0xff]
    %v627 = vld [vmem:[%s623 + $0x18] sm:$0xff]
    %v628 = vpack.c.bf16 %v621, %v621
    %v629 = vld [vmem:[#allocation4] sm:$0xff]
    %v630 = vld [vmem:[#allocation4 + $0x8] sm:$0xff]
    %v631 = vld [vmem:[#allocation4 + $0x10] sm:$0xff]
    %v632 = vld [vmem:[#allocation4 + $0x18] sm:$0xff]
    %v633 = vld [vmem:[#allocation4 + $0x20] sm:$0xff]
    %v634 = vld [vmem:[#allocation4 + $0x28] sm:$0xff]
    %v635 = vld [vmem:[#allocation4 + $0x30] sm:$0xff]
    %v636 = vld [vmem:[#allocation4 + $0x38] sm:$0xff]
    %v637 = vld [vmem:[#allocation4 + $0x40] sm:$0xff]
    %v638 = vld [vmem:[#allocation4 + $0x48] sm:$0xff]
    %v639 = vld [vmem:[#allocation4 + $0x50] sm:$0xff]
    %v640 = vld [vmem:[#allocation4 + $0x58] sm:$0xff]
    %v641 = vld [vmem:[#allocation4 + $0x60] sm:$0xff]
    %v642 = vld [vmem:[#allocation4 + $0x68] sm:$0xff]
    %v643 = vld [vmem:[#allocation4 + $0x70] sm:$0xff]
    %v644 = vld [vmem:[#allocation4 + $0x78] sm:$0xff]
    %v645 = vld [vmem:[#allocation4 + $0x80] sm:$0xff]
    %v646 = vld [vmem:[#allocation4 + $0x88] sm:$0xff]
    %v647 = vld [vmem:[#allocation4 + $0x90] sm:$0xff]
    %v648 = vld [vmem:[#allocation4 + $0x98] sm:$0xff]
    %v649 = vld [vmem:[#allocation4 + $0xa0] sm:$0xff]
    %v650 = vld [vmem:[#allocation4 + $0xa8] sm:$0xff]
    %v651 = vld [vmem:[#allocation4 + $0xb0] sm:$0xff]
    %v652 = vld [vmem:[#allocation4 + $0xb8] sm:$0xff]
    %v653 = vld [vmem:[#allocation4 + $0xc0] sm:$0xff]
    %v654 = vld [vmem:[#allocation4 + $0xc8] sm:$0xff]
    %v655 = vld [vmem:[#allocation4 + $0xd0] sm:$0xff]
    %v656 = vld [vmem:[#allocation4 + $0xd8] sm:$0xff]
    %v657 = vld [vmem:[#allocation4 + $0xe0] sm:$0xff]
    %v658 = vld [vmem:[#allocation4 + $0xe8] sm:$0xff]
    %v659 = vld [vmem:[#allocation4 + $0xf0] sm:$0xff]
    %v660 = vld [vmem:[#allocation4 + $0xf8] sm:$0xff]
    %v693 = vunpack.c.l.b16 %v629
    %v694 = vunpack.c.h.b16 %v629
    %v695 = vunpack.c.l.b16 %v630
    %v696 = vunpack.c.h.b16 %v630
    %v697 = vunpack.c.l.b16 %v631
    %v698 = vunpack.c.h.b16 %v631
    %v699 = vunpack.c.l.b16 %v632
    %v700 = vunpack.c.h.b16 %v632
    %v701 = vunpack.c.l.b16 %v633
    %v702 = vunpack.c.h.b16 %v633
    %v703 = vunpack.c.l.b16 %v634
    %v704 = vunpack.c.h.b16 %v634
    %v705 = vunpack.c.l.b16 %v635
    %v706 = vunpack.c.h.b16 %v635
    %v707 = vunpack.c.l.b16 %v636
    %v708 = vunpack.c.h.b16 %v636
    %v709 = vunpack.c.l.b16 %v637
    %v710 = vunpack.c.h.b16 %v637
    %v711 = vunpack.c.l.b16 %v638
    %v712 = vunpack.c.h.b16 %v638
    %v713 = vunpack.c.l.b16 %v639
    %v714 = vunpack.c.h.b16 %v639
    %v715 = vunpack.c.l.b16 %v640
    %v716 = vunpack.c.h.b16 %v640
    %v717 = vunpack.c.l.b16 %v641
    %v718 = vunpack.c.h.b16 %v641
    %v719 = vunpack.c.l.b16 %v642
    %v720 = vunpack.c.h.b16 %v642
    %v721 = vunpack.c.l.b16 %v643
    %v722 = vunpack.c.h.b16 %v643
    %v723 = vunpack.c.l.b16 %v644
    %v724 = vunpack.c.h.b16 %v644
    %v725 = vunpack.c.l.b16 %v645
    %v726 = vunpack.c.h.b16 %v645
    %v727 = vunpack.c.l.b16 %v646
    %v728 = vunpack.c.h.b16 %v646
    %v729 = vunpack.c.l.b16 %v647
    %v730 = vunpack.c.h.b16 %v647
    %v731 = vunpack.c.l.b16 %v648
    %v732 = vunpack.c.h.b16 %v648
    %v733 = vunpack.c.l.b16 %v649
    %v734 = vunpack.c.h.b16 %v649
    %v735 = vunpack.c.l.b16 %v650
    %v736 = vunpack.c.h.b16 %v650
    %v737 = vunpack.c.l.b16 %v651
    %v738 = vunpack.c.h.b16 %v651
    %v739 = vunpack.c.l.b16 %v652
    %v740 = vunpack.c.h.b16 %v652
    %v741 = vunpack.c.l.b16 %v653
    %v742 = vunpack.c.h.b16 %v653
    %v743 = vunpack.c.l.b16 %v654
    %v744 = vunpack.c.h.b16 %v654
    %v745 = vunpack.c.l.b16 %v655
    %v746 = vunpack.c.h.b16 %v655
    %v747 = vunpack.c.l.b16 %v656
    %v748 = vunpack.c.h.b16 %v656
    %v749 = vunpack.c.l.b16 %v657
    %v750 = vunpack.c.h.b16 %v657
    %v751 = vunpack.c.l.b16 %v658
    %v752 = vunpack.c.h.b16 %v658
    %v753 = vunpack.c.l.b16 %v659
    %v754 = vunpack.c.h.b16 %v659
    %v755 = vunpack.c.l.b16 %v660
    %v756 = vunpack.c.h.b16 %v660
    %v757 = vpack.c.b16 %v697, %v693
    %v758 = vpack.c.b16 %v698, %v694
    %v759 = vpack.c.b16 %v699, %v695
    %v760 = vpack.c.b16 %v700, %v696
    %v761 = vpack.c.b16 %v705, %v701
    %v762 = vpack.c.b16 %v706, %v702
    %v763 = vpack.c.b16 %v707, %v703
    %v764 = vpack.c.b16 %v708, %v704
    %v765 = vpack.c.b16 %v713, %v709
    %v766 = vpack.c.b16 %v714, %v710
    %v767 = vpack.c.b16 %v715, %v711
    %v768 = vpack.c.b16 %v716, %v712
    %v769 = vpack.c.b16 %v721, %v717
    %v770 = vpack.c.b16 %v722, %v718
    %v771 = vpack.c.b16 %v723, %v719
    %v772 = vpack.c.b16 %v724, %v720
    %v773 = vpack.c.b16 %v729, %v725
    %v774 = vpack.c.b16 %v730, %v726
    %v775 = vpack.c.b16 %v731, %v727
    %v776 = vpack.c.b16 %v732, %v728
    %v777 = vpack.c.b16 %v737, %v733
    %v778 = vpack.c.b16 %v738, %v734
    %v779 = vpack.c.b16 %v739, %v735
    %v780 = vpack.c.b16 %v740, %v736
    %v781 = vpack.c.b16 %v745, %v741
    %v782 = vpack.c.b16 %v746, %v742
    %v783 = vpack.c.b16 %v747, %v743
    %v784 = vpack.c.b16 %v748, %v744
    %v785 = vpack.c.b16 %v753, %v749
    %v786 = vpack.c.b16 %v754, %v750
    %v787 = vpack.c.b16 %v755, %v751
    %v788 = vpack.c.b16 %v756, %v752
    %821 = vmatprep.subr.bf16.mxu0 %v758
    %822 = vmatpush1.bf16.msra.mxu0 %v757
    %823 = vmatprep.subr.bf16.mxu0 %v762
    %824 = vmatpush1.bf16.msra.mxu0 %v761
    %825 = vmatprep.subr.bf16.mxu0 %v766
    %826 = vmatpush1.bf16.msra.mxu0 %v765
    %827 = vmatprep.subr.bf16.mxu0 %v770
    %828 = vmatpush1.bf16.msra.mxu0 %v769
    %829 = vmatprep.subr.bf16.mxu0 %v774
    %830 = vmatpush1.bf16.msra.mxu0 %v773
    %831 = vmatprep.subr.bf16.mxu0 %v778
    %832 = vmatpush1.bf16.msra.mxu0 %v777
    %833 = vmatprep.subr.bf16.mxu0 %v782
    %834 = vmatpush1.bf16.msra.mxu0 %v781
    %835 = vmatprep.subr.bf16.mxu0 %v786
    %836 = vmatpush1.bf16.msra.mxu0 %v785
    %837 = vmatprep.subr.bf16.mxu0 0
    %838 = vmatpush1.bf16.msra.mxu0 0
    %839 = vmatprep.subr.bf16.mxu0 0
    %840 = vmatpush1.bf16.msra.mxu0 0
    %841 = vmatprep.subr.bf16.mxu0 0
    %842 = vmatpush1.bf16.msra.mxu0 0
    %843 = vmatprep.subr.bf16.mxu0 0
    %844 = vmatpush1.bf16.msra.mxu0 0
    %845 = vmatprep.subr.bf16.mxu0 0
    %846 = vmatpush1.bf16.msra.mxu0 0
    %847 = vmatprep.subr.bf16.mxu0 0
    %848 = vmatpush1.bf16.msra.mxu0 0
    %849 = vmatprep.subr.bf16.mxu0 0
    %850 = vmatpush1.bf16.msra.mxu0 0
    %851 = vmatprep.subr.bf16.mxu0 0
    %852 = vmatpush1.bf16.msra.mxu0 0
    %853 = vmatprep.mubr.bf16.mxu0 0
    %854 = vmatmul.mubr.bf16.gmra.mrb[0].mxu0 %v628
    %v855 = vpop.f32.mrb[0].mxu0
    %v856 = vadd.f32 0.0, %v855
    %v857 = vpop.f32.mrb[0].mxu0
    %v858 = vadd.f32 0.0, %v857
    %v859 = vpop.f32.mrb[0].mxu0
    %v860 = vpop.f32.mrb[0].mxu0
    %861 = vdwg.mxu0
    %862 = vmatprep.subr.bf16.mxu0 %v760
    %863 = vmatpush1.bf16.msra.mxu0 %v759
    %864 = vmatprep.subr.bf16.mxu0 %v764
    %865 = vmatpush1.bf16.msra.mxu0 %v763
    %866 = vmatprep.subr.bf16.mxu0 %v768
    %867 = vmatpush1.bf16.msra.mxu0 %v767
    %868 = vmatprep.subr.bf16.mxu0 %v772
    %869 = vmatpush1.bf16.msra.mxu0 %v771
    %870 = vmatprep.subr.bf16.mxu0 %v776
    %871 = vmatpush1.bf16.msra.mxu0 %v775
    %872 = vmatprep.subr.bf16.mxu0 %v780
    %873 = vmatpush1.bf16.msra.mxu0 %v779
    %874 = vmatprep.subr.bf16.mxu0 %v784
    %875 = vmatpush1.bf16.msra.mxu0 %v783
    %876 = vmatprep.subr.bf16.mxu0 %v788
    %877 = vmatpush1.bf16.msra.mxu0 %v787
    %878 = vmatprep.subr.bf16.mxu0 0
    %879 = vmatpush1.bf16.msra.mxu0 0
    %880 = vmatprep.subr.bf16.mxu0 0
    %881 = vmatpush1.bf16.msra.mxu0 0
    %882 = vmatprep.subr.bf16.mxu0 0
    %883 = vmatpush1.bf16.msra.mxu0 0
    %884 = vmatprep.subr.bf16.mxu0 0
    %885 = vmatpush1.bf16.msra.mxu0 0
    %886 = vmatprep.subr.bf16.mxu0 0
    %887 = vmatpush1.bf16.msra.mxu0 0
    %888 = vmatprep.subr.bf16.mxu0 0
    %889 = vmatpush1.bf16.msra.mxu0 0
    %890 = vmatprep.subr.bf16.mxu0 0
    %891 = vmatpush1.bf16.msra.mxu0 0
    %892 = vmatprep.subr.bf16.mxu0 0
    %893 = vmatpush1.bf16.msra.mxu0 0
    %894 = vmatprep.mubr.bf16.mxu0 0
    %895 = vmatmul.mubr.bf16.gmra.mrb[0].mxu0 %v628
    %v896 = vpop.f32.mrb[0].mxu0
    %v897 = vadd.f32 0.0, %v896
    %v898 = vpop.f32.mrb[0].mxu0
    %v899 = vadd.f32 0.0, %v898
    %v900 = vpop.f32.mrb[0].mxu0
    %v901 = vpop.f32.mrb[0].mxu0
    %902 = vdwg.mxu0
    %v903 = vadd.f32 %v624, %v856
    %v904 = vadd.f32 %v625, %v858
    %v905 = vadd.f32 %v626, %v897
    %v906 = vadd.f32 %v627, %v899
    %v907 = vxor.u32 %v903, 2147483648
    %v908 = vxor.u32 %v904, 2147483648
    %v909 = vxor.u32 %v905, 2147483648
    %v910 = vmul.f32 %v907, 1.442695
    %v911 = vpow.pop %v910
    %v912 = vmul.f32 %v908, 1.442695
    %v913 = vpow.pop %v912
    %v914 = vmul.f32 %v909, 1.442695
    %v915 = vpow.pop %v914
    %v916 = vadd.f32 %v911, 1.0
    %v917 = vadd.f32 %v913, 1.0
    %v918 = vadd.f32 %v915, 1.0
    %v919 = vrcp.pop %v916
    %v920 = vmul.f32 1.0, %v919
    %v921 = vrcp.pop %v917
    %v922 = vmul.f32 1.0, %v921
    %v923 = vrcp.pop %v918
    %v924 = vmul.f32 1.0, %v923
    %v925 = vtanh.pop %v906
    %v926 = vmul.f32 %v922, %v619
    %v927 = vmul.f32 %v920, %v925
    %v928 = vadd.f32 %v926, %v927
    %v929 = vtanh.pop %v928
    %v930 = vmul.f32 %v924, %v929
    %s931 = scalar_lea.vmem [#allocation2], 8
    %932 = vst [vmem:[%s931] sm:$0xff] %v930
    %s933 = scalar_lea.vmem [#allocation3], 64
    %v934 = vld [vmem:[%s933] sm:$0xff]
    %v935 = vld [vmem:[%s933 + $0x8] sm:$0xff]
    %v936 = vld [vmem:[%s933 + $0x10] sm:$0xff]
    %v937 = vld [vmem:[%s933 + $0x18] sm:$0xff]
    %v938 = vpack.c.bf16 %v930, %v930
    %v939 = vld [vmem:[#allocation4] sm:$0xff]
    %v940 = vld [vmem:[#allocation4 + $0x8] sm:$0xff]
    %v941 = vld [vmem:[#allocation4 + $0x10] sm:$0xff]
    %v942 = vld [vmem:[#allocation4 + $0x18] sm:$0xff]
    %v943 = vld [vmem:[#allocation4 + $0x20] sm:$0xff]
    %v944 = vld [vmem:[#allocation4 + $0x28] sm:$0xff]
    %v945 = vld [vmem:[#allocation4 + $0x30] sm:$0xff]
    %v946 = vld [vmem:[#allocation4 + $0x38] sm:$0xff]
    %v947 = vld [vmem:[#allocation4 + $0x40] sm:$0xff]
    %v948 = vld [vmem:[#allocation4 + $0x48] sm:$0xff]
    %v949 = vld [vmem:[#allocation4 + $0x50] sm:$0xff]
    %v950 = vld [vmem:[#allocation4 + $0x58] sm:$0xff]
    %v951 = vld [vmem:[#allocation4 + $0x60] sm:$0xff]
    %v952 = vld [vmem:[#allocation4 + $0x68] sm:$0xff]
    %v953 = vld [vmem:[#allocation4 + $0x70] sm:$0xff]
    %v954 = vld [vmem:[#allocation4 + $0x78] sm:$0xff]
    %v955 = vld [vmem:[#allocation4 + $0x80] sm:$0xff]
    %v956 = vld [vmem:[#allocation4 + $0x88] sm:$0xff]
    %v957 = vld [vmem:[#allocation4 + $0x90] sm:$0xff]
    %v958 = vld [vmem:[#allocation4 + $0x98] sm:$0xff]
    %v959 = vld [vmem:[#allocation4 + $0xa0] sm:$0xff]
    %v960 = vld [vmem:[#allocation4 + $0xa8] sm:$0xff]
    %v961 = vld [vmem:[#allocation4 + $0xb0] sm:$0xff]
    %v962 = vld [vmem:[#allocation4 + $0xb8] sm:$0xff]
    %v963 = vld [vmem:[#allocation4 + $0xc0] sm:$0xff]
    %v964 = vld [vmem:[#allocation4 + $0xc8] sm:$0xff]
    %v965 = vld [vmem:[#allocation4 + $0xd0] sm:$0xff]
    %v966 = vld [vmem:[#allocation4 + $0xd8] sm:$0xff]
    %v967 = vld [vmem:[#allocation4 + $0xe0] sm:$0xff]
    %v968 = vld [vmem:[#allocation4 + $0xe8] sm:$0xff]
    %v969 = vld [vmem:[#allocation4 + $0xf0] sm:$0xff]
    %v970 = vld [vmem:[#allocation4 + $0xf8] sm:$0xff]
    %v1003 = vunpack.c.l.b16 %v939
    %v1004 = vunpack.c.h.b16 %v939
    %v1005 = vunpack.c.l.b16 %v940
    %v1006 = vunpack.c.h.b16 %v940
    %v1007 = vunpack.c.l.b16 %v941
    %v1008 = vunpack.c.h.b16 %v941
    %v1009 = vunpack.c.l.b16 %v942
    %v1010 = vunpack.c.h.b16 %v942
    %v1011 = vunpack.c.l.b16 %v943
    %v1012 = vunpack.c.h.b16 %v943
    %v1013 = vunpack.c.l.b16 %v944
    %v1014 = vunpack.c.h.b16 %v944
    %v1015 = vunpack.c.l.b16 %v945
    %v1016 = vunpack.c.h.b16 %v945
    %v1017 = vunpack.c.l.b16 %v946
    %v1018 = vunpack.c.h.b16 %v946
    %v1019 = vunpack.c.l.b16 %v947
    %v1020 = vunpack.c.h.b16 %v947
    %v1021 = vunpack.c.l.b16 %v948
    %v1022 = vunpack.c.h.b16 %v948
    %v1023 = vunpack.c.l.b16 %v949
    %v1024 = vunpack.c.h.b16 %v949
    %v1025 = vunpack.c.l.b16 %v950
    %v1026 = vunpack.c.h.b16 %v950
    %v1027 = vunpack.c.l.b16 %v951
    %v1028 = vunpack.c.h.b16 %v951
    %v1029 = vunpack.c.l.b16 %v952
    %v1030 = vunpack.c.h.b16 %v952
    %v1031 = vunpack.c.l.b16 %v953
    %v1032 = vunpack.c.h.b16 %v953
    %v1033 = vunpack.c.l.b16 %v954
    %v1034 = vunpack.c.h.b16 %v954
    %v1035 = vunpack.c.l.b16 %v955
    %v1036 = vunpack.c.h.b16 %v955
    %v1037 = vunpack.c.l.b16 %v956
    %v1038 = vunpack.c.h.b16 %v956
    %v1039 = vunpack.c.l.b16 %v957
    %v1040 = vunpack.c.h.b16 %v957
    %v1041 = vunpack.c.l.b16 %v958
    %v1042 = vunpack.c.h.b16 %v958
    %v1043 = vunpack.c.l.b16 %v959
    %v1044 = vunpack.c.h.b16 %v959
    %v1045 = vunpack.c.l.b16 %v960
    %v1046 = vunpack.c.h.b16 %v960
    %v1047 = vunpack.c.l.b16 %v961
    %v1048 = vunpack.c.h.b16 %v961
    %v1049 = vunpack.c.l.b16 %v962
    %v1050 = vunpack.c.h.b16 %v962
    %v1051 = vunpack.c.l.b16 %v963
    %v1052 = vunpack.c.h.b16 %v963
    %v1053 = vunpack.c.l.b16 %v964
    %v1054 = vunpack.c.h.b16 %v964
    %v1055 = vunpack.c.l.b16 %v965
    %v1056 = vunpack.c.h.b16 %v965
    %v1057 = vunpack.c.l.b16 %v966
    %v1058 = vunpack.c.h.b16 %v966
    %v1059 = vunpack.c.l.b16 %v967
    %v1060 = vunpack.c.h.b16 %v967
    %v1061 = vunpack.c.l.b16 %v968
    %v1062 = vunpack.c.h.b16 %v968
    %v1063 = vunpack.c.l.b16 %v969
    %v1064 = vunpack.c.h.b16 %v969
    %v1065 = vunpack.c.l.b16 %v970
    %v1066 = vunpack.c.h.b16 %v970
    %v1067 = vpack.c.b16 %v1007, %v1003
    %v1068 = vpack.c.b16 %v1008, %v1004
    %v1069 = vpack.c.b16 %v1009, %v1005
    %v1070 = vpack.c.b16 %v1010, %v1006
    %v1071 = vpack.c.b16 %v1015, %v1011
    %v1072 = vpack.c.b16 %v1016, %v1012
    %v1073 = vpack.c.b16 %v1017, %v1013
    %v1074 = vpack.c.b16 %v1018, %v1014
    %v1075 = vpack.c.b16 %v1023, %v1019
    %v1076 = vpack.c.b16 %v1024, %v1020
    %v1077 = vpack.c.b16 %v1025, %v1021
    %v1078 = vpack.c.b16 %v1026, %v1022
    %v1079 = vpack.c.b16 %v1031, %v1027
    %v1080 = vpack.c.b16 %v1032, %v1028
    %v1081 = vpack.c.b16 %v1033, %v1029
    %v1082 = vpack.c.b16 %v1034, %v1030
    %v1083 = vpack.c.b16 %v1039, %v1035
    %v1084 = vpack.c.b16 %v1040, %v1036
    %v1085 = vpack.c.b16 %v1041, %v1037
    %v1086 = vpack.c.b16 %v1042, %v1038
    %v1087 = vpack.c.b16 %v1047, %v1043
    %v1088 = vpack.c.b16 %v1048, %v1044
    %v1089 = vpack.c.b16 %v1049, %v1045
    %v1090 = vpack.c.b16 %v1050, %v1046
    %v1091 = vpack.c.b16 %v1055, %v1051
    %v1092 = vpack.c.b16 %v1056, %v1052
    %v1093 = vpack.c.b16 %v1057, %v1053
    %v1094 = vpack.c.b16 %v1058, %v1054
    %v1095 = vpack.c.b16 %v1063, %v1059
    %v1096 = vpack.c.b16 %v1064, %v1060
    %v1097 = vpack.c.b16 %v1065, %v1061
    %v1098 = vpack.c.b16 %v1066, %v1062
    %1131 = vmatprep.subr.bf16.mxu0 %v1068
    %1132 = vmatpush1.bf16.msra.mxu0 %v1067
    %1133 = vmatprep.subr.bf16.mxu0 %v1072
    %1134 = vmatpush1.bf16.msra.mxu0 %v1071
    %1135 = vmatprep.subr.bf16.mxu0 %v1076
    %1136 = vmatpush1.bf16.msra.mxu0 %v1075
    %1137 = vmatprep.subr.bf16.mxu0 %v1080
    %1138 = vmatpush1.bf16.msra.mxu0 %v1079
    %1139 = vmatprep.subr.bf16.mxu0 %v1084
    %1140 = vmatpush1.bf16.msra.mxu0 %v1083
    %1141 = vmatprep.subr.bf16.mxu0 %v1088
    %1142 = vmatpush1.bf16.msra.mxu0 %v1087
    %1143 = vmatprep.subr.bf16.mxu0 %v1092
    %1144 = vmatpush1.bf16.msra.mxu0 %v1091
    %1145 = vmatprep.subr.bf16.mxu0 %v1096
    %1146 = vmatpush1.bf16.msra.mxu0 %v1095
    %1147 = vmatprep.subr.bf16.mxu0 0
    %1148 = vmatpush1.bf16.msra.mxu0 0
    %1149 = vmatprep.subr.bf16.mxu0 0
    %1150 = vmatpush1.bf16.msra.mxu0 0
    %1151 = vmatprep.subr.bf16.mxu0 0
    %1152 = vmatpush1.bf16.msra.mxu0 0
    %1153 = vmatprep.subr.bf16.mxu0 0
    %1154 = vmatpush1.bf16.msra.mxu0 0
    %1155 = vmatprep.subr.bf16.mxu0 0
    %1156 = vmatpush1.bf16.msra.mxu0 0
    %1157 = vmatprep.subr.bf16.mxu0 0
    %1158 = vmatpush1.bf16.msra.mxu0 0
    %1159 = vmatprep.subr.bf16.mxu0 0
    %1160 = vmatpush1.bf16.msra.mxu0 0
    %1161 = vmatprep.subr.bf16.mxu0 0
    %1162 = vmatpush1.bf16.msra.mxu0 0
    %1163 = vmatprep.mubr.bf16.mxu0 0
    %1164 = vmatmul.mubr.bf16.gmra.mrb[0].mxu0 %v938
    %v1165 = vpop.f32.mrb[0].mxu0
    %v1166 = vadd.f32 0.0, %v1165
    %v1167 = vpop.f32.mrb[0].mxu0
    %v1168 = vadd.f32 0.0, %v1167
    %v1169 = vpop.f32.mrb[0].mxu0
    %v1170 = vpop.f32.mrb[0].mxu0
    %1171 = vdwg.mxu0
    %1172 = vmatprep.subr.bf16.mxu0 %v1070
    %1173 = vmatpush1.bf16.msra.mxu0 %v1069
    %1174 = vmatprep.subr.bf16.mxu0 %v1074
    %1175 = vmatpush1.bf16.msra.mxu0 %v1073
    %1176 = vmatprep.subr.bf16.mxu0 %v1078
    %1177 = vmatpush1.bf16.msra.mxu0 %v1077
    %1178 = vmatprep.subr.bf16.mxu0 %v1082
    %1179 = vmatpush1.bf16.msra.mxu0 %v1081
    %1180 = vmatprep.subr.bf16.mxu0 %v1086
    %1181 = vmatpush1.bf16.msra.mxu0 %v1085
    %1182 = vmatprep.subr.bf16.mxu0 %v1090
    %1183 = vmatpush1.bf16.msra.mxu0 %v1089
    %1184 = vmatprep.subr.bf16.mxu0 %v1094
    %1185 = vmatpush1.bf16.msra.mxu0 %v1093
    %1186 = vmatprep.subr.bf16.mxu0 %v1098
    %1187 = vmatpush1.bf16.msra.mxu0 %v1097
    %1188 = vmatprep.subr.bf16.mxu0 0
    %1189 = vmatpush1.bf16.msra.mxu0 0
    %1190 = vmatprep.subr.bf16.mxu0 0
    %1191 = vmatpush1.bf16.msra.mxu0 0
    %1192 = vmatprep.subr.bf16.mxu0 0
    %1193 = vmatpush1.bf16.msra.mxu0 0
    %1194 = vmatprep.subr.bf16.mxu0 0
    %1195 = vmatpush1.bf16.msra.mxu0 0
    %1196 = vmatprep.subr.bf16.mxu0 0
    %1197 = vmatpush1.bf16.msra.mxu0 0
    %1198 = vmatprep.subr.bf16.mxu0 0
    %1199 = vmatpush1.bf16.msra.mxu0 0
    %1200 = vmatprep.subr.bf16.mxu0 0
    %1201 = vmatpush1.bf16.msra.mxu0 0
    %1202 = vmatprep.subr.bf16.mxu0 0
    %1203 = vmatpush1.bf16.msra.mxu0 0
    %1204 = vmatprep.mubr.bf16.mxu0 0
    %1205 = vmatmul.mubr.bf16.gmra.mrb[0].mxu0 %v938
    %v1206 = vpop.f32.mrb[0].mxu0
    %v1207 = vadd.f32 0.0, %v1206
    %v1208 = vpop.f32.mrb[0].mxu0
    %v1209 = vadd.f32 0.0, %v1208
    %v1210 = vpop.f32.mrb[0].mxu0
    %v1211 = vpop.f32.mrb[0].mxu0
    %1212 = vdwg.mxu0
    %v1213 = vadd.f32 %v934, %v1166
    %v1214 = vadd.f32 %v935, %v1168
    %v1215 = vadd.f32 %v936, %v1207
    %v1216 = vadd.f32 %v937, %v1209
    %v1217 = vxor.u32 %v1213, 2147483648
    %v1218 = vxor.u32 %v1214, 2147483648
    %v1219 = vxor.u32 %v1215, 2147483648
    %v1220 = vmul.f32 %v1217, 1.442695
    %v1221 = vpow.pop %v1220
    %v1222 = vmul.f32 %v1218, 1.442695
    %v1223 = vpow.pop %v1222
    %v1224 = vmul.f32 %v1219, 1.442695
    %v1225 = vpow.pop %v1224
    %v1226 = vadd.f32 %v1221, 1.0
    %v1227 = vadd.f32 %v1223, 1.0
    %v1228 = vadd.f32 %v1225, 1.0
    %v1229 = vrcp.pop %v1226
    %v1230 = vmul.f32 1.0, %v1229
    %v1231 = vrcp.pop %v1227
    %v1232 = vmul.f32 1.0, %v1231
    %v1233 = vrcp.pop %v1228
    %v1234 = vmul.f32 1.0, %v1233
    %v1235 = vtanh.pop %v1216
    %v1236 = vmul.f32 %v1232, %v928
    %v1237 = vmul.f32 %v1230, %v1235
    %v1238 = vadd.f32 %v1236, %v1237
    %v1239 = vtanh.pop %v1238
    %v1240 = vmul.f32 %v1234, %v1239
    %s1241 = scalar_lea.vmem [#allocation2], 16
    %1242 = vst [vmem:[%s1241] sm:$0xff] %v1240
    %s1243 = scalar_lea.vmem [#allocation3], 96
    %v1244 = vld [vmem:[%s1243] sm:$0xff]
    %v1245 = vld [vmem:[%s1243 + $0x8] sm:$0xff]
    %v1246 = vld [vmem:[%s1243 + $0x10] sm:$0xff]
    %v1247 = vld [vmem:[%s1243 + $0x18] sm:$0xff]
    %v1248 = vpack.c.bf16 %v1240, %v1240
    %v1249 = vld [vmem:[#allocation4] sm:$0xff]
    %v1250 = vld [vmem:[#allocation4 + $0x8] sm:$0xff]
    %v1251 = vld [vmem:[#allocation4 + $0x10] sm:$0xff]
    %v1252 = vld [vmem:[#allocation4 + $0x18] sm:$0xff]
    %v1253 = vld [vmem:[#allocation4 + $0x20] sm:$0xff]
    %v1254 = vld [vmem:[#allocation4 + $0x28] sm:$0xff]
    %v1255 = vld [vmem:[#allocation4 + $0x30] sm:$0xff]
    %v1256 = vld [vmem:[#allocation4 + $0x38] sm:$0xff]
    %v1257 = vld [vmem:[#allocation4 + $0x40] sm:$0xff]
    %v1258 = vld [vmem:[#allocation4 + $0x48] sm:$0xff]
    %v1259 = vld [vmem:[#allocation4 + $0x50] sm:$0xff]
    %v1260 = vld [vmem:[#allocation4 + $0x58] sm:$0xff]
    %v1261 = vld [vmem:[#allocation4 + $0x60] sm:$0xff]
    %v1262 = vld [vmem:[#allocation4 + $0x68] sm:$0xff]
    %v1263 = vld [vmem:[#allocation4 + $0x70] sm:$0xff]
    %v1264 = vld [vmem:[#allocation4 + $0x78] sm:$0xff]
    %v1265 = vld [vmem:[#allocation4 + $0x80] sm:$0xff]
    %v1266 = vld [vmem:[#allocation4 + $0x88] sm:$0xff]
    %v1267 = vld [vmem:[#allocation4 + $0x90] sm:$0xff]
    %v1268 = vld [vmem:[#allocation4 + $0x98] sm:$0xff]
    %v1269 = vld [vmem:[#allocation4 + $0xa0] sm:$0xff]
    %v1270 = vld [vmem:[#allocation4 + $0xa8] sm:$0xff]
    %v1271 = vld [vmem:[#allocation4 + $0xb0] sm:$0xff]
    %v1272 = vld [vmem:[#allocation4 + $0xb8] sm:$0xff]
    %v1273 = vld [vmem:[#allocation4 + $0xc0] sm:$0xff]
    %v1274 = vld [vmem:[#allocation4 + $0xc8] sm:$0xff]
    %v1275 = vld [vmem:[#allocation4 + $0xd0] sm:$0xff]
    %v1276 = vld [vmem:[#allocation4 + $0xd8] sm:$0xff]
    %v1277 = vld [vmem:[#allocation4 + $0xe0] sm:$0xff]
    %v1278 = vld [vmem:[#allocation4 + $0xe8] sm:$0xff]
    %v1279 = vld [vmem:[#allocation4 + $0xf0] sm:$0xff]
    %v1280 = vld [vmem:[#allocation4 + $0xf8] sm:$0xff]
    %v1313 = vunpack.c.l.b16 %v1249
    %v1314 = vunpack.c.h.b16 %v1249
    %v1315 = vunpack.c.l.b16 %v1250
    %v1316 = vunpack.c.h.b16 %v1250
    %v1317 = vunpack.c.l.b16 %v1251
    %v1318 = vunpack.c.h.b16 %v1251
    %v1319 = vunpack.c.l.b16 %v1252
    %v1320 = vunpack.c.h.b16 %v1252
    %v1321 = vunpack.c.l.b16 %v1253
    %v1322 = vunpack.c.h.b16 %v1253
    %v1323 = vunpack.c.l.b16 %v1254
    %v1324 = vunpack.c.h.b16 %v1254
    %v1325 = vunpack.c.l.b16 %v1255
    %v1326 = vunpack.c.h.b16 %v1255
    %v1327 = vunpack.c.l.b16 %v1256
    %v1328 = vunpack.c.h.b16 %v1256
    %v1329 = vunpack.c.l.b16 %v1257
    %v1330 = vunpack.c.h.b16 %v1257
    %v1331 = vunpack.c.l.b16 %v1258
    %v1332 = vunpack.c.h.b16 %v1258
    %v1333 = vunpack.c.l.b16 %v1259
    %v1334 = vunpack.c.h.b16 %v1259
    %v1335 = vunpack.c.l.b16 %v1260
    %v1336 = vunpack.c.h.b16 %v1260
    %v1337 = vunpack.c.l.b16 %v1261
    %v1338 = vunpack.c.h.b16 %v1261
    %v1339 = vunpack.c.l.b16 %v1262
    %v1340 = vunpack.c.h.b16 %v1262
    %v1341 = vunpack.c.l.b16 %v1263
    %v1342 = vunpack.c.h.b16 %v1263
    %v1343 = vunpack.c.l.b16 %v1264
    %v1344 = vunpack.c.h.b16 %v1264
    %v1345 = vunpack.c.l.b16 %v1265
    %v1346 = vunpack.c.h.b16 %v1265
    %v1347 = vunpack.c.l.b16 %v1266
    %v1348 = vunpack.c.h.b16 %v1266
    %v1349 = vunpack.c.l.b16 %v1267
    %v1350 = vunpack.c.h.b16 %v1267
    %v1351 = vunpack.c.l.b16 %v1268
    %v1352 = vunpack.c.h.b16 %v1268
    %v1353 = vunpack.c.l.b16 %v1269
    %v1354 = vunpack.c.h.b16 %v1269
    %v1355 = vunpack.c.l.b16 %v1270
    %v1356 = vunpack.c.h.b16 %v1270
    %v1357 = vunpack.c.l.b16 %v1271
    %v1358 = vunpack.c.h.b16 %v1271
    %v1359 = vunpack.c.l.b16 %v1272
    %v1360 = vunpack.c.h.b16 %v1272
    %v1361 = vunpack.c.l.b16 %v1273
    %v1362 = vunpack.c.h.b16 %v1273
    %v1363 = vunpack.c.l.b16 %v1274
    %v1364 = vunpack.c.h.b16 %v1274
    %v1365 = vunpack.c.l.b16 %v1275
    %v1366 = vunpack.c.h.b16 %v1275
    %v1367 = vunpack.c.l.b16 %v1276
    %v1368 = vunpack.c.h.b16 %v1276
    %v1369 = vunpack.c.l.b16 %v1277
    %v1370 = vunpack.c.h.b16 %v1277
    %v1371 = vunpack.c.l.b16 %v1278
    %v1372 = vunpack.c.h.b16 %v1278
    %v1373 = vunpack.c.l.b16 %v1279
    %v1374 = vunpack.c.h.b16 %v1279
    %v1375 = vunpack.c.l.b16 %v1280
    %v1376 = vunpack.c.h.b16 %v1280
    %v1377 = vpack.c.b16 %v1317, %v1313
    %v1378 = vpack.c.b16 %v1318, %v1314
    %v1379 = vpack.c.b16 %v1319, %v1315
    %v1380 = vpack.c.b16 %v1320, %v1316
    %v1381 = vpack.c.b16 %v1325, %v1321
    %v1382 = vpack.c.b16 %v1326, %v1322
    %v1383 = vpack.c.b16 %v1327, %v1323
    %v1384 = vpack.c.b16 %v1328, %v1324
    %v1385 = vpack.c.b16 %v1333, %v1329
    %v1386 = vpack.c.b16 %v1334, %v1330
    %v1387 = vpack.c.b16 %v1335, %v1331
    %v1388 = vpack.c.b16 %v1336, %v1332
    %v1389 = vpack.c.b16 %v1341, %v1337
    %v1390 = vpack.c.b16 %v1342, %v1338
    %v1391 = vpack.c.b16 %v1343, %v1339
    %v1392 = vpack.c.b16 %v1344, %v1340
    %v1393 = vpack.c.b16 %v1349, %v1345
    %v1394 = vpack.c.b16 %v1350, %v1346
    %v1395 = vpack.c.b16 %v1351, %v1347
    %v1396 = vpack.c.b16 %v1352, %v1348
    %v1397 = vpack.c.b16 %v1357, %v1353
    %v1398 = vpack.c.b16 %v1358, %v1354
    %v1399 = vpack.c.b16 %v1359, %v1355
    %v1400 = vpack.c.b16 %v1360, %v1356
    %v1401 = vpack.c.b16 %v1365, %v1361
    %v1402 = vpack.c.b16 %v1366, %v1362
    %v1403 = vpack.c.b16 %v1367, %v1363
    %v1404 = vpack.c.b16 %v1368, %v1364
    %v1405 = vpack.c.b16 %v1373, %v1369
    %v1406 = vpack.c.b16 %v1374, %v1370
    %v1407 = vpack.c.b16 %v1375, %v1371
    %v1408 = vpack.c.b16 %v1376, %v1372
    %1441 = vmatprep.subr.bf16.mxu0 %v1378
    %1442 = vmatpush1.bf16.msra.mxu0 %v1377
    %1443 = vmatprep.subr.bf16.mxu0 %v1382
    %1444 = vmatpush1.bf16.msra.mxu0 %v1381
    %1445 = vmatprep.subr.bf16.mxu0 %v1386
    %1446 = vmatpush1.bf16.msra.mxu0 %v1385
    %1447 = vmatprep.subr.bf16.mxu0 %v1390
    %1448 = vmatpush1.bf16.msra.mxu0 %v1389
    %1449 = vmatprep.subr.bf16.mxu0 %v1394
    %1450 = vmatpush1.bf16.msra.mxu0 %v1393
    %1451 = vmatprep.subr.bf16.mxu0 %v1398
    %1452 = vmatpush1.bf16.msra.mxu0 %v1397
    %1453 = vmatprep.subr.bf16.mxu0 %v1402
    %1454 = vmatpush1.bf16.msra.mxu0 %v1401
    %1455 = vmatprep.subr.bf16.mxu0 %v1406
    %1456 = vmatpush1.bf16.msra.mxu0 %v1405
    %1457 = vmatprep.subr.bf16.mxu0 0
    %1458 = vmatpush1.bf16.msra.mxu0 0
    %1459 = vmatprep.subr.bf16.mxu0 0
    %1460 = vmatpush1.bf16.msra.mxu0 0
    %1461 = vmatprep.subr.bf16.mxu0 0
    %1462 = vmatpush1.bf16.msra.mxu0 0
    %1463 = vmatprep.subr.bf16.mxu0 0
    %1464 = vmatpush1.bf16.msra.mxu0 0
    %1465 = vmatprep.subr.bf16.mxu0 0
    %1466 = vmatpush1.bf16.msra.mxu0 0
    %1467 = vmatprep.subr.bf16.mxu0 0
    %1468 = vmatpush1.bf16.msra.mxu0 0
    %1469 = vmatprep.subr.bf16.mxu0 0
    %1470 = vmatpush1.bf16.msra.mxu0 0
    %1471 = vmatprep.subr.bf16.mxu0 0
    %1472 = vmatpush1.bf16.msra.mxu0 0
    %1473 = vmatprep.mubr.bf16.mxu0 0
    %1474 = vmatmul.mubr.bf16.gmra.mrb[0].mxu0 %v1248
    %v1475 = vpop.f32.mrb[0].mxu0
    %v1476 = vadd.f32 0.0, %v1475
    %v1477 = vpop.f32.mrb[0].mxu0
    %v1478 = vadd.f32 0.0, %v1477
    %v1479 = vpop.f32.mrb[0].mxu0
    %v1480 = vpop.f32.mrb[0].mxu0
    %1481 = vdwg.mxu0
    %1482 = vmatprep.subr.bf16.mxu0 %v1380
    %1483 = vmatpush1.bf16.msra.mxu0 %v1379
    %1484 = vmatprep.subr.bf16.mxu0 %v1384
    %1485 = vmatpush1.bf16.msra.mxu0 %v1383
    %1486 = vmatprep.subr.bf16.mxu0 %v1388
    %1487 = vmatpush1.bf16.msra.mxu0 %v1387
    %1488 = vmatprep.subr.bf16.mxu0 %v1392
    %1489 = vmatpush1.bf16.msra.mxu0 %v1391
    %1490 = vmatprep.subr.bf16.mxu0 %v1396
    %1491 = vmatpush1.bf16.msra.mxu0 %v1395
    %1492 = vmatprep.subr.bf16.mxu0 %v1400
    %1493 = vmatpush1.bf16.msra.mxu0 %v1399
    %1494 = vmatprep.subr.bf16.mxu0 %v1404
    %1495 = vmatpush1.bf16.msra.mxu0 %v1403
    %1496 = vmatprep.subr.bf16.mxu0 %v1408
    %1497 = vmatpush1.bf16.msra.mxu0 %v1407
    %1498 = vmatprep.subr.bf16.mxu0 0
    %1499 = vmatpush1.bf16.msra.mxu0 0
    %1500 = vmatprep.subr.bf16.mxu0 0
    %1501 = vmatpush1.bf16.msra.mxu0 0
    %1502 = vmatprep.subr.bf16.mxu0 0
    %1503 = vmatpush1.bf16.msra.mxu0 0
    %1504 = vmatprep.subr.bf16.mxu0 0
    %1505 = vmatpush1.bf16.msra.mxu0 0
    %1506 = vmatprep.subr.bf16.mxu0 0
    %1507 = vmatpush1.bf16.msra.mxu0 0
    %1508 = vmatprep.subr.bf16.mxu0 0
    %1509 = vmatpush1.bf16.msra.mxu0 0
    %1510 = vmatprep.subr.bf16.mxu0 0
    %1511 = vmatpush1.bf16.msra.mxu0 0
    %1512 = vmatprep.subr.bf16.mxu0 0
    %1513 = vmatpush1.bf16.msra.mxu0 0
    %1514 = vmatprep.mubr.bf16.mxu0 0
    %1515 = vmatmul.mubr.bf16.gmra.mrb[0].mxu0 %v1248
    %v1516 = vpop.f32.mrb[0].mxu0
    %v1517 = vadd.f32 0.0, %v1516
    %v1518 = vpop.f32.mrb[0].mxu0
    %v1519 = vadd.f32 0.0, %v1518
    %v1520 = vpop.f32.mrb[0].mxu0
    %v1521 = vpop.f32.mrb[0].mxu0
    %1522 = vdwg.mxu0
    %v1523 = vadd.f32 %v1244, %v1476
    %v1524 = vadd.f32 %v1245, %v1478
    %v1525 = vadd.f32 %v1246, %v1517
    %v1526 = vadd.f32 %v1247, %v1519
    %v1527 = vxor.u32 %v1523, 2147483648
    %v1528 = vxor.u32 %v1524, 2147483648
    %v1529 = vxor.u32 %v1525, 2147483648
    %v1530 = vmul.f32 %v1527, 1.442695
    %v1531 = vpow.pop %v1530
    %v1532 = vmul.f32 %v1528, 1.442695
    %v1533 = vpow.pop %v1532
    %v1534 = vmul.f32 %v1529, 1.442695
    %v1535 = vpow.pop %v1534
    %v1536 = vadd.f32 %v1531, 1.0
    %v1537 = vadd.f32 %v1533, 1.0
    %v1538 = vadd.f32 %v1535, 1.0
    %v1539 = vrcp.pop %v1536
    %v1540 = vmul.f32 1.0, %v1539
    %v1541 = vrcp.pop %v1537
    %v1542 = vmul.f32 1.0, %v1541
    %v1543 = vrcp.pop %v1538
    %v1544 = vmul.f32 1.0, %v1543
    %v1545 = vtanh.pop %v1526
    %v1546 = vmul.f32 %v1542, %v1238
    %v1547 = vmul.f32 %v1540, %v1545
    %v1548 = vadd.f32 %v1546, %v1547
    %v1549 = vtanh.pop %v1548
    %v1550 = vmul.f32 %v1544, %v1549
    %s1551 = scalar_lea.vmem [#allocation2], 24
    %1552 = vst [vmem:[%s1551] sm:$0xff] %v1550
    %s1553 = scalar_lea.vmem [#allocation3], 128
    %v1554 = vld [vmem:[%s1553] sm:$0xff]
    %v1555 = vld [vmem:[%s1553 + $0x8] sm:$0xff]
    %v1556 = vld [vmem:[%s1553 + $0x10] sm:$0xff]
    %v1557 = vld [vmem:[%s1553 + $0x18] sm:$0xff]
    %v1558 = vpack.c.bf16 %v1550, %v1550
    %v1559 = vld [vmem:[#allocation4] sm:$0xff]
    %v1560 = vld [vmem:[#allocation4 + $0x8] sm:$0xff]
    %v1561 = vld [vmem:[#allocation4 + $0x10] sm:$0xff]
    %v1562 = vld [vmem:[#allocation4 + $0x18] sm:$0xff]
    %v1563 = vld [vmem:[#allocation4 + $0x20] sm:$0xff]
    %v1564 = vld [vmem:[#allocation4 + $0x28] sm:$0xff]
    %v1565 = vld [vmem:[#allocation4 + $0x30] sm:$0xff]
    %v1566 = vld [vmem:[#allocation4 + $0x38] sm:$0xff]
    %v1567 = vld [vmem:[#allocation4 + $0x40] sm:$0xff]
    %v1568 = vld [vmem:[#allocation4 + $0x48] sm:$0xff]
    %v1569 = vld [vmem:[#allocation4 + $0x50] sm:$0xff]
    %v1570 = vld [vmem:[#allocation4 + $0x58] sm:$0xff]
    %v1571 = vld [vmem:[#allocation4 + $0x60] sm:$0xff]
    %v1572 = vld [vmem:[#allocation4 + $0x68] sm:$0xff]
    %v1573 = vld [vmem:[#allocation4 + $0x70] sm:$0xff]
    %v1574 = vld [vmem:[#allocation4 + $0x78] sm:$0xff]
    %v1575 = vld [vmem:[#allocation4 + $0x80] sm:$0xff]
    %v1576 = vld [vmem:[#allocation4 + $0x88] sm:$0xff]
    %v1577 = vld [vmem:[#allocation4 + $0x90] sm:$0xff]
    %v1578 = vld [vmem:[#allocation4 + $0x98] sm:$0xff]
    %v1579 = vld [vmem:[#allocation4 + $0xa0] sm:$0xff]
    %v1580 = vld [vmem:[#allocation4 + $0xa8] sm:$0xff]
    %v1581 = vld [vmem:[#allocation4 + $0xb0] sm:$0xff]
    %v1582 = vld [vmem:[#allocation4 + $0xb8] sm:$0xff]
    %v1583 = vld [vmem:[#allocation4 + $0xc0] sm:$0xff]
    %v1584 = vld [vmem:[#allocation4 + $0xc8] sm:$0xff]
    %v1585 = vld [vmem:[#allocation4 + $0xd0] sm:$0xff]
    %v1586 = vld [vmem:[#allocation4 + $0xd8] sm:$0xff]
    %v1587 = vld [vmem:[#allocation4 + $0xe0] sm:$0xff]
    %v1588 = vld [vmem:[#allocation4 + $0xe8] sm:$0xff]
    %v1589 = vld [vmem:[#allocation4 + $0xf0] sm:$0xff]
    %v1590 = vld [vmem:[#allocation4 + $0xf8] sm:$0xff]
    %v1623 = vunpack.c.l.b16 %v1559
    %v1624 = vunpack.c.h.b16 %v1559
    %v1625 = vunpack.c.l.b16 %v1560
    %v1626 = vunpack.c.h.b16 %v1560
    %v1627 = vunpack.c.l.b16 %v1561
    %v1628 = vunpack.c.h.b16 %v1561
    %v1629 = vunpack.c.l.b16 %v1562
    %v1630 = vunpack.c.h.b16 %v1562
    %v1631 = vunpack.c.l.b16 %v1563
    %v1632 = vunpack.c.h.b16 %v1563
    %v1633 = vunpack.c.l.b16 %v1564
    %v1634 = vunpack.c.h.b16 %v1564
    %v1635 = vunpack.c.l.b16 %v1565
    %v1636 = vunpack.c.h.b16 %v1565
    %v1637 = vunpack.c.l.b16 %v1566
    %v1638 = vunpack.c.h.b16 %v1566
    %v1639 = vunpack.c.l.b16 %v1567
    %v1640 = vunpack.c.h.b16 %v1567
    %v1641 = vunpack.c.l.b16 %v1568
    %v1642 = vunpack.c.h.b16 %v1568
    %v1643 = vunpack.c.l.b16 %v1569
    %v1644 = vunpack.c.h.b16 %v1569
    %v1645 = vunpack.c.l.b16 %v1570
    %v1646 = vunpack.c.h.b16 %v1570
    %v1647 = vunpack.c.l.b16 %v1571
    %v1648 = vunpack.c.h.b16 %v1571
    %v1649 = vunpack.c.l.b16 %v1572
    %v1650 = vunpack.c.h.b16 %v1572
    %v1651 = vunpack.c.l.b16 %v1573
    %v1652 = vunpack.c.h.b16 %v1573
    %v1653 = vunpack.c.l.b16 %v1574
    %v1654 = vunpack.c.h.b16 %v1574
    %v1655 = vunpack.c.l.b16 %v1575
    %v1656 = vunpack.c.h.b16 %v1575
    %v1657 = vunpack.c.l.b16 %v1576
    %v1658 = vunpack.c.h.b16 %v1576
    %v1659 = vunpack.c.l.b16 %v1577
    %v1660 = vunpack.c.h.b16 %v1577
    %v1661 = vunpack.c.l.b16 %v1578
    %v1662 = vunpack.c.h.b16 %v1578
    %v1663 = vunpack.c.l.b16 %v1579
    %v1664 = vunpack.c.h.b16 %v1579
    %v1665 = vunpack.c.l.b16 %v1580
    %v1666 = vunpack.c.h.b16 %v1580
    %v1667 = vunpack.c.l.b16 %v1581
    %v1668 = vunpack.c.h.b16 %v1581
    %v1669 = vunpack.c.l.b16 %v1582
    %v1670 = vunpack.c.h.b16 %v1582
    %v1671 = vunpack.c.l.b16 %v1583
    %v1672 = vunpack.c.h.b16 %v1583
    %v1673 = vunpack.c.l.b16 %v1584
    %v1674 = vunpack.c.h.b16 %v1584
    %v1675 = vunpack.c.l.b16 %v1585
    %v1676 = vunpack.c.h.b16 %v1585
    %v1677 = vunpack.c.l.b16 %v1586
    %v1678 = vunpack.c.h.b16 %v1586
    %v1679 = vunpack.c.l.b16 %v1587
    %v1680 = vunpack.c.h.b16 %v1587
    %v1681 = vunpack.c.l.b16 %v1588
    %v1682 = vunpack.c.h.b16 %v1588
    %v1683 = vunpack.c.l.b16 %v1589
    %v1684 = vunpack.c.h.b16 %v1589
    %v1685 = vunpack.c.l.b16 %v1590
    %v1686 = vunpack.c.h.b16 %v1590
    %v1687 = vpack.c.b16 %v1627, %v1623
    %v1688 = vpack.c.b16 %v1628, %v1624
    %v1689 = vpack.c.b16 %v1629, %v1625
    %v1690 = vpack.c.b16 %v1630, %v1626
    %v1691 = vpack.c.b16 %v1635, %v1631
    %v1692 = vpack.c.b16 %v1636, %v1632
    %v1693 = vpack.c.b16 %v1637, %v1633
    %v1694 = vpack.c.b16 %v1638, %v1634
    %v1695 = vpack.c.b16 %v1643, %v1639
    %v1696 = vpack.c.b16 %v1644, %v1640
    %v1697 = vpack.c.b16 %v1645, %v1641
    %v1698 = vpack.c.b16 %v1646, %v1642
    %v1699 = vpack.c.b16 %v1651, %v1647
    %v1700 = vpack.c.b16 %v1652, %v1648
    %v1701 = vpack.c.b16 %v1653, %v1649
    %v1702 = vpack.c.b16 %v1654, %v1650
    %v1703 = vpack.c.b16 %v1659, %v1655
    %v1704 = vpack.c.b16 %v1660, %v1656
    %v1705 = vpack.c.b16 %v1661, %v1657
    %v1706 = vpack.c.b16 %v1662, %v1658
    %v1707 = vpack.c.b16 %v1667, %v1663
    %v1708 = vpack.c.b16 %v1668, %v1664
    %v1709 = vpack.c.b16 %v1669, %v1665
    %v1710 = vpack.c.b16 %v1670, %v1666
    %v1711 = vpack.c.b16 %v1675, %v1671
    %v1712 = vpack.c.b16 %v1676, %v1672
    %v1713 = vpack.c.b16 %v1677, %v1673
    %v1714 = vpack.c.b16 %v1678, %v1674
    %v1715 = vpack.c.b16 %v1683, %v1679
    %v1716 = vpack.c.b16 %v1684, %v1680
    %v1717 = vpack.c.b16 %v1685, %v1681
    %v1718 = vpack.c.b16 %v1686, %v1682
    %1751 = vmatprep.subr.bf16.mxu0 %v1688
    %1752 = vmatpush1.bf16.msra.mxu0 %v1687
    %1753 = vmatprep.subr.bf16.mxu0 %v1692
    %1754 = vmatpush1.bf16.msra.mxu0 %v1691
    %1755 = vmatprep.subr.bf16.mxu0 %v1696
    %1756 = vmatpush1.bf16.msra.mxu0 %v1695
    %1757 = vmatprep.subr.bf16.mxu0 %v1700
    %1758 = vmatpush1.bf16.msra.mxu0 %v1699
    %1759 = vmatprep.subr.bf16.mxu0 %v1704
    %1760 = vmatpush1.bf16.msra.mxu0 %v1703
    %1761 = vmatprep.subr.bf16.mxu0 %v1708
    %1762 = vmatpush1.bf16.msra.mxu0 %v1707
    %1763 = vmatprep.subr.bf16.mxu0 %v1712
    %1764 = vmatpush1.bf16.msra.mxu0 %v1711
    %1765 = vmatprep.subr.bf16.mxu0 %v1716
    %1766 = vmatpush1.bf16.msra.mxu0 %v1715
    %1767 = vmatprep.subr.bf16.mxu0 0
    %1768 = vmatpush1.bf16.msra.mxu0 0
    %1769 = vmatprep.subr.bf16.mxu0 0
    %1770 = vmatpush1.bf16.msra.mxu0 0
    %1771 = vmatprep.subr.bf16.mxu0 0
    %1772 = vmatpush1.bf16.msra.mxu0 0
    %1773 = vmatprep.subr.bf16.mxu0 0
    %1774 = vmatpush1.bf16.msra.mxu0 0
    %1775 = vmatprep.subr.bf16.mxu0 0
    %1776 = vmatpush1.bf16.msra.mxu0 0
    %1777 = vmatprep.subr.bf16.mxu0 0
    %1778 = vmatpush1.bf16.msra.mxu0 0
    %1779 = vmatprep.subr.bf16.mxu0 0
    %1780 = vmatpush1.bf16.msra.mxu0 0
    %1781 = vmatprep.subr.bf16.mxu0 0
    %1782 = vmatpush1.bf16.msra.mxu0 0
    %1783 = vmatprep.mubr.bf16.mxu0 0
    %1784 = vmatmul.mubr.bf16.gmra.mrb[0].mxu0 %v1558
    %v1785 = vpop.f32.mrb[0].mxu0
    %v1786 = vadd.f32 0.0, %v1785
    %v1787 = vpop.f32.mrb[0].mxu0
    %v1788 = vadd.f32 0.0, %v1787
    %v1789 = vpop.f32.mrb[0].mxu0
    %v1790 = vpop.f32.mrb[0].mxu0
    %1791 = vdwg.mxu0
    %1792 = vmatprep.subr.bf16.mxu0 %v1690
    %1793 = vmatpush1.bf16.msra.mxu0 %v1689
    %1794 = vmatprep.subr.bf16.mxu0 %v1694
    %1795 = vmatpush1.bf16.msra.mxu0 %v1693
    %1796 = vmatprep.subr.bf16.mxu0 %v1698
    %1797 = vmatpush1.bf16.msra.mxu0 %v1697
    %1798 = vmatprep.subr.bf16.mxu0 %v1702
    %1799 = vmatpush1.bf16.msra.mxu0 %v1701
    %1800 = vmatprep.subr.bf16.mxu0 %v1706
    %1801 = vmatpush1.bf16.msra.mxu0 %v1705
    %1802 = vmatprep.subr.bf16.mxu0 %v1710
    %1803 = vmatpush1.bf16.msra.mxu0 %v1709
    %1804 = vmatprep.subr.bf16.mxu0 %v1714
    %1805 = vmatpush1.bf16.msra.mxu0 %v1713
    %1806 = vmatprep.subr.bf16.mxu0 %v1718
    %1807 = vmatpush1.bf16.msra.mxu0 %v1717
    %1808 = vmatprep.subr.bf16.mxu0 0
    %1809 = vmatpush1.bf16.msra.mxu0 0
    %1810 = vmatprep.subr.bf16.mxu0 0
    %1811 = vmatpush1.bf16.msra.mxu0 0
    %1812 = vmatprep.subr.bf16.mxu0 0
    %1813 = vmatpush1.bf16.msra.mxu0 0
    %1814 = vmatprep.subr.bf16.mxu0 0
    %1815 = vmatpush1.bf16.msra.mxu0 0
    %1816 = vmatprep.subr.bf16.mxu0 0
    %1817 = vmatpush1.bf16.msra.mxu0 0
    %1818 = vmatprep.subr.bf16.mxu0 0
    %1819 = vmatpush1.bf16.msra.mxu0 0
    %1820 = vmatprep.subr.bf16.mxu0 0
    %1821 = vmatpush1.bf16.msra.mxu0 0
    %1822 = vmatprep.subr.bf16.mxu0 0
    %1823 = vmatpush1.bf16.msra.mxu0 0
    %1824 = vmatprep.mubr.bf16.mxu0 0
    %1825 = vmatmul.mubr.bf16.gmra.mrb[0].mxu0 %v1558
    %v1826 = vpop.f32.mrb[0].mxu0
    %v1827 = vadd.f32 0.0, %v1826
    %v1828 = vpop.f32.mrb[0].mxu0
    %v1829 = vadd.f32 0.0, %v1828
    %v1830 = vpop.f32.mrb[0].mxu0
    %v1831 = vpop.f32.mrb[0].mxu0
    %1832 = vdwg.mxu0
    %v1833 = vadd.f32 %v1554, %v1786
    %v1834 = vadd.f32 %v1555, %v1788
    %v1835 = vadd.f32 %v1556, %v1827
    %v1836 = vadd.f32 %v1557, %v1829
    %v1837 = vxor.u32 %v1833, 2147483648
    %v1838 = vxor.u32 %v1834, 2147483648
    %v1839 = vxor.u32 %v1835, 2147483648
    %v1840 = vmul.f32 %v1837, 1.442695
    %v1841 = vpow.pop %v1840
    %v1842 = vmul.f32 %v1838, 1.442695
    %v1843 = vpow.pop %v1842
    %v1844 = vmul.f32 %v1839, 1.442695
    %v1845 = vpow.pop %v1844
    %v1846 = vadd.f32 %v1841, 1.0
    %v1847 = vadd.f32 %v1843, 1.0
    %v1848 = vadd.f32 %v1845, 1.0
    %v1849 = vrcp.pop %v1846
    %v1850 = vmul.f32 1.0, %v1849
    %v1851 = vrcp.pop %v1847
    %v1852 = vmul.f32 1.0, %v1851
    %v1853 = vrcp.pop %v1848
    %v1854 = vmul.f32 1.0, %v1853
    %v1855 = vtanh.pop %v1836
    %v1856 = vmul.f32 %v1852, %v1548
    %v1857 = vmul.f32 %v1850, %v1855
    %v1858 = vadd.f32 %v1856, %v1857
    %v1859 = vtanh.pop %v1858
    %v1860 = vmul.f32 %v1854, %v1859
    %s1861 = scalar_lea.vmem [#allocation2], 32
    %1862 = vst [vmem:[%s1861] sm:$0xff] %v1860
    %s1863 = scalar_lea.vmem [#allocation3], 160
    %v1864 = vld [vmem:[%s1863] sm:$0xff]
    %v1865 = vld [vmem:[%s1863 + $0x8] sm:$0xff]
    %v1866 = vld [vmem:[%s1863 + $0x10] sm:$0xff]
    %v1867 = vld [vmem:[%s1863 + $0x18] sm:$0xff]
    %v1868 = vpack.c.bf16 %v1860, %v1860
    %v1869 = vld [vmem:[#allocation4] sm:$0xff]
    %v1870 = vld [vmem:[#allocation4 + $0x8] sm:$0xff]
    %v1871 = vld [vmem:[#allocation4 + $0x10] sm:$0xff]
    %v1872 = vld [vmem:[#allocation4 + $0x18] sm:$0xff]
    %v1873 = vld [vmem:[#allocation4 + $0x20] sm:$0xff]
    %v1874 = vld [vmem:[#allocation4 + $0x28] sm:$0xff]
    %v1875 = vld [vmem:[#allocation4 + $0x30] sm:$0xff]
    %v1876 = vld [vmem:[#allocation4 + $0x38] sm:$0xff]
    %v1877 = vld [vmem:[#allocation4 + $0x40] sm:$0xff]
    %v1878 = vld [vmem:[#allocation4 + $0x48] sm:$0xff]
    %v1879 = vld [vmem:[#allocation4 + $0x50] sm:$0xff]
    %v1880 = vld [vmem:[#allocation4 + $0x58] sm:$0xff]
    %v1881 = vld [vmem:[#allocation4 + $0x60] sm:$0xff]
    %v1882 = vld [vmem:[#allocation4 + $0x68] sm:$0xff]
    %v1883 = vld [vmem:[#allocation4 + $0x70] sm:$0xff]
    %v1884 = vld [vmem:[#allocation4 + $0x78] sm:$0xff]
    %v1885 = vld [vmem:[#allocation4 + $0x80] sm:$0xff]
    %v1886 = vld [vmem:[#allocation4 + $0x88] sm:$0xff]
    %v1887 = vld [vmem:[#allocation4 + $0x90] sm:$0xff]
    %v1888 = vld [vmem:[#allocation4 + $0x98] sm:$0xff]
    %v1889 = vld [vmem:[#allocation4 + $0xa0] sm:$0xff]
    %v1890 = vld [vmem:[#allocation4 + $0xa8] sm:$0xff]
    %v1891 = vld [vmem:[#allocation4 + $0xb0] sm:$0xff]
    %v1892 = vld [vmem:[#allocation4 + $0xb8] sm:$0xff]
    %v1893 = vld [vmem:[#allocation4 + $0xc0] sm:$0xff]
    %v1894 = vld [vmem:[#allocation4 + $0xc8] sm:$0xff]
    %v1895 = vld [vmem:[#allocation4 + $0xd0] sm:$0xff]
    %v1896 = vld [vmem:[#allocation4 + $0xd8] sm:$0xff]
    %v1897 = vld [vmem:[#allocation4 + $0xe0] sm:$0xff]
    %v1898 = vld [vmem:[#allocation4 + $0xe8] sm:$0xff]
    %v1899 = vld [vmem:[#allocation4 + $0xf0] sm:$0xff]
    %v1900 = vld [vmem:[#allocation4 + $0xf8] sm:$0xff]
    %v1933 = vunpack.c.l.b16 %v1869
    %v1934 = vunpack.c.h.b16 %v1869
    %v1935 = vunpack.c.l.b16 %v1870
    %v1936 = vunpack.c.h.b16 %v1870
    %v1937 = vunpack.c.l.b16 %v1871
    %v1938 = vunpack.c.h.b16 %v1871
    %v1939 = vunpack.c.l.b16 %v1872
    %v1940 = vunpack.c.h.b16 %v1872
    %v1941 = vunpack.c.l.b16 %v1873
    %v1942 = vunpack.c.h.b16 %v1873
    %v1943 = vunpack.c.l.b16 %v1874
    %v1944 = vunpack.c.h.b16 %v1874
    %v1945 = vunpack.c.l.b16 %v1875
    %v1946 = vunpack.c.h.b16 %v1875
    %v1947 = vunpack.c.l.b16 %v1876
    %v1948 = vunpack.c.h.b16 %v1876
    %v1949 = vunpack.c.l.b16 %v1877
    %v1950 = vunpack.c.h.b16 %v1877
    %v1951 = vunpack.c.l.b16 %v1878
    %v1952 = vunpack.c.h.b16 %v1878
    %v1953 = vunpack.c.l.b16 %v1879
    %v1954 = vunpack.c.h.b16 %v1879
    %v1955 = vunpack.c.l.b16 %v1880
    %v1956 = vunpack.c.h.b16 %v1880
    %v1957 = vunpack.c.l.b16 %v1881
    %v1958 = vunpack.c.h.b16 %v1881
    %v1959 = vunpack.c.l.b16 %v1882
    %v1960 = vunpack.c.h.b16 %v1882
    %v1961 = vunpack.c.l.b16 %v1883
    %v1962 = vunpack.c.h.b16 %v1883
    %v1963 = vunpack.c.l.b16 %v1884
    %v1964 = vunpack.c.h.b16 %v1884
    %v1965 = vunpack.c.l.b16 %v1885
    %v1966 = vunpack.c.h.b16 %v1885
    %v1967 = vunpack.c.l.b16 %v1886
    %v1968 = vunpack.c.h.b16 %v1886
    %v1969 = vunpack.c.l.b16 %v1887
    %v1970 = vunpack.c.h.b16 %v1887
    %v1971 = vunpack.c.l.b16 %v1888
    %v1972 = vunpack.c.h.b16 %v1888
    %v1973 = vunpack.c.l.b16 %v1889
    %v1974 = vunpack.c.h.b16 %v1889
    %v1975 = vunpack.c.l.b16 %v1890
    %v1976 = vunpack.c.h.b16 %v1890
    %v1977 = vunpack.c.l.b16 %v1891
    %v1978 = vunpack.c.h.b16 %v1891
    %v1979 = vunpack.c.l.b16 %v1892
    %v1980 = vunpack.c.h.b16 %v1892
    %v1981 = vunpack.c.l.b16 %v1893
    %v1982 = vunpack.c.h.b16 %v1893
    %v1983 = vunpack.c.l.b16 %v1894
    %v1984 = vunpack.c.h.b16 %v1894
    %v1985 = vunpack.c.l.b16 %v1895
    %v1986 = vunpack.c.h.b16 %v1895
    %v1987 = vunpack.c.l.b16 %v1896
    %v1988 = vunpack.c.h.b16 %v1896
    %v1989 = vunpack.c.l.b16 %v1897
    %v1990 = vunpack.c.h.b16 %v1897
    %v1991 = vunpack.c.l.b16 %v1898
    %v1992 = vunpack.c.h.b16 %v1898
    %v1993 = vunpack.c.l.b16 %v1899
    %v1994 = vunpack.c.h.b16 %v1899
    %v1995 = vunpack.c.l.b16 %v1900
    %v1996 = vunpack.c.h.b16 %v1900
    %v1997 = vpack.c.b16 %v1937, %v1933
    %v1998 = vpack.c.b16 %v1938, %v1934
    %v1999 = vpack.c.b16 %v1939, %v1935
    %v2000 = vpack.c.b16 %v1940, %v1936
    %v2001 = vpack.c.b16 %v1945, %v1941
    %v2002 = vpack.c.b16 %v1946, %v1942
    %v2003 = vpack.c.b16 %v1947, %v1943
    %v2004 = vpack.c.b16 %v1948, %v1944
    %v2005 = vpack.c.b16 %v1953, %v1949
    %v2006 = vpack.c.b16 %v1954, %v1950
    %v2007 = vpack.c.b16 %v1955, %v1951
    %v2008 = vpack.c.b16 %v1956, %v1952
    %v2009 = vpack.c.b16 %v1961, %v1957
    %v2010 = vpack.c.b16 %v1962, %v1958
    %v2011 = vpack.c.b16 %v1963, %v1959
    %v2012 = vpack.c.b16 %v1964, %v1960
    %v2013 = vpack.c.b16 %v1969, %v1965
    %v2014 = vpack.c.b16 %v1970, %v1966
    %v2015 = vpack.c.b16 %v1971, %v1967
    %v2016 = vpack.c.b16 %v1972, %v1968
    %v2017 = vpack.c.b16 %v1977, %v1973
    %v2018 = vpack.c.b16 %v1978, %v1974
    %v2019 = vpack.c.b16 %v1979, %v1975
    %v2020 = vpack.c.b16 %v1980, %v1976
    %v2021 = vpack.c.b16 %v1985, %v1981
    %v2022 = vpack.c.b16 %v1986, %v1982
    %v2023 = vpack.c.b16 %v1987, %v1983
    %v2024 = vpack.c.b16 %v1988, %v1984
    %v2025 = vpack.c.b16 %v1993, %v1989
    %v2026 = vpack.c.b16 %v1994, %v1990
    %v2027 = vpack.c.b16 %v1995, %v1991
    %v2028 = vpack.c.b16 %v1996, %v1992
    %2061 = vmatprep.subr.bf16.mxu0 %v1998
    %2062 = vmatpush1.bf16.msra.mxu0 %v1997
    %2063 = vmatprep.subr.bf16.mxu0 %v2002
    %2064 = vmatpush1.bf16.msra.mxu0 %v2001
    %2065 = vmatprep.subr.bf16.mxu0 %v2006
    %2066 = vmatpush1.bf16.msra.mxu0 %v2005
    %2067 = vmatprep.subr.bf16.mxu0 %v2010
    %2068 = vmatpush1.bf16.msra.mxu0 %v2009
    %2069 = vmatprep.subr.bf16.mxu0 %v2014
    %2070 = vmatpush1.bf16.msra.mxu0 %v2013
    %2071 = vmatprep.subr.bf16.mxu0 %v2018
    %2072 = vmatpush1.bf16.msra.mxu0 %v2017
    %2073 = vmatprep.subr.bf16.mxu0 %v2022
    %2074 = vmatpush1.bf16.msra.mxu0 %v2021
    %2075 = vmatprep.subr.bf16.mxu0 %v2026
    %2076 = vmatpush1.bf16.msra.mxu0 %v2025
    %2077 = vmatprep.subr.bf16.mxu0 0
    %2078 = vmatpush1.bf16.msra.mxu0 0
    %2079 = vmatprep.subr.bf16.mxu0 0
    %2080 = vmatpush1.bf16.msra.mxu0 0
    %2081 = vmatprep.subr.bf16.mxu0 0
    %2082 = vmatpush1.bf16.msra.mxu0 0
    %2083 = vmatprep.subr.bf16.mxu0 0
    %2084 = vmatpush1.bf16.msra.mxu0 0
    %2085 = vmatprep.subr.bf16.mxu0 0
    %2086 = vmatpush1.bf16.msra.mxu0 0
    %2087 = vmatprep.subr.bf16.mxu0 0
    %2088 = vmatpush1.bf16.msra.mxu0 0
    %2089 = vmatprep.subr.bf16.mxu0 0
    %2090 = vmatpush1.bf16.msra.mxu0 0
    %2091 = vmatprep.subr.bf16.mxu0 0
    %2092 = vmatpush1.bf16.msra.mxu0 0
    %2093 = vmatprep.mubr.bf16.mxu0 0
    %2094 = vmatmul.mubr.bf16.gmra.mrb[0].mxu0 %v1868
    %v2095 = vpop.f32.mrb[0].mxu0
    %v2096 = vadd.f32 0.0, %v2095
    %v2097 = vpop.f32.mrb[0].mxu0
    %v2098 = vadd.f32 0.0, %v2097
    %v2099 = vpop.f32.mrb[0].mxu0
    %v2100 = vpop.f32.mrb[0].mxu0
    %2101 = vdwg.mxu0
    %2102 = vmatprep.subr.bf16.mxu0 %v2000
    %2103 = vmatpush1.bf16.msra.mxu0 %v1999
    %2104 = vmatprep.subr.bf16.mxu0 %v2004
    %2105 = vmatpush1.bf16.msra.mxu0 %v2003
    %2106 = vmatprep.subr.bf16.mxu0 %v2008
    %2107 = vmatpush1.bf16.msra.mxu0 %v2007
    %2108 = vmatprep.subr.bf16.mxu0 %v2012
    %2109 = vmatpush1.bf16.msra.mxu0 %v2011
    %2110 = vmatprep.subr.bf16.mxu0 %v2016
    %2111 = vmatpush1.bf16.msra.mxu0 %v2015
    %2112 = vmatprep.subr.bf16.mxu0 %v2020
    %2113 = vmatpush1.bf16.msra.mxu0 %v2019
    %2114 = vmatprep.subr.bf16.mxu0 %v2024
    %2115 = vmatpush1.bf16.msra.mxu0 %v2023
    %2116 = vmatprep.subr.bf16.mxu0 %v2028
    %2117 = vmatpush1.bf16.msra.mxu0 %v2027
    %2118 = vmatprep.subr.bf16.mxu0 0
    %2119 = vmatpush1.bf16.msra.mxu0 0
    %2120 = vmatprep.subr.bf16.mxu0 0
    %2121 = vmatpush1.bf16.msra.mxu0 0
    %2122 = vmatprep.subr.bf16.mxu0 0
    %2123 = vmatpush1.bf16.msra.mxu0 0
    %2124 = vmatprep.subr.bf16.mxu0 0
    %2125 = vmatpush1.bf16.msra.mxu0 0
    %2126 = vmatprep.subr.bf16.mxu0 0
    %2127 = vmatpush1.bf16.msra.mxu0 0
    %2128 = vmatprep.subr.bf16.mxu0 0
    %2129 = vmatpush1.bf16.msra.mxu0 0
    %2130 = vmatprep.subr.bf16.mxu0 0
    %2131 = vmatpush1.bf16.msra.mxu0 0
    %2132 = vmatprep.subr.bf16.mxu0 0
    %2133 = vmatpush1.bf16.msra.mxu0 0
    %2134 = vmatprep.mubr.bf16.mxu0 0
    %2135 = vmatmul.mubr.bf16.gmra.mrb[0].mxu0 %v1868
    %v2136 = vpop.f32.mrb[0].mxu0
    %v2137 = vadd.f32 0.0, %v2136
    %v2138 = vpop.f32.mrb[0].mxu0
    %v2139 = vadd.f32 0.0, %v2138
    %v2140 = vpop.f32.mrb[0].mxu0
    %v2141 = vpop.f32.mrb[0].mxu0
    %2142 = vdwg.mxu0
    %v2143 = vadd.f32 %v1864, %v2096
    %v2144 = vadd.f32 %v1865, %v2098
    %v2145 = vadd.f32 %v1866, %v2137
    %v2146 = vadd.f32 %v1867, %v2139
    %v2147 = vxor.u32 %v2143, 2147483648
    %v2148 = vxor.u32 %v2144, 2147483648
    %v2149 = vxor.u32 %v2145, 2147483648
    %v2150 = vmul.f32 %v2147, 1.442695
    %v2151 = vpow.pop %v2150
    %v2152 = vmul.f32 %v2148, 1.442695
    %v2153 = vpow.pop %v2152
    %v2154 = vmul.f32 %v2149, 1.442695
    %v2155 = vpow.pop %v2154
    %v2156 = vadd.f32 %v2151, 1.0
    %v2157 = vadd.f32 %v2153, 1.0
    %v2158 = vadd.f32 %v2155, 1.0
    %v2159 = vrcp.pop %v2156
    %v2160 = vmul.f32 1.0, %v2159
    %v2161 = vrcp.pop %v2157
    %v2162 = vmul.f32 1.0, %v2161
    %v2163 = vrcp.pop %v2158
    %v2164 = vmul.f32 1.0, %v2163
    %v2165 = vtanh.pop %v2146
    %v2166 = vmul.f32 %v2162, %v1858
    %v2167 = vmul.f32 %v2160, %v2165
    %v2168 = vadd.f32 %v2166, %v2167
    %v2169 = vtanh.pop %v2168
    %v2170 = vmul.f32 %v2164, %v2169
    %s2171 = scalar_lea.vmem [#allocation2], 40
    %2172 = vst [vmem:[%s2171] sm:$0xff] %v2170
    %v2173 = vld [vmem:[#allocation2] sm:$0xff]
    %v2174 = vld [vmem:[#allocation2 + $0x8] sm:$0xff]
    %v2175 = vld [vmem:[#allocation2 + $0x10] sm:$0xff]
    %v2176 = vld [vmem:[#allocation2 + $0x18] sm:$0xff]
    %v2177 = vld [vmem:[#allocation2 + $0x20] sm:$0xff]
    %v2178 = vld [vmem:[#allocation2 + $0x28] sm:$0xff]
    %v2179 = vpack.c.bf16 %v2174, %v2173
    %v2180 = vpack.c.bf16 %v2176, %v2175
    %v2181 = vpack.c.bf16 %v2178, %v2177
    %v2182 = vld [vmem:[#allocation7] sm:$0xff]
    %v2183 = vld [vmem:[#allocation7 + $0x8] sm:$0xff]
    %v2184 = vld [vmem:[#allocation7 + $0x10] sm:$0xff]
    %v2185 = vld [vmem:[#allocation7 + $0x18] sm:$0xff]
    %v2186 = vld [vmem:[#allocation7 + $0x20] sm:$0xff]
    %v2187 = vld [vmem:[#allocation7 + $0x28] sm:$0xff]
    %v2188 = vld [vmem:[#allocation7 + $0x30] sm:$0xff]
    %v2189 = vld [vmem:[#allocation7 + $0x38] sm:$0xff]
    %v2190 = vld [vmem:[#allocation7 + $0x40] sm:$0xff]
    %v2191 = vld [vmem:[#allocation7 + $0x48] sm:$0xff]
    %v2192 = vld [vmem:[#allocation7 + $0x50] sm:$0xff]
    %v2193 = vld [vmem:[#allocation7 + $0x58] sm:$0xff]
    %v2194 = vld [vmem:[#allocation7 + $0x60] sm:$0xff]
    %v2195 = vld [vmem:[#allocation7 + $0x68] sm:$0xff]
    %v2196 = vld [vmem:[#allocation7 + $0x70] sm:$0xff]
    %v2197 = vld [vmem:[#allocation7 + $0x78] sm:$0xff]
    %v2198 = vld [vmem:[#allocation7 + $0x80] sm:$0xff]
    %v2199 = vld [vmem:[#allocation7 + $0x88] sm:$0xff]
    %v2200 = vld [vmem:[#allocation7 + $0x90] sm:$0xff]
    %v2201 = vld [vmem:[#allocation7 + $0x98] sm:$0xff]
    %v2202 = vld [vmem:[#allocation7 + $0xa0] sm:$0xff]
    %v2203 = vld [vmem:[#allocation7 + $0xa8] sm:$0xff]
    %v2204 = vld [vmem:[#allocation7 + $0xb0] sm:$0xff]
    %v2205 = vld [vmem:[#allocation7 + $0xb8] sm:$0xff]
    %v2206 = vld [vmem:[#allocation7 + $0xc0] sm:$0xff]
    %v2207 = vld [vmem:[#allocation7 + $0xc8] sm:$0xff]
    %v2208 = vld [vmem:[#allocation7 + $0xd0] sm:$0xff]
    %v2209 = vld [vmem:[#allocation7 + $0xd8] sm:$0xff]
    %v2210 = vld [vmem:[#allocation7 + $0xe0] sm:$0xff]
    %v2211 = vld [vmem:[#allocation7 + $0xe8] sm:$0xff]
    %v2212 = vld [vmem:[#allocation7 + $0xf0] sm:$0xff]
    %v2213 = vld [vmem:[#allocation7 + $0xf8] sm:$0xff]
    %v2214 = vld [vmem:[%s6] sm:$0xf]
    %v2216 = vlaneseq
    %v2217 = vshrl.u32 %v2216, 7
    %v2218 = vsub.s32 0, %v2217
    %v2219 = vrot.slane %v2214, %v2218
    %v2220 = vlaneseq
    %v2221 = vshrl.u32 %v2220, 7
    %v2222 = vsub.s32 1, %v2221
    %v2223 = vrot.slane %v2214, %v2222
    %v2224 = vlaneseq
    %v2225 = vshrl.u32 %v2224, 7
    %v2226 = vsub.s32 2, %v2225
    %v2227 = vrot.slane %v2214, %v2226
    %v2228 = vlaneseq
    %v2229 = vshrl.u32 %v2228, 7
    %v2230 = vsub.s32 3, %v2229
    %v2231 = vrot.slane %v2214, %v2230
    %v2268 = vunpack.c.l.b16 %v2182
    %v2269 = vunpack.c.h.b16 %v2182
    %v2270 = vunpack.c.l.b16 %v2183
    %v2271 = vunpack.c.h.b16 %v2183
    %v2272 = vunpack.c.l.b16 %v2184
    %v2273 = vunpack.c.h.b16 %v2184
    %v2274 = vunpack.c.l.b16 %v2185
    %v2275 = vunpack.c.h.b16 %v2185
    %v2276 = vunpack.c.l.b16 %v2186
    %v2277 = vunpack.c.h.b16 %v2186
    %v2278 = vunpack.c.l.b16 %v2187
    %v2279 = vunpack.c.h.b16 %v2187
    %v2280 = vunpack.c.l.b16 %v2188
    %v2281 = vunpack.c.h.b16 %v2188
    %v2282 = vunpack.c.l.b16 %v2189
    %v2283 = vunpack.c.h.b16 %v2189
    %v2284 = vunpack.c.l.b16 %v2190
    %v2285 = vunpack.c.h.b16 %v2190
    %v2286 = vunpack.c.l.b16 %v2191
    %v2287 = vunpack.c.h.b16 %v2191
    %v2288 = vunpack.c.l.b16 %v2192
    %v2289 = vunpack.c.h.b16 %v2192
    %v2290 = vunpack.c.l.b16 %v2193
    %v2291 = vunpack.c.h.b16 %v2193
    %v2292 = vunpack.c.l.b16 %v2194
    %v2293 = vunpack.c.h.b16 %v2194
    %v2294 = vunpack.c.l.b16 %v2195
    %v2295 = vunpack.c.h.b16 %v2195
    %v2296 = vunpack.c.l.b16 %v2196
    %v2297 = vunpack.c.h.b16 %v2196
    %v2298 = vunpack.c.l.b16 %v2197
    %v2299 = vunpack.c.h.b16 %v2197
    %v2300 = vunpack.c.l.b16 %v2198
    %v2301 = vunpack.c.h.b16 %v2198
    %v2302 = vunpack.c.l.b16 %v2199
    %v2303 = vunpack.c.h.b16 %v2199
    %v2304 = vunpack.c.l.b16 %v2200
    %v2305 = vunpack.c.h.b16 %v2200
    %v2306 = vunpack.c.l.b16 %v2201
    %v2307 = vunpack.c.h.b16 %v2201
    %v2308 = vunpack.c.l.b16 %v2202
    %v2309 = vunpack.c.h.b16 %v2202
    %v2310 = vunpack.c.l.b16 %v2203
    %v2311 = vunpack.c.h.b16 %v2203
    %v2312 = vunpack.c.l.b16 %v2204
    %v2313 = vunpack.c.h.b16 %v2204
    %v2314 = vunpack.c.l.b16 %v2205
    %v2315 = vunpack.c.h.b16 %v2205
    %v2316 = vunpack.c.l.b16 %v2206
    %v2317 = vunpack.c.h.b16 %v2206
    %v2318 = vunpack.c.l.b16 %v2207
    %v2319 = vunpack.c.h.b16 %v2207
    %v2320 = vunpack.c.l.b16 %v2208
    %v2321 = vunpack.c.h.b16 %v2208
    %v2322 = vunpack.c.l.b16 %v2209
    %v2323 = vunpack.c.h.b16 %v2209
    %v2324 = vunpack.c.l.b16 %v2210
    %v2325 = vunpack.c.h.b16 %v2210
    %v2326 = vunpack.c.l.b16 %v2211
    %v2327 = vunpack.c.h.b16 %v2211
    %v2328 = vunpack.c.l.b16 %v2212
    %v2329 = vunpack.c.h.b16 %v2212
    %v2330 = vunpack.c.l.b16 %v2213
    %v2331 = vunpack.c.h.b16 %v2213
    %v2332 = vpack.c.b16 %v2272, %v2268
    %v2333 = vpack.c.b16 %v2273, %v2269
    %v2334 = vpack.c.b16 %v2274, %v2270
    %v2335 = vpack.c.b16 %v2275, %v2271
    %v2336 = vpack.c.b16 %v2280, %v2276
    %v2337 = vpack.c.b16 %v2281, %v2277
    %v2338 = vpack.c.b16 %v2282, %v2278
    %v2339 = vpack.c.b16 %v2283, %v2279
    %v2340 = vpack.c.b16 %v2288, %v2284
    %v2341 = vpack.c.b16 %v2289, %v2285
    %v2342 = vpack.c.b16 %v2290, %v2286
    %v2343 = vpack.c.b16 %v2291, %v2287
    %v2344 = vpack.c.b16 %v2296, %v2292
    %v2345 = vpack.c.b16 %v2297, %v2293
    %v2346 = vpack.c.b16 %v2298, %v2294
    %v2347 = vpack.c.b16 %v2299, %v2295
    %v2348 = vpack.c.b16 %v2304, %v2300
    %v2349 = vpack.c.b16 %v2305, %v2301
    %v2350 = vpack.c.b16 %v2306, %v2302
    %v2351 = vpack.c.b16 %v2307, %v2303
    %v2352 = vpack.c.b16 %v2312, %v2308
    %v2353 = vpack.c.b16 %v2313, %v2309
    %v2354 = vpack.c.b16 %v2314, %v2310
    %v2355 = vpack.c.b16 %v2315, %v2311
    %v2356 = vpack.c.b16 %v2320, %v2316
    %v2357 = vpack.c.b16 %v2321, %v2317
    %v2358 = vpack.c.b16 %v2322, %v2318
    %v2359 = vpack.c.b16 %v2323, %v2319
    %v2360 = vpack.c.b16 %v2328, %v2324
    %v2361 = vpack.c.b16 %v2329, %v2325
    %v2362 = vpack.c.b16 %v2330, %v2326
    %v2363 = vpack.c.b16 %v2331, %v2327
    %2396 = vmatprep.subr.bf16.mxu0 %v2333
    %2397 = vmatpush1.bf16.msra.mxu0 %v2332
    %2398 = vmatprep.subr.bf16.mxu0 %v2337
    %2399 = vmatpush1.bf16.msra.mxu0 %v2336
    %2400 = vmatprep.subr.bf16.mxu0 %v2341
    %2401 = vmatpush1.bf16.msra.mxu0 %v2340
    %2402 = vmatprep.subr.bf16.mxu0 %v2345
    %2403 = vmatpush1.bf16.msra.mxu0 %v2344
    %2404 = vmatprep.subr.bf16.mxu0 %v2349
    %2405 = vmatpush1.bf16.msra.mxu0 %v2348
    %2406 = vmatprep.subr.bf16.mxu0 %v2353
    %2407 = vmatpush1.bf16.msra.mxu0 %v2352
    %2408 = vmatprep.subr.bf16.mxu0 %v2357
    %2409 = vmatpush1.bf16.msra.mxu0 %v2356
    %2410 = vmatprep.subr.bf16.mxu0 %v2361
    %2411 = vmatpush1.bf16.msra.mxu0 %v2360
    %2412 = vmatprep.subr.bf16.mxu0 0
    %2413 = vmatpush1.bf16.msra.mxu0 0
    %2414 = vmatprep.subr.bf16.mxu0 0
    %2415 = vmatpush1.bf16.msra.mxu0 0
    %2416 = vmatprep.subr.bf16.mxu0 0
    %2417 = vmatpush1.bf16.msra.mxu0 0
    %2418 = vmatprep.subr.bf16.mxu0 0
    %2419 = vmatpush1.bf16.msra.mxu0 0
    %2420 = vmatprep.subr.bf16.mxu0 0
    %2421 = vmatpush1.bf16.msra.mxu0 0
    %2422 = vmatprep.subr.bf16.mxu0 0
    %2423 = vmatpush1.bf16.msra.mxu0 0
    %2424 = vmatprep.subr.bf16.mxu0 0
    %2425 = vmatpush1.bf16.msra.mxu0 0
    %2426 = vmatprep.subr.bf16.mxu0 0
    %2427 = vmatpush1.bf16.msra.mxu0 0
    %2428 = vmatprep.mubr.bf16.mxu0 0
    %2429 = vmatmul.mubr.bf16.gmra.mrb[0].mxu0 %v2179
    %v2430 = vpop.f32.mrb[0].mxu0
    %v2431 = vadd.f32 %v2219, %v2430
    %v2432 = vpop.f32.mrb[0].mxu0
    %v2433 = vadd.f32 %v2223, %v2432
    %v2434 = vpop.f32.mrb[0].mxu0
    %v2435 = vadd.f32 %v2219, %v2434
    %v2436 = vpop.f32.mrb[0].mxu0
    %v2437 = vadd.f32 %v2223, %v2436
    %2438 = vmatprep.mubr.bf16.mxu0 0
    %2439 = vmatmul.mubr.bf16.gmra.mrb[0].mxu0 %v2180
    %v2440 = vpop.f32.mrb[0].mxu0
    %v2441 = vadd.f32 %v2219, %v2440
    %v2442 = vpop.f32.mrb[0].mxu0
    %v2443 = vadd.f32 %v2223, %v2442
    %v2444 = vpop.f32.mrb[0].mxu0
    %v2445 = vadd.f32 %v2219, %v2444
    %v2446 = vpop.f32.mrb[0].mxu0
    %v2447 = vadd.f32 %v2223, %v2446
    %2448 = vmatprep.mubr.bf16.mxu0 0
    %2449 = vmatmul.mubr.bf16.gmra.mrb[0].mxu0 %v2181
    %v2450 = vpop.f32.mrb[0].mxu0
    %v2451 = vadd.f32 %v2219, %v2450
    %v2452 = vpop.f32.mrb[0].mxu0
    %v2453 = vadd.f32 %v2223, %v2452
    %v2454 = vpop.f32.mrb[0].mxu0
    %v2455 = vadd.f32 %v2219, %v2454
    %v2456 = vpop.f32.mrb[0].mxu0
    %v2457 = vadd.f32 %v2223, %v2456
    %2458 = vdwg.mxu0
    %2459 = vmatprep.subr.bf16.mxu0 %v2335
    %2460 = vmatpush1.bf16.msra.mxu0 %v2334
    %2461 = vmatprep.subr.bf16.mxu0 %v2339
    %2462 = vmatpush1.bf16.msra.mxu0 %v2338
    %2463 = vmatprep.subr.bf16.mxu0 %v2343
    %2464 = vmatpush1.bf16.msra.mxu0 %v2342
    %2465 = vmatprep.subr.bf16.mxu0 %v2347
    %2466 = vmatpush1.bf16.msra.mxu0 %v2346
    %2467 = vmatprep.subr.bf16.mxu0 %v2351
    %2468 = vmatpush1.bf16.msra.mxu0 %v2350
    %2469 = vmatprep.subr.bf16.mxu0 %v2355
    %2470 = vmatpush1.bf16.msra.mxu0 %v2354
    %2471 = vmatprep.subr.bf16.mxu0 %v2359
    %2472 = vmatpush1.bf16.msra.mxu0 %v2358
    %2473 = vmatprep.subr.bf16.mxu0 %v2363
    %2474 = vmatpush1.bf16.msra.mxu0 %v2362
    %2475 = vmatprep.subr.bf16.mxu0 0
    %2476 = vmatpush1.bf16.msra.mxu0 0
    %2477 = vmatprep.subr.bf16.mxu0 0
    %2478 = vmatpush1.bf16.msra.mxu0 0
    %2479 = vmatprep.subr.bf16.mxu0 0
    %2480 = vmatpush1.bf16.msra.mxu0 0
    %2481 = vmatprep.subr.bf16.mxu0 0
    %2482 = vmatpush1.bf16.msra.mxu0 0
    %2483 = vmatprep.subr.bf16.mxu0 0
    %2484 = vmatpush1.bf16.msra.mxu0 0
    %2485 = vmatprep.subr.bf16.mxu0 0
    %2486 = vmatpush1.bf16.msra.mxu0 0
    %2487 = vmatprep.subr.bf16.mxu0 0
    %2488 = vmatpush1.bf16.msra.mxu0 0
    %2489 = vmatprep.subr.bf16.mxu0 0
    %2490 = vmatpush1.bf16.msra.mxu0 0
    %2491 = vmatprep.mubr.bf16.mxu0 0
    %2492 = vmatmul.mubr.bf16.gmra.mrb[0].mxu0 %v2179
    %v2493 = vpop.f32.mrb[0].mxu0
    %v2494 = vadd.f32 %v2227, %v2493
    %v2495 = vpop.f32.mrb[0].mxu0
    %v2496 = vadd.f32 %v2231, %v2495
    %v2497 = vpop.f32.mrb[0].mxu0
    %v2498 = vadd.f32 %v2227, %v2497
    %v2499 = vpop.f32.mrb[0].mxu0
    %v2500 = vadd.f32 %v2231, %v2499
    %2501 = vmatprep.mubr.bf16.mxu0 0
    %2502 = vmatmul.mubr.bf16.gmra.mrb[0].mxu0 %v2180
    %v2503 = vpop.f32.mrb[0].mxu0
    %v2504 = vadd.f32 %v2227, %v2503
    %v2505 = vpop.f32.mrb[0].mxu0
    %v2506 = vadd.f32 %v2231, %v2505
    %v2507 = vpop.f32.mrb[0].mxu0
    %v2508 = vadd.f32 %v2227, %v2507
    %v2509 = vpop.f32.mrb[0].mxu0
    %v2510 = vadd.f32 %v2231, %v2509
    %2511 = vmatprep.mubr.bf16.mxu0 0
    %2512 = vmatmul.mubr.bf16.gmra.mrb[0].mxu0 %v2181
    %v2513 = vpop.f32.mrb[0].mxu0
    %v2514 = vadd.f32 %v2227, %v2513
    %v2515 = vpop.f32.mrb[0].mxu0
    %v2516 = vadd.f32 %v2231, %v2515
    %v2517 = vpop.f32.mrb[0].mxu0
    %v2518 = vadd.f32 %v2227, %v2517
    %v2519 = vpop.f32.mrb[0].mxu0
    %v2520 = vadd.f32 %v2231, %v2519
    %2521 = vdwg.mxu0
    %2522 = vst [vmem:[#allocation3] sm:$0xff] %v2431
    %2523 = vst [vmem:[#allocation3 + $0x8] sm:$0xff] %v2433
    %2524 = vst [vmem:[#allocation3 + $0x10] sm:$0xff] %v2494
    %2525 = vst [vmem:[#allocation3 + $0x18] sm:$0xff] %v2496
    %2526 = vst [vmem:[#allocation3 + $0x20] sm:$0xff] %v2435
    %2527 = vst [vmem:[#allocation3 + $0x28] sm:$0xff] %v2437
    %2528 = vst [vmem:[#allocation3 + $0x30] sm:$0xff] %v2498
    %2529 = vst [vmem:[#allocation3 + $0x38] sm:$0xff] %v2500
    %2530 = vst [vmem:[#allocation3 + $0x40] sm:$0xff] %v2441
    %2531 = vst [vmem:[#allocation3 + $0x48] sm:$0xff] %v2443
    %2532 = vst [vmem:[#allocation3 + $0x50] sm:$0xff] %v2504
    %2533 = vst [vmem:[#allocation3 + $0x58] sm:$0xff] %v2506
    %2534 = vst [vmem:[#allocation3 + $0x60] sm:$0xff] %v2445
    %2535 = vst [vmem:[#allocation3 + $0x68] sm:$0xff] %v2447
    %2536 = vst [vmem:[#allocation3 + $0x70] sm:$0xff] %v2508
    %2537 = vst [vmem:[#allocation3 + $0x78] sm:$0xff] %v2510
    %2538 = vst [vmem:[#allocation3 + $0x80] sm:$0xff] %v2451
    %2539 = vst [vmem:[#allocation3 + $0x88] sm:$0xff] %v2453
    %2540 = vst [vmem:[#allocation3 + $0x90] sm:$0xff] %v2514
    %2541 = vst [vmem:[#allocation3 + $0x98] sm:$0xff] %v2516
    %2542 = vst [vmem:[#allocation3 + $0xa0] sm:$0xff] %v2455
    %2543 = vst [vmem:[#allocation3 + $0xa8] sm:$0xff] %v2457
    %2544 = vst [vmem:[#allocation3 + $0xb0] sm:$0xff] %v2518
    %2545 = vst [vmem:[#allocation3 + $0xb8] sm:$0xff] %v2520
    %v2546 = vld [vmem:[#allocation3] sm:$0xff]
    %v2547 = vld [vmem:[#allocation3 + $0x8] sm:$0xff]
    %v2548 = vld [vmem:[#allocation3 + $0x10] sm:$0xff]
    %v2549 = vld [vmem:[#allocation3 + $0x18] sm:$0xff]
    %v2550 = vld [vmem:[#allocation9] sm:$0xff]
    %v2551 = vld [vmem:[#allocation9 + $0x8] sm:$0xff]
    %v2552 = vld [vmem:[#allocation9 + $0x10] sm:$0xff]
    %v2553 = vld [vmem:[#allocation9 + $0x18] sm:$0xff]
    %v2554 = vld [vmem:[#allocation9 + $0x20] sm:$0xff]
    %v2555 = vld [vmem:[#allocation9 + $0x28] sm:$0xff]
    %v2556 = vld [vmem:[#allocation9 + $0x30] sm:$0xff]
    %v2557 = vld [vmem:[#allocation9 + $0x38] sm:$0xff]
    %v2558 = vld [vmem:[#allocation9 + $0x40] sm:$0xff]
    %v2559 = vld [vmem:[#allocation9 + $0x48] sm:$0xff]
    %v2560 = vld [vmem:[#allocation9 + $0x50] sm:$0xff]
    %v2561 = vld [vmem:[#allocation9 + $0x58] sm:$0xff]
    %v2562 = vld [vmem:[#allocation9 + $0x60] sm:$0xff]
    %v2563 = vld [vmem:[#allocation9 + $0x68] sm:$0xff]
    %v2564 = vld [vmem:[#allocation9 + $0x70] sm:$0xff]
    %v2565 = vld [vmem:[#allocation9 + $0x78] sm:$0xff]
    %v2566 = vld [vmem:[#allocation9 + $0x80] sm:$0xff]
    %v2567 = vld [vmem:[#allocation9 + $0x88] sm:$0xff]
    %v2568 = vld [vmem:[#allocation9 + $0x90] sm:$0xff]
    %v2569 = vld [vmem:[#allocation9 + $0x98] sm:$0xff]
    %v2570 = vld [vmem:[#allocation9 + $0xa0] sm:$0xff]
    %v2571 = vld [vmem:[#allocation9 + $0xa8] sm:$0xff]
    %v2572 = vld [vmem:[#allocation9 + $0xb0] sm:$0xff]
    %v2573 = vld [vmem:[#allocation9 + $0xb8] sm:$0xff]
    %v2574 = vld [vmem:[#allocation9 + $0xc0] sm:$0xff]
    %v2575 = vld [vmem:[#allocation9 + $0xc8] sm:$0xff]
    %v2576 = vld [vmem:[#allocation9 + $0xd0] sm:$0xff]
    %v2577 = vld [vmem:[#allocation9 + $0xd8] sm:$0xff]
    %v2578 = vld [vmem:[#allocation9 + $0xe0] sm:$0xff]
    %v2579 = vld [vmem:[#allocation9 + $0xe8] sm:$0xff]
    %v2580 = vld [vmem:[#allocation9 + $0xf0] sm:$0xff]
    %v2581 = vld [vmem:[#allocation9 + $0xf8] sm:$0xff]
    %v2614 = vunpack.c.l.b16 %v2550
    %v2615 = vunpack.c.h.b16 %v2550
    %v2616 = vunpack.c.l.b16 %v2551
    %v2617 = vunpack.c.h.b16 %v2551
    %v2618 = vunpack.c.l.b16 %v2552
    %v2619 = vunpack.c.h.b16 %v2552
    %v2620 = vunpack.c.l.b16 %v2553
    %v2621 = vunpack.c.h.b16 %v2553
    %v2622 = vunpack.c.l.b16 %v2554
    %v2623 = vunpack.c.h.b16 %v2554
    %v2624 = vunpack.c.l.b16 %v2555
    %v2625 = vunpack.c.h.b16 %v2555
    %v2626 = vunpack.c.l.b16 %v2556
    %v2627 = vunpack.c.h.b16 %v2556
    %v2628 = vunpack.c.l.b16 %v2557
    %v2629 = vunpack.c.h.b16 %v2557
    %v2630 = vunpack.c.l.b16 %v2558
    %v2631 = vunpack.c.h.b16 %v2558
    %v2632 = vunpack.c.l.b16 %v2559
    %v2633 = vunpack.c.h.b16 %v2559
    %v2634 = vunpack.c.l.b16 %v2560
    %v2635 = vunpack.c.h.b16 %v2560
    %v2636 = vunpack.c.l.b16 %v2561
    %v2637 = vunpack.c.h.b16 %v2561
    %v2638 = vunpack.c.l.b16 %v2562
    %v2639 = vunpack.c.h.b16 %v2562
    %v2640 = vunpack.c.l.b16 %v2563
    %v2641 = vunpack.c.h.b16 %v2563
    %v2642 = vunpack.c.l.b16 %v2564
    %v2643 = vunpack.c.h.b16 %v2564
    %v2644 = vunpack.c.l.b16 %v2565
    %v2645 = vunpack.c.h.b16 %v2565
    %v2646 = vunpack.c.l.b16 %v2566
    %v2647 = vunpack.c.h.b16 %v2566
    %v2648 = vunpack.c.l.b16 %v2567
    %v2649 = vunpack.c.h.b16 %v2567
    %v2650 = vunpack.c.l.b16 %v2568
    %v2651 = vunpack.c.h.b16 %v2568
    %v2652 = vunpack.c.l.b16 %v2569
    %v2653 = vunpack.c.h.b16 %v2569
    %v2654 = vunpack.c.l.b16 %v2570
    %v2655 = vunpack.c.h.b16 %v2570
    %v2656 = vunpack.c.l.b16 %v2571
    %v2657 = vunpack.c.h.b16 %v2571
    %v2658 = vunpack.c.l.b16 %v2572
    %v2659 = vunpack.c.h.b16 %v2572
    %v2660 = vunpack.c.l.b16 %v2573
    %v2661 = vunpack.c.h.b16 %v2573
    %v2662 = vunpack.c.l.b16 %v2574
    %v2663 = vunpack.c.h.b16 %v2574
    %v2664 = vunpack.c.l.b16 %v2575
    %v2665 = vunpack.c.h.b16 %v2575
    %v2666 = vunpack.c.l.b16 %v2576
    %v2667 = vunpack.c.h.b16 %v2576
    %v2668 = vunpack.c.l.b16 %v2577
    %v2669 = vunpack.c.h.b16 %v2577
    %v2670 = vunpack.c.l.b16 %v2578
    %v2671 = vunpack.c.h.b16 %v2578
    %v2672 = vunpack.c.l.b16 %v2579
    %v2673 = vunpack.c.h.b16 %v2579
    %v2674 = vunpack.c.l.b16 %v2580
    %v2675 = vunpack.c.h.b16 %v2580
    %v2676 = vunpack.c.l.b16 %v2581
    %v2677 = vunpack.c.h.b16 %v2581
    %v2678 = vpack.c.b16 %v2618, %v2614
    %v2679 = vpack.c.b16 %v2619, %v2615
    %v2680 = vpack.c.b16 %v2620, %v2616
    %v2681 = vpack.c.b16 %v2621, %v2617
    %v2682 = vpack.c.b16 %v2626, %v2622
    %v2683 = vpack.c.b16 %v2627, %v2623
    %v2684 = vpack.c.b16 %v2628, %v2624
    %v2685 = vpack.c.b16 %v2629, %v2625
    %v2686 = vpack.c.b16 %v2634, %v2630
    %v2687 = vpack.c.b16 %v2635, %v2631
    %v2688 = vpack.c.b16 %v2636, %v2632
    %v2689 = vpack.c.b16 %v2637, %v2633
    %v2690 = vpack.c.b16 %v2642, %v2638
    %v2691 = vpack.c.b16 %v2643, %v2639
    %v2692 = vpack.c.b16 %v2644, %v2640
    %v2693 = vpack.c.b16 %v2645, %v2641
    %v2694 = vpack.c.b16 %v2650, %v2646
    %v2695 = vpack.c.b16 %v2651, %v2647
    %v2696 = vpack.c.b16 %v2652, %v2648
    %v2697 = vpack.c.b16 %v2653, %v2649
    %v2698 = vpack.c.b16 %v2658, %v2654
    %v2699 = vpack.c.b16 %v2659, %v2655
    %v2700 = vpack.c.b16 %v2660, %v2656
    %v2701 = vpack.c.b16 %v2661, %v2657
    %v2702 = vpack.c.b16 %v2666, %v2662
    %v2703 = vpack.c.b16 %v2667, %v2663
    %v2704 = vpack.c.b16 %v2668, %v2664
    %v2705 = vpack.c.b16 %v2669, %v2665
    %v2706 = vpack.c.b16 %v2674, %v2670
    %v2707 = vpack.c.b16 %v2675, %v2671
    %v2708 = vpack.c.b16 %v2676, %v2672
    %v2709 = vpack.c.b16 %v2677, %v2673
    %2742 = vmatprep.subr.bf16.mxu0 %v2679
    %2743 = vmatpush1.bf16.msra.mxu0 %v2678
    %2744 = vmatprep.subr.bf16.mxu0 %v2683
    %2745 = vmatpush1.bf16.msra.mxu0 %v2682
    %2746 = vmatprep.subr.bf16.mxu0 %v2687
    %2747 = vmatpush1.bf16.msra.mxu0 %v2686
    %2748 = vmatprep.subr.bf16.mxu0 %v2691
    %2749 = vmatpush1.bf16.msra.mxu0 %v2690
    %2750 = vmatprep.subr.bf16.mxu0 %v2695
    %2751 = vmatpush1.bf16.msra.mxu0 %v2694
    %2752 = vmatprep.subr.bf16.mxu0 %v2699
    %2753 = vmatpush1.bf16.msra.mxu0 %v2698
    %2754 = vmatprep.subr.bf16.mxu0 %v2703
    %2755 = vmatpush1.bf16.msra.mxu0 %v2702
    %2756 = vmatprep.subr.bf16.mxu0 %v2707
    %2757 = vmatpush1.bf16.msra.mxu0 %v2706
    %2758 = vmatprep.subr.bf16.mxu0 0
    %2759 = vmatpush1.bf16.msra.mxu0 0
    %2760 = vmatprep.subr.bf16.mxu0 0
    %2761 = vmatpush1.bf16.msra.mxu0 0
    %2762 = vmatprep.subr.bf16.mxu0 0
    %2763 = vmatpush1.bf16.msra.mxu0 0
    %2764 = vmatprep.subr.bf16.mxu0 0
    %2765 = vmatpush1.bf16.msra.mxu0 0
    %2766 = vmatprep.subr.bf16.mxu0 0
    %2767 = vmatpush1.bf16.msra.mxu0 0
    %2768 = vmatprep.subr.bf16.mxu0 0
    %2769 = vmatpush1.bf16.msra.mxu0 0
    %2770 = vmatprep.subr.bf16.mxu0 0
    %2771 = vmatpush1.bf16.msra.mxu0 0
    %2772 = vmatprep.subr.bf16.mxu0 0
    %2773 = vmatpush1.bf16.msra.mxu0 0
    %2774 = vmatprep.mubr.bf16.mxu0 0
    %2775 = vmatmul.mubr.bf16.gmra.mrb[0].mxu0 0
    %v2776 = vpop.f32.mrb[0].mxu0
    %v2777 = vadd.f32 0.0, %v2776
    %v2778 = vpop.f32.mrb[0].mxu0
    %v2779 = vadd.f32 0.0, %v2778
    %v2780 = vpop.f32.mrb[0].mxu0
    %v2781 = vpop.f32.mrb[0].mxu0
    %2782 = vdwg.mxu0
    %2783 = vmatprep.subr.bf16.mxu0 %v2681
    %2784 = vmatpush1.bf16.msra.mxu0 %v2680
    %2785 = vmatprep.subr.bf16.mxu0 %v2685
    %2786 = vmatpush1.bf16.msra.mxu0 %v2684
    %2787 = vmatprep.subr.bf16.mxu0 %v2689
    %2788 = vmatpush1.bf16.msra.mxu0 %v2688
    %2789 = vmatprep.subr.bf16.mxu0 %v2693
    %2790 = vmatpush1.bf16.msra.mxu0 %v2692
    %2791 = vmatprep.subr.bf16.mxu0 %v2697
    %2792 = vmatpush1.bf16.msra.mxu0 %v2696
    %2793 = vmatprep.subr.bf16.mxu0 %v2701
    %2794 = vmatpush1.bf16.msra.mxu0 %v2700
    %2795 = vmatprep.subr.bf16.mxu0 %v2705
    %2796 = vmatpush1.bf16.msra.mxu0 %v2704
    %2797 = vmatprep.subr.bf16.mxu0 %v2709
    %2798 = vmatpush1.bf16.msra.mxu0 %v2708
    %2799 = vmatprep.subr.bf16.mxu0 0
    %2800 = vmatpush1.bf16.msra.mxu0 0
    %2801 = vmatprep.subr.bf16.mxu0 0
    %2802 = vmatpush1.bf16.msra.mxu0 0
    %2803 = vmatprep.subr.bf16.mxu0 0
    %2804 = vmatpush1.bf16.msra.mxu0 0
    %2805 = vmatprep.subr.bf16.mxu0 0
    %2806 = vmatpush1.bf16.msra.mxu0 0
    %2807 = vmatprep.subr.bf16.mxu0 0
    %2808 = vmatpush1.bf16.msra.mxu0 0
    %2809 = vmatprep.subr.bf16.mxu0 0
    %2810 = vmatpush1.bf16.msra.mxu0 0
    %2811 = vmatprep.subr.bf16.mxu0 0
    %2812 = vmatpush1.bf16.msra.mxu0 0
    %2813 = vmatprep.subr.bf16.mxu0 0
    %2814 = vmatpush1.bf16.msra.mxu0 0
    %2815 = vmatprep.mubr.bf16.mxu0 0
    %2816 = vmatmul.mubr.bf16.gmra.mrb[0].mxu0 0
    %v2817 = vpop.f32.mrb[0].mxu0
    %v2818 = vadd.f32 0.0, %v2817
    %v2819 = vpop.f32.mrb[0].mxu0
    %v2820 = vadd.f32 0.0, %v2819
    %v2821 = vpop.f32.mrb[0].mxu0
    %v2822 = vpop.f32.mrb[0].mxu0
    %2823 = vdwg.mxu0
    %v2824 = vadd.f32 %v2546, %v2777
    %v2825 = vadd.f32 %v2547, %v2779
    %v2826 = vadd.f32 %v2548, %v2818
    %v2827 = vadd.f32 %v2549, %v2820
    %v2828 = vxor.u32 %v2824, 2147483648
    %v2829 = vxor.u32 %v2825, 2147483648
    %v2830 = vxor.u32 %v2826, 2147483648
    %v2831 = vmul.f32 %v2828, 1.442695
    %v2832 = vpow.pop %v2831
    %v2833 = vmul.f32 %v2829, 1.442695
    %v2834 = vpow.pop %v2833
    %v2835 = vmul.f32 %v2830, 1.442695
    %v2836 = vpow.pop %v2835
    %v2837 = vadd.f32 %v2832, 1.0
    %v2838 = vadd.f32 %v2834, 1.0
    %v2839 = vadd.f32 %v2836, 1.0
    %v2840 = vrcp.pop %v2837
    %v2841 = vmul.f32 1.0, %v2840
    %v2842 = vrcp.pop %v2838
    %v2843 = vmul.f32 1.0, %v2842
    %v2844 = vrcp.pop %v2839
    %v2845 = vmul.f32 1.0, %v2844
    %v2846 = vtanh.pop %v2827
    %v2847 = vmul.f32 %v2843, 0.0
    %v2848 = vmul.f32 %v2841, %v2846
    %v2849 = vadd.f32 %v2847, %v2848
    %v2850 = vtanh.pop %v2849
    %v2851 = vmul.f32 %v2845, %v2850
    %v2852 = vld [vmem:[%s623] sm:$0xff]
    %v2853 = vld [vmem:[%s623 + $0x8] sm:$0xff]
    %v2854 = vld [vmem:[%s623 + $0x10] sm:$0xff]
    %v2855 = vld [vmem:[%s623 + $0x18] sm:$0xff]
    %v2856 = vpack.c.bf16 %v2851, %v2851
    %2857 = vmatprep.subr.bf16.mxu0 %v2679
    %2858 = vmatpush1.bf16.msra.mxu0 %v2678
    %2859 = vmatprep.subr.bf16.mxu0 %v2683
    %2860 = vmatpush1.bf16.msra.mxu0 %v2682
    %2861 = vmatprep.subr.bf16.mxu0 %v2687
    %2862 = vmatpush1.bf16.msra.mxu0 %v2686
    %2863 = vmatprep.subr.bf16.mxu0 %v2691
    %2864 = vmatpush1.bf16.msra.mxu0 %v2690
    %2865 = vmatprep.subr.bf16.mxu0 %v2695
    %2866 = vmatpush1.bf16.msra.mxu0 %v2694
    %2867 = vmatprep.subr.bf16.mxu0 %v2699
    %2868 = vmatpush1.bf16.msra.mxu0 %v2698
    %2869 = vmatprep.subr.bf16.mxu0 %v2703
    %2870 = vmatpush1.bf16.msra.mxu0 %v2702
    %2871 = vmatprep.subr.bf16.mxu0 %v2707
    %2872 = vmatpush1.bf16.msra.mxu0 %v2706
    %2873 = vmatprep.subr.bf16.mxu0 0
    %2874 = vmatpush1.bf16.msra.mxu0 0
    %2875 = vmatprep.subr.bf16.mxu0 0
    %2876 = vmatpush1.bf16.msra.mxu0 0
    %2877 = vmatprep.subr.bf16.mxu0 0
    %2878 = vmatpush1.bf16.msra.mxu0 0
    %2879 = vmatprep.subr.bf16.mxu0 0
    %2880 = vmatpush1.bf16.msra.mxu0 0
    %2881 = vmatprep.subr.bf16.mxu0 0
    %2882 = vmatpush1.bf16.msra.mxu0 0
    %2883 = vmatprep.subr.bf16.mxu0 0
    %2884 = vmatpush1.bf16.msra.mxu0 0
    %2885 = vmatprep.subr.bf16.mxu0 0
    %2886 = vmatpush1.bf16.msra.mxu0 0
    %2887 = vmatprep.subr.bf16.mxu0 0
    %2888 = vmatpush1.bf16.msra.mxu0 0
    %2889 = vmatprep.mubr.bf16.mxu0 0
    %2890 = vmatmul.mubr.bf16.gmra.mrb[0].mxu0 %v2856
    %v2891 = vpop.f32.mrb[0].mxu0
    %v2892 = vadd.f32 0.0, %v2891
    %v2893 = vpop.f32.mrb[0].mxu0
    %v2894 = vadd.f32 0.0, %v2893
    %v2895 = vpop.f32.mrb[0].mxu0
    %v2896 = vpop.f32.mrb[0].mxu0
    %2897 = vdwg.mxu0
    %2898 = vmatprep.subr.bf16.mxu0 %v2681
    %2899 = vmatpush1.bf16.msra.mxu0 %v2680
    %2900 = vmatprep.subr.bf16.mxu0 %v2685
    %2901 = vmatpush1.bf16.msra.mxu0 %v2684
    %2902 = vmatprep.subr.bf16.mxu0 %v2689
    %2903 = vmatpush1.bf16.msra.mxu0 %v2688
    %2904 = vmatprep.subr.bf16.mxu0 %v2693
    %2905 = vmatpush1.bf16.msra.mxu0 %v2692
    %2906 = vmatprep.subr.bf16.mxu0 %v2697
    %2907 = vmatpush1.bf16.msra.mxu0 %v2696
    %2908 = vmatprep.subr.bf16.mxu0 %v2701
    %2909 = vmatpush1.bf16.msra.mxu0 %v2700
    %2910 = vmatprep.subr.bf16.mxu0 %v2705
    %2911 = vmatpush1.bf16.msra.mxu0 %v2704
    %2912 = vmatprep.subr.bf16.mxu0 %v2709
    %2913 = vmatpush1.bf16.msra.mxu0 %v2708
    %2914 = vmatprep.subr.bf16.mxu0 0
    %2915 = vmatpush1.bf16.msra.mxu0 0
    %2916 = vmatprep.subr.bf16.mxu0 0
    %2917 = vmatpush1.bf16.msra.mxu0 0
    %2918 = vmatprep.subr.bf16.mxu0 0
    %2919 = vmatpush1.bf16.msra.mxu0 0
    %2920 = vmatprep.subr.bf16.mxu0 0
    %2921 = vmatpush1.bf16.msra.mxu0 0
    %2922 = vmatprep.subr.bf16.mxu0 0
    %2923 = vmatpush1.bf16.msra.mxu0 0
    %2924 = vmatprep.subr.bf16.mxu0 0
    %2925 = vmatpush1.bf16.msra.mxu0 0
    %2926 = vmatprep.subr.bf16.mxu0 0
    %2927 = vmatpush1.bf16.msra.mxu0 0
    %2928 = vmatprep.subr.bf16.mxu0 0
    %2929 = vmatpush1.bf16.msra.mxu0 0
    %2930 = vmatprep.mubr.bf16.mxu0 0
    %2931 = vmatmul.mubr.bf16.gmra.mrb[0].mxu0 %v2856
    %v2932 = vpop.f32.mrb[0].mxu0
    %v2933 = vadd.f32 0.0, %v2932
    %v2934 = vpop.f32.mrb[0].mxu0
    %v2935 = vadd.f32 0.0, %v2934
    %v2936 = vpop.f32.mrb[0].mxu0
    %v2937 = vpop.f32.mrb[0].mxu0
    %2938 = vdwg.mxu0
    %v2939 = vadd.f32 %v2852, %v2892
    %v2940 = vadd.f32 %v2853, %v2894
    %v2941 = vadd.f32 %v2854, %v2933
    %v2942 = vadd.f32 %v2855, %v2935
    %v2943 = vxor.u32 %v2939, 2147483648
    %v2944 = vxor.u32 %v2940, 2147483648
    %v2945 = vxor.u32 %v2941, 2147483648
    %v2946 = vmul.f32 %v2943, 1.442695
    %v2947 = vpow.pop %v2946
    %v2948 = vmul.f32 %v2944, 1.442695
    %v2949 = vpow.pop %v2948
    %v2950 = vmul.f32 %v2945, 1.442695
    %v2951 = vpow.pop %v2950
    %v2952 = vadd.f32 %v2947, 1.0
    %v2953 = vadd.f32 %v2949, 1.0
    %v2954 = vadd.f32 %v2951, 1.0
    %v2955 = vrcp.pop %v2952
    %v2956 = vmul.f32 1.0, %v2955
    %v2957 = vrcp.pop %v2953
    %v2958 = vmul.f32 1.0, %v2957
    %v2959 = vrcp.pop %v2954
    %v2960 = vmul.f32 1.0, %v2959
    %v2961 = vtanh.pop %v2942
    %v2962 = vmul.f32 %v2958, %v2849
    %v2963 = vmul.f32 %v2956, %v2961
    %v2964 = vadd.f32 %v2962, %v2963
    %v2965 = vtanh.pop %v2964
    %v2966 = vmul.f32 %v2960, %v2965
    %v2967 = vld [vmem:[%s933] sm:$0xff]
    %v2968 = vld [vmem:[%s933 + $0x8] sm:$0xff]
    %v2969 = vld [vmem:[%s933 + $0x10] sm:$0xff]
    %v2970 = vld [vmem:[%s933 + $0x18] sm:$0xff]
    %v2971 = vpack.c.bf16 %v2966, %v2966
    %2972 = vmatprep.subr.bf16.mxu0 %v2679
    %2973 = vmatpush1.bf16.msra.mxu0 %v2678
    %2974 = vmatprep.subr.bf16.mxu0 %v2683
    %2975 = vmatpush1.bf16.msra.mxu0 %v2682
    %2976 = vmatprep.subr.bf16.mxu0 %v2687
    %2977 = vmatpush1.bf16.msra.mxu0 %v2686
    %2978 = vmatprep.subr.bf16.mxu0 %v2691
    %2979 = vmatpush1.bf16.msra.mxu0 %v2690
    %2980 = vmatprep.subr.bf16.mxu0 %v2695
    %2981 = vmatpush1.bf16.msra.mxu0 %v2694
    %2982 = vmatprep.subr.bf16.mxu0 %v2699
    %2983 = vmatpush1.bf16.msra.mxu0 %v2698
    %2984 = vmatprep.subr.bf16.mxu0 %v2703
    %2985 = vmatpush1.bf16.msra.mxu0 %v2702
    %2986 = vmatprep.subr.bf16.mxu0 %v2707
    %2987 = vmatpush1.bf16.msra.mxu0 %v2706
    %2988 = vmatprep.subr.bf16.mxu0 0
    %2989 = vmatpush1.bf16.msra.mxu0 0
    %2990 = vmatprep.subr.bf16.mxu0 0
    %2991 = vmatpush1.bf16.msra.mxu0 0
    %2992 = vmatprep.subr.bf16.mxu0 0
    %2993 = vmatpush1.bf16.msra.mxu0 0
    %2994 = vmatprep.subr.bf16.mxu0 0
    %2995 = vmatpush1.bf16.msra.mxu0 0
    %2996 = vmatprep.subr.bf16.mxu0 0
    %2997 = vmatpush1.bf16.msra.mxu0 0
    %2998 = vmatprep.subr.bf16.mxu0 0
    %2999 = vmatpush1.bf16.msra.mxu0 0
    %3000 = vmatprep.subr.bf16.mxu0 0
    %3001 = vmatpush1.bf16.msra.mxu0 0
    %3002 = vmatprep.subr.bf16.mxu0 0
    %3003 = vmatpush1.bf16.msra.mxu0 0
    %3004 = vmatprep.mubr.bf16.mxu0 0
    %3005 = vmatmul.mubr.bf16.gmra.mrb[0].mxu0 %v2971
    %v3006 = vpop.f32.mrb[0].mxu0
    %v3007 = vadd.f32 0.0, %v3006
    %v3008 = vpop.f32.mrb[0].mxu0
    %v3009 = vadd.f32 0.0, %v3008
    %v3010 = vpop.f32.mrb[0].mxu0
    %v3011 = vpop.f32.mrb[0].mxu0
    %3012 = vdwg.mxu0
    %3013 = vmatprep.subr.bf16.mxu0 %v2681
    %3014 = vmatpush1.bf16.msra.mxu0 %v2680
    %3015 = vmatprep.subr.bf16.mxu0 %v2685
    %3016 = vmatpush1.bf16.msra.mxu0 %v2684
    %3017 = vmatprep.subr.bf16.mxu0 %v2689
    %3018 = vmatpush1.bf16.msra.mxu0 %v2688
    %3019 = vmatprep.subr.bf16.mxu0 %v2693
    %3020 = vmatpush1.bf16.msra.mxu0 %v2692
    %3021 = vmatprep.subr.bf16.mxu0 %v2697
    %3022 = vmatpush1.bf16.msra.mxu0 %v2696
    %3023 = vmatprep.subr.bf16.mxu0 %v2701
    %3024 = vmatpush1.bf16.msra.mxu0 %v2700
    %3025 = vmatprep.subr.bf16.mxu0 %v2705
    %3026 = vmatpush1.bf16.msra.mxu0 %v2704
    %3027 = vmatprep.subr.bf16.mxu0 %v2709
    %3028 = vmatpush1.bf16.msra.mxu0 %v2708
    %3029 = vmatprep.subr.bf16.mxu0 0
    %3030 = vmatpush1.bf16.msra.mxu0 0
    %3031 = vmatprep.subr.bf16.mxu0 0
    %3032 = vmatpush1.bf16.msra.mxu0 0
    %3033 = vmatprep.subr.bf16.mxu0 0
    %3034 = vmatpush1.bf16.msra.mxu0 0
    %3035 = vmatprep.subr.bf16.mxu0 0
    %3036 = vmatpush1.bf16.msra.mxu0 0
    %3037 = vmatprep.subr.bf16.mxu0 0
    %3038 = vmatpush1.bf16.msra.mxu0 0
    %3039 = vmatprep.subr.bf16.mxu0 0
    %3040 = vmatpush1.bf16.msra.mxu0 0
    %3041 = vmatprep.subr.bf16.mxu0 0
    %3042 = vmatpush1.bf16.msra.mxu0 0
    %3043 = vmatprep.subr.bf16.mxu0 0
    %3044 = vmatpush1.bf16.msra.mxu0 0
    %3045 = vmatprep.mubr.bf16.mxu0 0
    %3046 = vmatmul.mubr.bf16.gmra.mrb[0].mxu0 %v2971
    %v3047 = vpop.f32.mrb[0].mxu0
    %v3048 = vadd.f32 0.0, %v3047
    %v3049 = vpop.f32.mrb[0].mxu0
    %v3050 = vadd.f32 0.0, %v3049
    %v3051 = vpop.f32.mrb[0].mxu0
    %v3052 = vpop.f32.mrb[0].mxu0
    %3053 = vdwg.mxu0
    %v3054 = vadd.f32 %v2967, %v3007
    %v3055 = vadd.f32 %v2968, %v3009
    %v3056 = vadd.f32 %v2969, %v3048
    %v3057 = vadd.f32 %v2970, %v3050
    %v3058 = vxor.u32 %v3054, 2147483648
    %v3059 = vxor.u32 %v3055, 2147483648
    %v3060 = vxor.u32 %v3056, 2147483648
    %v3061 = vmul.f32 %v3058, 1.442695
    %v3062 = vpow.pop %v3061
    %v3063 = vmul.f32 %v3059, 1.442695
    %v3064 = vpow.pop %v3063
    %v3065 = vmul.f32 %v3060, 1.442695
    %v3066 = vpow.pop %v3065
    %v3067 = vadd.f32 %v3062, 1.0
    %v3068 = vadd.f32 %v3064, 1.0
    %v3069 = vadd.f32 %v3066, 1.0
    %v3070 = vrcp.pop %v3067
    %v3071 = vmul.f32 1.0, %v3070
    %v3072 = vrcp.pop %v3068
    %v3073 = vmul.f32 1.0, %v3072
    %v3074 = vrcp.pop %v3069
    %v3075 = vmul.f32 1.0, %v3074
    %v3076 = vtanh.pop %v3057
    %v3077 = vmul.f32 %v3073, %v2964
    %v3078 = vmul.f32 %v3071, %v3076
    %v3079 = vadd.f32 %v3077, %v3078
    %v3080 = vtanh.pop %v3079
    %v3081 = vmul.f32 %v3075, %v3080
    %v3082 = vld [vmem:[%s1243] sm:$0xff]
    %v3083 = vld [vmem:[%s1243 + $0x8] sm:$0xff]
    %v3084 = vld [vmem:[%s1243 + $0x10] sm:$0xff]
    %v3085 = vld [vmem:[%s1243 + $0x18] sm:$0xff]
    %v3086 = vpack.c.bf16 %v3081, %v3081
    %3087 = vmatprep.subr.bf16.mxu0 %v2679
    %3088 = vmatpush1.bf16.msra.mxu0 %v2678
    %3089 = vmatprep.subr.bf16.mxu0 %v2683
    %3090 = vmatpush1.bf16.msra.mxu0 %v2682
    %3091 = vmatprep.subr.bf16.mxu0 %v2687
    %3092 = vmatpush1.bf16.msra.mxu0 %v2686
    %3093 = vmatprep.subr.bf16.mxu0 %v2691
    %3094 = vmatpush1.bf16.msra.mxu0 %v2690
    %3095 = vmatprep.subr.bf16.mxu0 %v2695
    %3096 = vmatpush1.bf16.msra.mxu0 %v2694
    %3097 = vmatprep.subr.bf16.mxu0 %v2699
    %3098 = vmatpush1.bf16.msra.mxu0 %v2698
    %3099 = vmatprep.subr.bf16.mxu0 %v2703
    %3100 = vmatpush1.bf16.msra.mxu0 %v2702
    %3101 = vmatprep.subr.bf16.mxu0 %v2707
    %3102 = vmatpush1.bf16.msra.mxu0 %v2706
    %3103 = vmatprep.subr.bf16.mxu0 0
    %3104 = vmatpush1.bf16.msra.mxu0 0
    %3105 = vmatprep.subr.bf16.mxu0 0
    %3106 = vmatpush1.bf16.msra.mxu0 0
    %3107 = vmatprep.subr.bf16.mxu0 0
    %3108 = vmatpush1.bf16.msra.mxu0 0
    %3109 = vmatprep.subr.bf16.mxu0 0
    %3110 = vmatpush1.bf16.msra.mxu0 0
    %3111 = vmatprep.subr.bf16.mxu0 0
    %3112 = vmatpush1.bf16.msra.mxu0 0
    %3113 = vmatprep.subr.bf16.mxu0 0
    %3114 = vmatpush1.bf16.msra.mxu0 0
    %3115 = vmatprep.subr.bf16.mxu0 0
    %3116 = vmatpush1.bf16.msra.mxu0 0
    %3117 = vmatprep.subr.bf16.mxu0 0
    %3118 = vmatpush1.bf16.msra.mxu0 0
    %3119 = vmatprep.mubr.bf16.mxu0 0
    %3120 = vmatmul.mubr.bf16.gmra.mrb[0].mxu0 %v3086
    %v3121 = vpop.f32.mrb[0].mxu0
    %v3122 = vadd.f32 0.0, %v3121
    %v3123 = vpop.f32.mrb[0].mxu0
    %v3124 = vadd.f32 0.0, %v3123
    %v3125 = vpop.f32.mrb[0].mxu0
    %v3126 = vpop.f32.mrb[0].mxu0
    %3127 = vdwg.mxu0
    %3128 = vmatprep.subr.bf16.mxu0 %v2681
    %3129 = vmatpush1.bf16.msra.mxu0 %v2680
    %3130 = vmatprep.subr.bf16.mxu0 %v2685
    %3131 = vmatpush1.bf16.msra.mxu0 %v2684
    %3132 = vmatprep.subr.bf16.mxu0 %v2689
    %3133 = vmatpush1.bf16.msra.mxu0 %v2688
    %3134 = vmatprep.subr.bf16.mxu0 %v2693
    %3135 = vmatpush1.bf16.msra.mxu0 %v2692
    %3136 = vmatprep.subr.bf16.mxu0 %v2697
    %3137 = vmatpush1.bf16.msra.mxu0 %v2696
    %3138 = vmatprep.subr.bf16.mxu0 %v2701
    %3139 = vmatpush1.bf16.msra.mxu0 %v2700
    %3140 = vmatprep.subr.bf16.mxu0 %v2705
    %3141 = vmatpush1.bf16.msra.mxu0 %v2704
    %3142 = vmatprep.subr.bf16.mxu0 %v2709
    %3143 = vmatpush1.bf16.msra.mxu0 %v2708
    %3144 = vmatprep.subr.bf16.mxu0 0
    %3145 = vmatpush1.bf16.msra.mxu0 0
    %3146 = vmatprep.subr.bf16.mxu0 0
    %3147 = vmatpush1.bf16.msra.mxu0 0
    %3148 = vmatprep.subr.bf16.mxu0 0
    %3149 = vmatpush1.bf16.msra.mxu0 0
    %3150 = vmatprep.subr.bf16.mxu0 0
    %3151 = vmatpush1.bf16.msra.mxu0 0
    %3152 = vmatprep.subr.bf16.mxu0 0
    %3153 = vmatpush1.bf16.msra.mxu0 0
    %3154 = vmatprep.subr.bf16.mxu0 0
    %3155 = vmatpush1.bf16.msra.mxu0 0
    %3156 = vmatprep.subr.bf16.mxu0 0
    %3157 = vmatpush1.bf16.msra.mxu0 0
    %3158 = vmatprep.subr.bf16.mxu0 0
    %3159 = vmatpush1.bf16.msra.mxu0 0
    %3160 = vmatprep.mubr.bf16.mxu0 0
    %3161 = vmatmul.mubr.bf16.gmra.mrb[0].mxu0 %v3086
    %v3162 = vpop.f32.mrb[0].mxu0
    %v3163 = vadd.f32 0.0, %v3162
    %v3164 = vpop.f32.mrb[0].mxu0
    %v3165 = vadd.f32 0.0, %v3164
    %v3166 = vpop.f32.mrb[0].mxu0
    %v3167 = vpop.f32.mrb[0].mxu0
    %3168 = vdwg.mxu0
    %v3169 = vadd.f32 %v3082, %v3122
    %v3170 = vadd.f32 %v3083, %v3124
    %v3171 = vadd.f32 %v3084, %v3163
    %v3172 = vadd.f32 %v3085, %v3165
    %v3173 = vxor.u32 %v3169, 2147483648
    %v3174 = vxor.u32 %v3170, 2147483648
    %v3175 = vxor.u32 %v3171, 2147483648
    %v3176 = vmul.f32 %v3173, 1.442695
    %v3177 = vpow.pop %v3176
    %v3178 = vmul.f32 %v3174, 1.442695
    %v3179 = vpow.pop %v3178
    %v3180 = vmul.f32 %v3175, 1.442695
    %v3181 = vpow.pop %v3180
    %v3182 = vadd.f32 %v3177, 1.0
    %v3183 = vadd.f32 %v3179, 1.0
    %v3184 = vadd.f32 %v3181, 1.0
    %v3185 = vrcp.pop %v3182
    %v3186 = vmul.f32 1.0, %v3185
    %v3187 = vrcp.pop %v3183
    %v3188 = vmul.f32 1.0, %v3187
    %v3189 = vrcp.pop %v3184
    %v3190 = vmul.f32 1.0, %v3189
    %v3191 = vtanh.pop %v3172
    %v3192 = vmul.f32 %v3188, %v3079
    %v3193 = vmul.f32 %v3186, %v3191
    %v3194 = vadd.f32 %v3192, %v3193
    %v3195 = vtanh.pop %v3194
    %v3196 = vmul.f32 %v3190, %v3195
    %v3197 = vld [vmem:[%s1553] sm:$0xff]
    %v3198 = vld [vmem:[%s1553 + $0x8] sm:$0xff]
    %v3199 = vld [vmem:[%s1553 + $0x10] sm:$0xff]
    %v3200 = vld [vmem:[%s1553 + $0x18] sm:$0xff]
    %v3201 = vpack.c.bf16 %v3196, %v3196
    %3202 = vmatprep.subr.bf16.mxu0 %v2679
    %3203 = vmatpush1.bf16.msra.mxu0 %v2678
    %3204 = vmatprep.subr.bf16.mxu0 %v2683
    %3205 = vmatpush1.bf16.msra.mxu0 %v2682
    %3206 = vmatprep.subr.bf16.mxu0 %v2687
    %3207 = vmatpush1.bf16.msra.mxu0 %v2686
    %3208 = vmatprep.subr.bf16.mxu0 %v2691
    %3209 = vmatpush1.bf16.msra.mxu0 %v2690
    %3210 = vmatprep.subr.bf16.mxu0 %v2695
    %3211 = vmatpush1.bf16.msra.mxu0 %v2694
    %3212 = vmatprep.subr.bf16.mxu0 %v2699
    %3213 = vmatpush1.bf16.msra.mxu0 %v2698
    %3214 = vmatprep.subr.bf16.mxu0 %v2703
    %3215 = vmatpush1.bf16.msra.mxu0 %v2702
    %3216 = vmatprep.subr.bf16.mxu0 %v2707
    %3217 = vmatpush1.bf16.msra.mxu0 %v2706
    %3218 = vmatprep.subr.bf16.mxu0 0
    %3219 = vmatpush1.bf16.msra.mxu0 0
    %3220 = vmatprep.subr.bf16.mxu0 0
    %3221 = vmatpush1.bf16.msra.mxu0 0
    %3222 = vmatprep.subr.bf16.mxu0 0
    %3223 = vmatpush1.bf16.msra.mxu0 0
    %3224 = vmatprep.subr.bf16.mxu0 0
    %3225 = vmatpush1.bf16.msra.mxu0 0
    %3226 = vmatprep.subr.bf16.mxu0 0
    %3227 = vmatpush1.bf16.msra.mxu0 0
    %3228 = vmatprep.subr.bf16.mxu0 0
    %3229 = vmatpush1.bf16.msra.mxu0 0
    %3230 = vmatprep.subr.bf16.mxu0 0
    %3231 = vmatpush1.bf16.msra.mxu0 0
    %3232 = vmatprep.subr.bf16.mxu0 0
    %3233 = vmatpush1.bf16.msra.mxu0 0
    %3234 = vmatprep.mubr.bf16.mxu0 0
    %3235 = vmatmul.mubr.bf16.gmra.mrb[0].mxu0 %v3201
    %v3236 = vpop.f32.mrb[0].mxu0
    %v3237 = vadd.f32 0.0, %v3236
    %v3238 = vpop.f32.mrb[0].mxu0
    %v3239 = vadd.f32 0.0, %v3238
    %v3240 = vpop.f32.mrb[0].mxu0
    %v3241 = vpop.f32.mrb[0].mxu0
    %3242 = vdwg.mxu0
    %3243 = vmatprep.subr.bf16.mxu0 %v2681
    %3244 = vmatpush1.bf16.msra.mxu0 %v2680
    %3245 = vmatprep.subr.bf16.mxu0 %v2685
    %3246 = vmatpush1.bf16.msra.mxu0 %v2684
    %3247 = vmatprep.subr.bf16.mxu0 %v2689
    %3248 = vmatpush1.bf16.msra.mxu0 %v2688
    %3249 = vmatprep.subr.bf16.mxu0 %v2693
    %3250 = vmatpush1.bf16.msra.mxu0 %v2692
    %3251 = vmatprep.subr.bf16.mxu0 %v2697
    %3252 = vmatpush1.bf16.msra.mxu0 %v2696
    %3253 = vmatprep.subr.bf16.mxu0 %v2701
    %3254 = vmatpush1.bf16.msra.mxu0 %v2700
    %3255 = vmatprep.subr.bf16.mxu0 %v2705
    %3256 = vmatpush1.bf16.msra.mxu0 %v2704
    %3257 = vmatprep.subr.bf16.mxu0 %v2709
    %3258 = vmatpush1.bf16.msra.mxu0 %v2708
    %3259 = vmatprep.subr.bf16.mxu0 0
    %3260 = vmatpush1.bf16.msra.mxu0 0
    %3261 = vmatprep.subr.bf16.mxu0 0
    %3262 = vmatpush1.bf16.msra.mxu0 0
    %3263 = vmatprep.subr.bf16.mxu0 0
    %3264 = vmatpush1.bf16.msra.mxu0 0
    %3265 = vmatprep.subr.bf16.mxu0 0
    %3266 = vmatpush1.bf16.msra.mxu0 0
    %3267 = vmatprep.subr.bf16.mxu0 0
    %3268 = vmatpush1.bf16.msra.mxu0 0
    %3269 = vmatprep.subr.bf16.mxu0 0
    %3270 = vmatpush1.bf16.msra.mxu0 0
    %3271 = vmatprep.subr.bf16.mxu0 0
    %3272 = vmatpush1.bf16.msra.mxu0 0
    %3273 = vmatprep.subr.bf16.mxu0 0
    %3274 = vmatpush1.bf16.msra.mxu0 0
    %3275 = vmatprep.mubr.bf16.mxu0 0
    %3276 = vmatmul.mubr.bf16.gmra.mrb[0].mxu0 %v3201
    %v3277 = vpop.f32.mrb[0].mxu0
    %v3278 = vadd.f32 0.0, %v3277
    %v3279 = vpop.f32.mrb[0].mxu0
    %v3280 = vadd.f32 0.0, %v3279
    %v3281 = vpop.f32.mrb[0].mxu0
    %v3282 = vpop.f32.mrb[0].mxu0
    %3283 = vdwg.mxu0
    %v3284 = vadd.f32 %v3197, %v3237
    %v3285 = vadd.f32 %v3198, %v3239
    %v3286 = vadd.f32 %v3199, %v3278
    %v3287 = vadd.f32 %v3200, %v3280
    %v3288 = vxor.u32 %v3284, 2147483648
    %v3289 = vxor.u32 %v3285, 2147483648
    %v3290 = vxor.u32 %v3286, 2147483648
    %v3291 = vmul.f32 %v3288, 1.442695
    %v3292 = vpow.pop %v3291
    %v3293 = vmul.f32 %v3289, 1.442695
    %v3294 = vpow.pop %v3293
    %v3295 = vmul.f32 %v3290, 1.442695
    %v3296 = vpow.pop %v3295
    %v3297 = vadd.f32 %v3292, 1.0
    %v3298 = vadd.f32 %v3294, 1.0
    %v3299 = vadd.f32 %v3296, 1.0
    %v3300 = vrcp.pop %v3297
    %v3301 = vmul.f32 1.0, %v3300
    %v3302 = vrcp.pop %v3298
    %v3303 = vmul.f32 1.0, %v3302
    %v3304 = vrcp.pop %v3299
    %v3305 = vmul.f32 1.0, %v3304
    %v3306 = vtanh.pop %v3287
    %v3307 = vmul.f32 %v3303, %v3194
    %v3308 = vmul.f32 %v3301, %v3306
    %v3309 = vadd.f32 %v3307, %v3308
    %v3310 = vtanh.pop %v3309
    %v3311 = vmul.f32 %v3305, %v3310
    %v3312 = vld [vmem:[%s1863] sm:$0xff]
    %v3313 = vld [vmem:[%s1863 + $0x8] sm:$0xff]
    %v3314 = vld [vmem:[%s1863 + $0x10] sm:$0xff]
    %v3315 = vld [vmem:[%s1863 + $0x18] sm:$0xff]
    %v3316 = vpack.c.bf16 %v3311, %v3311
    %3317 = vmatprep.subr.bf16.mxu0 %v2679
    %3318 = vmatpush1.bf16.msra.mxu0 %v2678
    %3319 = vmatprep.subr.bf16.mxu0 %v2683
    %3320 = vmatpush1.bf16.msra.mxu0 %v2682
    %3321 = vmatprep.subr.bf16.mxu0 %v2687
    %3322 = vmatpush1.bf16.msra.mxu0 %v2686
    %3323 = vmatprep.subr.bf16.mxu0 %v2691
    %3324 = vmatpush1.bf16.msra.mxu0 %v2690
    %3325 = vmatprep.subr.bf16.mxu0 %v2695
    %3326 = vmatpush1.bf16.msra.mxu0 %v2694
    %3327 = vmatprep.subr.bf16.mxu0 %v2699
    %3328 = vmatpush1.bf16.msra.mxu0 %v2698
    %3329 = vmatprep.subr.bf16.mxu0 %v2703
    %3330 = vmatpush1.bf16.msra.mxu0 %v2702
    %3331 = vmatprep.subr.bf16.mxu0 %v2707
    %3332 = vmatpush1.bf16.msra.mxu0 %v2706
    %3333 = vmatprep.subr.bf16.mxu0 0
    %3334 = vmatpush1.bf16.msra.mxu0 0
    %3335 = vmatprep.subr.bf16.mxu0 0
    %3336 = vmatpush1.bf16.msra.mxu0 0
    %3337 = vmatprep.subr.bf16.mxu0 0
    %3338 = vmatpush1.bf16.msra.mxu0 0
    %3339 = vmatprep.subr.bf16.mxu0 0
    %3340 = vmatpush1.bf16.msra.mxu0 0
    %3341 = vmatprep.subr.bf16.mxu0 0
    %3342 = vmatpush1.bf16.msra.mxu0 0
    %3343 = vmatprep.subr.bf16.mxu0 0
    %3344 = vmatpush1.bf16.msra.mxu0 0
    %3345 = vmatprep.subr.bf16.mxu0 0
    %3346 = vmatpush1.bf16.msra.mxu0 0
    %3347 = vmatprep.subr.bf16.mxu0 0
    %3348 = vmatpush1.bf16.msra.mxu0 0
    %3349 = vmatprep.mubr.bf16.mxu0 0
    %3350 = vmatmul.mubr.bf16.gmra.mrb[0].mxu0 %v3316
    %v3351 = vpop.f32.mrb[0].mxu0
    %v3352 = vadd.f32 0.0, %v3351
    %v3353 = vpop.f32.mrb[0].mxu0
    %v3354 = vadd.f32 0.0, %v3353
    %v3355 = vpop.f32.mrb[0].mxu0
    %v3356 = vpop.f32.mrb[0].mxu0
    %3357 = vdwg.mxu0
    %3358 = vmatprep.subr.bf16.mxu0 %v2681
    %3359 = vmatpush1.bf16.msra.mxu0 %v2680
    %3360 = vmatprep.subr.bf16.mxu0 %v2685
    %3361 = vmatpush1.bf16.msra.mxu0 %v2684
    %3362 = vmatprep.subr.bf16.mxu0 %v2689
    %3363 = vmatpush1.bf16.msra.mxu0 %v2688
    %3364 = vmatprep.subr.bf16.mxu0 %v2693
    %3365 = vmatpush1.bf16.msra.mxu0 %v2692
    %3366 = vmatprep.subr.bf16.mxu0 %v2697
    %3367 = vmatpush1.bf16.msra.mxu0 %v2696
    %3368 = vmatprep.subr.bf16.mxu0 %v2701
    %3369 = vmatpush1.bf16.msra.mxu0 %v2700
    %3370 = vmatprep.subr.bf16.mxu0 %v2705
    %3371 = vmatpush1.bf16.msra.mxu0 %v2704
    %3372 = vmatprep.subr.bf16.mxu0 %v2709
    %3373 = vmatpush1.bf16.msra.mxu0 %v2708
    %3374 = vmatprep.subr.bf16.mxu0 0
    %3375 = vmatpush1.bf16.msra.mxu0 0
    %3376 = vmatprep.subr.bf16.mxu0 0
    %3377 = vmatpush1.bf16.msra.mxu0 0
    %3378 = vmatprep.subr.bf16.mxu0 0
    %3379 = vmatpush1.bf16.msra.mxu0 0
    %3380 = vmatprep.subr.bf16.mxu0 0
    %3381 = vmatpush1.bf16.msra.mxu0 0
    %3382 = vmatprep.subr.bf16.mxu0 0
    %3383 = vmatpush1.bf16.msra.mxu0 0
    %3384 = vmatprep.subr.bf16.mxu0 0
    %3385 = vmatpush1.bf16.msra.mxu0 0
    %3386 = vmatprep.subr.bf16.mxu0 0
    %3387 = vmatpush1.bf16.msra.mxu0 0
    %3388 = vmatprep.subr.bf16.mxu0 0
    %3389 = vmatpush1.bf16.msra.mxu0 0
    %3390 = vmatprep.mubr.bf16.mxu0 0
    %3391 = vmatmul.mubr.bf16.gmra.mrb[0].mxu0 %v3316
    %v3392 = vpop.f32.mrb[0].mxu0
    %v3393 = vadd.f32 0.0, %v3392
    %v3394 = vpop.f32.mrb[0].mxu0
    %v3395 = vadd.f32 0.0, %v3394
    %v3396 = vpop.f32.mrb[0].mxu0
    %v3397 = vpop.f32.mrb[0].mxu0
    %3398 = vdwg.mxu0
    %v3399 = vadd.f32 %v3312, %v3352
    %v3400 = vadd.f32 %v3313, %v3354
    %v3401 = vadd.f32 %v3314, %v3393
    %v3402 = vadd.f32 %v3315, %v3395
    %v3403 = vxor.u32 %v3399, 2147483648
    %v3404 = vxor.u32 %v3400, 2147483648
    %v3405 = vxor.u32 %v3401, 2147483648
    %v3406 = vmul.f32 %v3403, 1.442695
    %v3407 = vpow.pop %v3406
    %v3408 = vmul.f32 %v3404, 1.442695
    %v3409 = vpow.pop %v3408
    %v3410 = vmul.f32 %v3405, 1.442695
    %v3411 = vpow.pop %v3410
    %v3412 = vadd.f32 %v3407, 1.0
    %v3413 = vadd.f32 %v3409, 1.0
    %v3414 = vadd.f32 %v3411, 1.0
    %v3415 = vrcp.pop %v3412
    %v3416 = vmul.f32 1.0, %v3415
    %v3417 = vrcp.pop %v3413
    %v3418 = vmul.f32 1.0, %v3417
    %v3419 = vrcp.pop %v3414
    %v3420 = vmul.f32 1.0, %v3419
    %v3421 = vtanh.pop %v3402
    %v3422 = vmul.f32 %v3418, %v3309
    %v3423 = vmul.f32 %v3416, %v3421
    %v3424 = vadd.f32 %v3422, %v3423
    %v3425 = vtanh.pop %v3424
    %v3426 = vmul.f32 %v3420, %v3425
    %v3427 = vpack.c.bf16 %v3426, %v3426
    %v3428 = vld [vmem:[#allocation10] sm:$0xf]
    %v3429 = vld [vmem:[#allocation10 + $0x4] sm:$0xf]
    %v3430 = vld [vmem:[#allocation10 + $0x8] sm:$0xf]
    %v3431 = vld [vmem:[#allocation10 + $0xc] sm:$0xf]
    %v3432 = vld [vmem:[#allocation10 + $0x10] sm:$0xf]
    %v3433 = vld [vmem:[#allocation10 + $0x14] sm:$0xf]
    %v3434 = vld [vmem:[#allocation10 + $0x18] sm:$0xf]
    %v3435 = vld [vmem:[#allocation10 + $0x1c] sm:$0xf]
    %v3436 = vld [vmem:[#allocation10 + $0x20] sm:$0xf]
    %v3437 = vld [vmem:[#allocation10 + $0x24] sm:$0xf]
    %v3438 = vld [vmem:[#allocation10 + $0x28] sm:$0xf]
    %v3439 = vld [vmem:[#allocation10 + $0x2c] sm:$0xf]
    %v3440 = vld [vmem:[#allocation10 + $0x30] sm:$0xf]
    %v3441 = vld [vmem:[#allocation10 + $0x34] sm:$0xf]
    %v3442 = vld [vmem:[#allocation10 + $0x38] sm:$0xf]
    %v3443 = vld [vmem:[#allocation10 + $0x3c] sm:$0xf]
    %v3444 = vld [vmem:[%s8] sm:$0x1]
    %v3446 = vlaneseq
    %v3447 = vshrl.u32 %v3446, 7
    %v3448 = vsub.s32 0, %v3447
    %v3449 = vrot.slane %v3444, %v3448
    %v3467 = vunpack.c.l.b16 %v3428
    %v3468 = vunpack.c.l.b16 %v3429
    %v3469 = vunpack.c.l.b16 %v3430
    %v3470 = vunpack.c.l.b16 %v3431
    %v3471 = vunpack.c.l.b16 %v3432
    %v3472 = vunpack.c.l.b16 %v3433
    %v3473 = vunpack.c.l.b16 %v3434
    %v3474 = vunpack.c.l.b16 %v3435
    %v3475 = vunpack.c.l.b16 %v3436
    %v3476 = vunpack.c.l.b16 %v3437
    %v3477 = vunpack.c.l.b16 %v3438
    %v3478 = vunpack.c.l.b16 %v3439
    %v3479 = vunpack.c.l.b16 %v3440
    %v3480 = vunpack.c.l.b16 %v3441
    %v3481 = vunpack.c.l.b16 %v3442
    %v3482 = vunpack.c.l.b16 %v3443
    %v3483 = vpack.c.b16 %v3468, %v3467
    %v3484 = vpack.c.b16 %v3470, %v3469
    %v3485 = vpack.c.b16 %v3472, %v3471
    %v3486 = vpack.c.b16 %v3474, %v3473
    %v3487 = vpack.c.b16 %v3476, %v3475
    %v3488 = vpack.c.b16 %v3478, %v3477
    %v3489 = vpack.c.b16 %v3480, %v3479
    %v3490 = vpack.c.b16 %v3482, %v3481
    %3499 = vmatprep.subr.bf16.mxu0 0
    %3500 = vmatpush1.bf16.msra.mxu0 %v3483
    %3501 = vmatprep.subr.bf16.mxu0 0
    %3502 = vmatpush1.bf16.msra.mxu0 %v3484
    %3503 = vmatprep.subr.bf16.mxu0 0
    %3504 = vmatpush1.bf16.msra.mxu0 %v3485
    %3505 = vmatprep.subr.bf16.mxu0 0
    %3506 = vmatpush1.bf16.msra.mxu0 %v3486
    %3507 = vmatprep.subr.bf16.mxu0 0
    %3508 = vmatpush1.bf16.msra.mxu0 %v3487
    %3509 = vmatprep.subr.bf16.mxu0 0
    %3510 = vmatpush1.bf16.msra.mxu0 %v3488
    %3511 = vmatprep.subr.bf16.mxu0 0
    %3512 = vmatpush1.bf16.msra.mxu0 %v3489
    %3513 = vmatprep.subr.bf16.mxu0 0
    %3514 = vmatpush1.bf16.msra.mxu0 %v3490
    %3515 = vmatprep.subr.bf16.mxu0 0
    %3516 = vmatpush1.bf16.msra.mxu0 0
    %3517 = vmatprep.subr.bf16.mxu0 0
    %3518 = vmatpush1.bf16.msra.mxu0 0
    %3519 = vmatprep.subr.bf16.mxu0 0
    %3520 = vmatpush1.bf16.msra.mxu0 0
    %3521 = vmatprep.subr.bf16.mxu0 0
    %3522 = vmatpush1.bf16.msra.mxu0 0
    %3523 = vmatprep.subr.bf16.mxu0 0
    %3524 = vmatpush1.bf16.msra.mxu0 0
    %3525 = vmatprep.subr.bf16.mxu0 0
    %3526 = vmatpush1.bf16.msra.mxu0 0
    %3527 = vmatprep.subr.bf16.mxu0 0
    %3528 = vmatpush1.bf16.msra.mxu0 0
    %3529 = vmatprep.subr.bf16.mxu0 0
    %3530 = vmatpush1.bf16.msra.mxu0 0
    %3531 = vmatprep.mubr.bf16.mxu0 0
    %3532 = vmatmul.mubr.bf16.gmra.mrb[0].mxu0 %v3427
    %v3533 = vpop.f32.mrb[0].mxu0
    %v3534 = vadd.f32 %v3449, %v3533
    %v3535 = vpop.f32.mrb[0].mxu0
    %v3536 = vpop.f32.mrb[0].mxu0
    %v3537 = vpop.f32.mrb[0].mxu0
    %3538 = vdwg.mxu0
    %3539 = vst [vmem:[#allocation12] sm:$0xff] %v3534
    // Predicated region
    $region54: #{tpu_custom_call.1} parent=1 // pred_check
      _
    $region55: #{tpu_custom_call.1} parent=1 // pred_check_branch
      %3541 = sbr.rel (0) target = $region57
    $region56: #{tpu_custom_call.1} parent=1 // pred_region
      %s3543 = ssub.s32 128, 128
      %3544 = vsyncadd [#allocation6], %s3543
      %s3546 = sshll.u32 [#allocation12], 4
      %s3547 = int_to_ptr.vmem [resolvable:$true] %s3546
      %3549 = dma.vmem_to_hbm [thread:$0]  %s3547, 128, %s9, [#allocation6]
    $region57: #{tpu_custom_call.1} parent=1 // pred_fallthru
      _
    // Predicated region
    $region58: #{tpu_custom_call.1} parent=1 // pred_check
      _
    $region59: #{tpu_custom_call.1} parent=1 // pred_check_branch
      %3551 = sbr.rel (0) target = $region61
    $region60: #{tpu_custom_call.1} parent=1 // pred_region
      %3552 = dma.done [#allocation6], 128
    $region61: #{tpu_custom_call.1} parent=1 // pred_fallthru
      _
    %3553 = vsyncpa [#allocation5], 1
    %3554 = vsyncpa [#allocation8], 1
    %3555 = vsyncpa [#allocation11], 1
    %3556 = vsyncpa [#allocation6], 1

</llo_original>
